<compile_context>
chip_gen: v7x
topology: tpu7x:2x2x1
jax: 0.10.0
libtpu: 0.0.40
codegen_flags: <defaults>
</compile_context>

<pallas_src>
import jax
import jax.numpy as jnp
from jax.experimental import pallas as pl
from jax.experimental.pallas import tpu as pltpu

# Make the pure-JAX reference (and the in-kernel dots) run at true f32 precision so
# the 1e-4 parity check is meaningful on TPU.
jax.config.update("jax_default_matmul_precision", "highest")


def _directional_mlp_pooling_kernel(feat_ref, wemb_ref, wo_ref, bo_ref, out_ref):
    tb, n, k = feat_ref.shape          # (TB, N, 8)
    d = wemb_ref.shape[1]              # mlp_dim
    out_dim = out_ref.shape[2]

    # Per-agent embedding E = feat @ W.  Rows 0-3 of W carry [Ws | 4*Wv]; feature
    # columns 4..7 are zero, so rows 4..7 (incl. the bias row) do not contribute.
    feat2 = feat_ref[...].reshape(tb * n, k)
    e = jnp.dot(feat2, wemb_ref[...], preferred_element_type=jnp.float32)  # (TB*N, D)
    e3 = e.reshape(tb, n, d)

    # Scene-wise max over neighbours j (self included, exactly as in the reference).
    m = jnp.max(e3, axis=1, keepdims=True)                                 # (TB, 1, D)

    # pooled[i] = max_j relu(E[j] - E[i] + b) = relu(max_j E[j] - E[i] + b)
    # (relu is monotone; E[i] and b are constant w.r.t. j).
    bias = wemb_ref[4:5, :]                                                # (1, D)
    pooled = jnp.maximum(m - e3 + bias, 0.0)                               # (TB, N, D)

    out = jnp.dot(pooled.reshape(tb * n, d), wo_ref[...],
                  preferred_element_type=jnp.float32) + bo_ref[...]        # (TB*N, out)
    out_ref[...] = out.reshape(tb, n, out_dim)


def directional_mlp_pooling(hidden_states, obs1, obs2, params, *, scene_block=64):
    """Batched DirectionalMLPPooling forward.

    obs1, obs2: (B, N, 2) float32 -- B independent scenes, each processed exactly
    like the PyTorch module's single-scene forward.  hidden_states is ignored
    (the module's forward signature is forward(self, _, obs1, obs2)).
    Returns (B, N, out_dim) float32.
    """
    del hidden_states  # unused by DirectionalMLPPooling.forward
    ws, bs, wv, bv, wo, bo = params
    B, N, _ = obs2.shape
    mlp_dim, out_dim = wo.shape
    ds = ws.shape[1]

    # ---- host-side packing --------------------------------------------------
    # Per-agent features: [x, y, vx, vy, 0, 0, 0, 0]  (one operand instead of two).
    vel = obs2 - obs1
    feat = jnp.concatenate(
        [obs2, vel, jnp.zeros((B, N, 4), obs2.dtype)], axis=-1)            # (B, N, 8)

    # Packed embedding weights (8, mlp_dim):
    #   rows 0-1: Ws (x, y) in columns [:ds]
    #   rows 2-3: 4 * Wv (vx, vy) in columns [ds:]
    #   row  4  : bias [bs | bv]  (not part of the matmul: feature column 4 is zero)
    wemb = jnp.zeros((8, mlp_dim), jnp.float32)
    wemb = wemb.at[0, :ds].set(ws[0]).at[1, :ds].set(ws[1])
    wemb = wemb.at[2, ds:].set(4.0 * wv[0]).at[3, ds:].set(4.0 * wv[1])
    wemb = wemb.at[4, :ds].set(bs).at[4, ds:].set(bv)
    bo2 = bo.reshape(1, out_dim)

    # ---- scene tiling ---------------------------------------------------------
    tb = int(min(scene_block, B))
    if B >= 2:
        tb = min(tb, (B + 1) // 2)    # keep >= 2 grid steps: uses both v7x TensorCores
    tb = max(tb, 1)
    pad = (-B) % tb
    if pad:
        feat = jnp.concatenate([feat, jnp.zeros((pad, N, 8), feat.dtype)], axis=0)
    bp = B + pad

    out = pl.pallas_call(
        _directional_mlp_pooling_kernel,
        out_shape=jax.ShapeDtypeStruct((bp, N, out_dim), jnp.float32),
        grid_spec=pltpu.PrefetchScalarGridSpec(
            num_scalar_prefetch=0,
            grid=(bp // tb,),
            in_specs=[
                pl.BlockSpec((tb, N, 8), lambda b: (b, 0, 0)),        # packed features
                pl.BlockSpec((8, mlp_dim), lambda b: (0, 0)),         # packed emb W + bias
                pl.BlockSpec((mlp_dim, out_dim), lambda b: (0, 0)),   # Wo
                pl.BlockSpec((1, out_dim), lambda b: (0, 0)),         # bo
            ],
            out_specs=pl.BlockSpec((tb, N, out_dim), lambda b: (b, 0, 0)),
        ),
        compiler_params=pltpu.CompilerParams(
            dimension_semantics=("parallel",)),
    )(feat, wemb, wo, bo2)

    return out[:B]


def init_params(key, hidden_dim=128, mlp_dim=128, mlp_dim_spatial=64, out_dim=None):
    """Deterministic nn.Linear-style init (uniform(-1/sqrt(fan_in), +1/sqrt(fan_in)))."""
    out_dim = out_dim or hidden_dim
    mlp_dim_vel = mlp_dim - mlp_dim_spatial
    ks = jax.random.split(key, 6)

    def lin(kw, kb, fan_in, fan_out):
        lim = 1.0 / jnp.sqrt(jnp.float32(fan_in))
        w = jax.random.uniform(kw, (fan_in, fan_out), jnp.float32, -lim, lim)
        b = jax.random.uniform(kb, (fan_out,), jnp.float32, -lim, lim)
        return w, b

    ws, bs = lin(ks[0], ks[1], 2, mlp_dim_spatial)
    wv, bv = lin(ks[2], ks[3], 2, mlp_dim_vel)
    wo, bo = lin(ks[4], ks[5], mlp_dim, out_dim)
    return (ws, bs, wv, bv, wo, bo)


def reference(obs1, obs2, params):
    """Pure-JAX transliteration of the PyTorch forward, vmapped over scenes."""
    ws, bs, wv, bv, wo, bo = params
    hi = jax.lax.Precision.HIGHEST

    def single(o1, o2):
        rel = o2[None, :, :] - o2[:, None, :]                       # rel_obs
        spatial = jax.nn.relu(jnp.einsum('ijk,kd->ijd', rel, ws, precision=hi) + bs)
        vel = o2 - o1
        rvel = vel[None, :, :] - vel[:, None, :]                    # rel_directional
        directional = jax.nn.relu(
            jnp.einsum('ijk,kd->ijd', rvel * 4.0, wv, precision=hi) + bv)
        emb = jnp.concatenate([spatial, directional], axis=2)
        pooled = jnp.max(emb, axis=1)
        return jnp.dot(pooled, wo, precision=hi) + bo

    return jax.vmap(single)(obs1, obs2)


if __name__ == "__main__":
    key = jax.random.PRNGKey(0)
    B, N = 64, 8                   # 64 independent scenes, 8 agents each
    hidden_dim = 128
    mlp_dim = 128
    mlp_dim_spatial = 64

    k1, k2, kp = jax.random.split(key, 3)
    obs1 = jax.random.normal(k1, (B, N, 2), jnp.float32)
    obs2 = obs1 + 0.1 * jax.random.normal(k2, (B, N, 2), jnp.float32)

    params = init_params(kp, hidden_dim, mlp_dim, mlp_dim_spatial)
    hidden_states = jnp.zeros((B, N, hidden_dim), jnp.float32)  # ignored by forward

    out = directional_mlp_pooling(hidden_states, obs1, obs2, params, scene_block=32)
    jax.block_until_ready(out)

    ref = reference(obs1, obs2, params)
    assert out.shape == (B, N, hidden_dim), out.shape
    max_err = float(jnp.max(jnp.abs(out - ref)))
    assert jnp.allclose(out, ref, atol=1e-4, rtol=1e-4), max_err
    print("KERNEL_OK")
</pallas_src>

<mosaic_0001>
module attributes {stable_mosaic.version = 11 : i64} {
  func.func @_directional_mlp_pooling_kernel(%arg0: i32, %arg1: memref<32x8x8xf32, #tpu.memory_space<vmem>>, %arg2: memref<8x128xf32, #tpu.memory_space<vmem>>, %arg3: memref<128x128xf32, #tpu.memory_space<vmem>>, %arg4: memref<1x128xf32, #tpu.memory_space<vmem>>, %arg5: memref<32x8x128xf32, #tpu.memory_space<vmem>>) attributes {dimension_semantics = [#tpu.dimension_semantics<parallel>], iteration_bounds = array<i64: 2>, scalar_prefetch = 0 : i64, scratch_operands = 0 : i64, tpu.core_type = #tpu.core_type<tc>, window_params = [{transform_indices = @transform_0, window_bounds = array<i64: 32, 8, 8>}, {pipeline_mode = #tpu.pipeline_mode<synchronous>, transform_indices = @transform_1, window_bounds = array<i64: 8, 128>}, {pipeline_mode = #tpu.pipeline_mode<synchronous>, transform_indices = @transform_2, window_bounds = array<i64: 128, 128>}, {pipeline_mode = #tpu.pipeline_mode<synchronous>, transform_indices = @transform_3, window_bounds = array<i64: 1, 128>}, {transform_indices = @transform_4, window_bounds = array<i64: 32, 8, 128>}]} {
    %c0 = arith.constant 0 : index
    %c0_0 = arith.constant 0 : index
    %c0_1 = arith.constant 0 : index
    %0 = vector.load %arg1[%c0, %c0_0, %c0_1] : memref<32x8x8xf32, #tpu.memory_space<vmem>>, vector<32x8x8xf32>
    %1 = vector.shape_cast %0 : vector<32x8x8xf32> to vector<256x8xf32>
    %c0_2 = arith.constant 0 : index
    %c0_3 = arith.constant 0 : index
    %2 = vector.load %arg2[%c0_2, %c0_3] : memref<8x128xf32, #tpu.memory_space<vmem>>, vector<8x128xf32>
    %cst = arith.constant dense<0.000000e+00> : vector<256x128xf32>
    %3 = tpu.matmul %1, %2, %cst {dimension_numbers = #tpu.dot_dimension_numbers<[1], [0], [0], [1], [0, 0, 1, 1], [], []>, precision = #tpu.contract_precision<fp32>} : vector<256x8xf32>, vector<8x128xf32>, vector<256x128xf32> -> vector<256x128xf32>
    %4 = vector.shape_cast %3 : vector<256x128xf32> to vector<32x8x128xf32>
    %cst_4 = arith.constant dense<0xFF800000> : vector<32x128xf32>
    %5 = vector.multi_reduction <maximumf>, %4, %cst_4 [1] : vector<32x8x128xf32> to vector<32x128xf32>
    %6 = vector.shape_cast %5 : vector<32x128xf32> to vector<32x1x128xf32>
    %c4 = arith.constant 4 : index
    %c0_5 = arith.constant 0 : index
    %7 = vector.load %arg2[%c4, %c0_5] : memref<8x128xf32, #tpu.memory_space<vmem>>, vector<1x128xf32>
    %8 = vector.broadcast %6 : vector<32x1x128xf32> to vector<32x8x128xf32>
    %9 = arith.subf %8, %4 : vector<32x8x128xf32>
    %10 = vector.shape_cast %7 : vector<1x128xf32> to vector<1x1x128xf32>
    %11 = vector.broadcast %10 : vector<1x1x128xf32> to vector<32x8x128xf32>
    %12 = arith.addf %9, %11 : vector<32x8x128xf32>
    %cst_6 = arith.constant 0.000000e+00 : f32
    %13 = vector.broadcast %cst_6 : f32 to vector<32x8x128xf32>
    %14 = arith.maximumf %12, %13 : vector<32x8x128xf32>
    %15 = vector.shape_cast %14 : vector<32x8x128xf32> to vector<256x128xf32>
    %c0_7 = arith.constant 0 : index
    %c0_8 = arith.constant 0 : index
    %16 = vector.load %arg3[%c0_7, %c0_8] : memref<128x128xf32, #tpu.memory_space<vmem>>, vector<128x128xf32>
    %cst_9 = arith.constant dense<0.000000e+00> : vector<256x128xf32>
    %17 = tpu.matmul %15, %16, %cst_9 {dimension_numbers = #tpu.dot_dimension_numbers<[1], [0], [0], [1], [0, 0, 1, 1], [], []>, precision = #tpu.contract_precision<fp32>} : vector<256x128xf32>, vector<128x128xf32>, vector<256x128xf32> -> vector<256x128xf32>
    %c0_10 = arith.constant 0 : index
    %c0_11 = arith.constant 0 : index
    %18 = vector.load %arg4[%c0_10, %c0_11] : memref<1x128xf32, #tpu.memory_space<vmem>>, vector<1x128xf32>
    %19 = vector.broadcast %18 : vector<1x128xf32> to vector<256x128xf32>
    %20 = arith.addf %17, %19 : vector<256x128xf32>
    %21 = vector.shape_cast %20 : vector<256x128xf32> to vector<32x8x128xf32>
    %c0_12 = arith.constant 0 : index
    %c0_13 = arith.constant 0 : index
    %c0_14 = arith.constant 0 : index
    %22 = vector.load %arg5[%c0_12, %c0_13, %c0_14] : memref<32x8x128xf32, #tpu.memory_space<vmem>>, vector<32x8x128xf32>
    tpu.vector_store %arg5[%c0_12, %c0_13, %c0_14], %21 {strides = array<i32>} : memref<32x8x128xf32, #tpu.memory_space<vmem>>, vector<32x8x128xf32>,
    return
  }
  func.func @transform_0(%arg0: i32) -> (i32, i32, i32) {
    %c0_i32 = arith.constant 0 : i32
    %c0_i32_0 = arith.constant 0 : i32
    %c0_i32_1 = arith.constant 0 : i32
    return %arg0, %c0_i32, %c0_i32_0 : i32, i32, i32
  }
  func.func @transform_1(%arg0: i32) -> (i32, i32) {
    %c0_i32 = arith.constant 0 : i32
    %c0_i32_0 = arith.constant 0 : i32
    %c0_i32_1 = arith.constant 0 : i32
    return %c0_i32, %c0_i32_0 : i32, i32
  }
  func.func @transform_2(%arg0: i32) -> (i32, i32) {
    %c0_i32 = arith.constant 0 : i32
    %c0_i32_0 = arith.constant 0 : i32
    %c0_i32_1 = arith.constant 0 : i32
    return %c0_i32, %c0_i32_0 : i32, i32
  }
  func.func @transform_3(%arg0: i32) -> (i32, i32) {
    %c0_i32 = arith.constant 0 : i32
    %c0_i32_0 = arith.constant 0 : i32
    %c0_i32_1 = arith.constant 0 : i32
    return %c0_i32, %c0_i32_0 : i32, i32
  }
  func.func @transform_4(%arg0: i32) -> (i32, i32, i32) {
    %c0_i32 = arith.constant 0 : i32
    %c0_i32_0 = arith.constant 0 : i32
    %c0_i32_1 = arith.constant 0 : i32
    return %arg0, %c0_i32, %c0_i32_0 : i32, i32, i32
  }
}

</mosaic_0001>

<llo_original>
// kernel: tpu_custom_call.1
$region0: #{tpu_custom_call.1}
  #allocation0 [shape = 'u32[]', space=smem, size = 0x4, offset = 0x4, fixed_abs, tag = 'smem constant byte address 0x4 - core index']
  #allocation1 [shape = 'u32[144,128]{1,0:T(1,128)}', space=vmem, size = 0x12000, scoped, tag = 'internal scratch']
  %s0 = inlined_call_operand.vmem [shape: f32[64,8,8], index: 0, kind: input, shape index: {}]
  %s1 = inlined_call_operand.vmem [shape: f32[8,128], index: 1, kind: input, shape index: {}]
  %s2 = inlined_call_operand.vmem [shape: f32[128,128], index: 2, kind: input, shape index: {}]
  %s3 = inlined_call_operand.vmem [shape: f32[1,128], index: 3, kind: input, shape index: {}]
  %s4 = inlined_call_operand.hbm [shape: f32[64,8,128], index: 4, kind: output, shape index: {}]
  %s5 = sld [smem:[#allocation0]]
  $region49: #{tpu_custom_call.1} parent=0
    _
  %s7 = ssub.s32 1, %s5
  %s8 = scalar_select 0, %s7, %s5
  $region1: #{tpu_custom_call.1} parent=0
    #allocation2 [shape = 'u8[262144]{0}', space=vmem, size = 0x40000, scoped, tag = 'output window, operand 0']
    #allocation3 [shape = 's32[2]{0}', space=sflag, size = 0x8, scoped, tag = 'scoped memory for tpu_custom_call.1']
    %9 = vsyncpa [#allocation3], 0
    %s10 = scalar_lea.sflag [#allocation3], 1
    %11 = vsyncpa %s10, 0
    loop: start=0, step=1, limit=4
    $region2: #{tpu_custom_call.1} parent=1 // loop_pre_header
      _
    $region3: #{tpu_custom_call.1} parent=1 // loop_header
      %s13 = sphi 0, %s17
      %p14 = scmp.ge.s32.totalorder %s13, 4
      %s23 = sphi 0, %s25
      %s26 = sphi 0, %s23
      %s27 = sphi 0, %s26
      %s43 = sphi 0, %s27
      %s47 = sphi 0, %s47
      %s49 = sphi 0, %s47
      %s50 = sphi 0, %s49
      %s64 = sphi 0, %s50
      %s68 = sphi 0, %s68
      %s70 = sphi 0, %s68
      %s71 = sphi 0, %s70
      %s85 = sphi 0, %s71
      %s89 = sphi 0, %s89
      %s91 = sphi 0, %s89
      %s92 = sphi 0, %s91
      %s106 = sphi 0, %s92
      %s112 = sphi 0, %s114
      %s115 = sphi 0, %s112
      %s116 = sphi 0, %s115
      %s132 = sphi 0, %s116
    $region4: #{tpu_custom_call.1} parent=1 // loop_header_branch
      %16 = sbr.rel (%p14) target = $region8
    $region5: #{tpu_custom_call.1} parent=1 // loop_body
      %s18 = ssub.s32 %s13, 1
      %s19 = ssub.s32 %s13, 2
      %s20 = sadd.s32 %s13, 1
      %s21 = ssub.s32 %s13, %s20
      %p22 = scmp.eq.s32.totalorder %s21, 0
      %s24 = sadd.s32 %s23, 1
      %s25 = scalar_select %p22, %s23, %s24
      %p28 = pneg %p22
      %p29 = scmp.eq.s32.totalorder %s13, 1
      %p30 = por %p28, %p29
      %p31 = scmp.ne.s32.totalorder %s23, %s26
      %p32 = scmp.eq.s32.totalorder %s13, 0
      %p33 = por %p31, %p32
      %p34 = scmp.ne.s32.totalorder %s23, %s26
      %p35 = scmp.eq.s32.totalorder %s18, 1
      %p36 = por %p34, %p35
      %p37 = scmp.ne.s32.totalorder %s26, %s27
      %p38 = scmp.eq.s32.totalorder %s18, 0
      %p39 = por %p37, %p38
      %p40 = scmp.ne.s32.totalorder %s26, %s27
      %p41 = scmp.eq.s32.totalorder %s19, 1
      %p42 = por %p40, %p41
      %p44 = scmp.ne.s32.totalorder %s27, %s43
      %p45 = scmp.eq.s32.totalorder %s19, 0
      %p46 = por %p44, %p45
      %s48 = sadd.s32 %s47, 1
      %p51 = scmp.eq.s32.totalorder %s13, 1
      %p52 = scmp.ne.s32.totalorder %s47, %s49
      %p53 = scmp.eq.s32.totalorder %s13, 0
      %p54 = por %p52, %p53
      %p55 = scmp.ne.s32.totalorder %s47, %s49
      %p56 = scmp.eq.s32.totalorder %s18, 1
      %p57 = por %p55, %p56
      %p58 = scmp.ne.s32.totalorder %s49, %s50
      %p59 = scmp.eq.s32.totalorder %s18, 0
      %p60 = por %p58, %p59
      %p61 = scmp.ne.s32.totalorder %s49, %s50
      %p62 = scmp.eq.s32.totalorder %s19, 1
      %p63 = por %p61, %p62
      %p65 = scmp.ne.s32.totalorder %s50, %s64
      %p66 = scmp.eq.s32.totalorder %s19, 0
      %p67 = por %p65, %p66
      %s69 = sadd.s32 %s68, 1
      %p72 = scmp.eq.s32.totalorder %s13, 1
      %p73 = scmp.ne.s32.totalorder %s68, %s70
      %p74 = scmp.eq.s32.totalorder %s13, 0
      %p75 = por %p73, %p74
      %p76 = scmp.ne.s32.totalorder %s68, %s70
      %p77 = scmp.eq.s32.totalorder %s18, 1
      %p78 = por %p76, %p77
      %p79 = scmp.ne.s32.totalorder %s70, %s71
      %p80 = scmp.eq.s32.totalorder %s18, 0
      %p81 = por %p79, %p80
      %p82 = scmp.ne.s32.totalorder %s70, %s71
      %p83 = scmp.eq.s32.totalorder %s19, 1
      %p84 = por %p82, %p83
      %p86 = scmp.ne.s32.totalorder %s71, %s85
      %p87 = scmp.eq.s32.totalorder %s19, 0
      %p88 = por %p86, %p87
      %s90 = sadd.s32 %s89, 1
      %p93 = scmp.eq.s32.totalorder %s13, 1
      %p94 = scmp.ne.s32.totalorder %s89, %s91
      %p95 = scmp.eq.s32.totalorder %s13, 0
      %p96 = por %p94, %p95
      %p97 = scmp.ne.s32.totalorder %s89, %s91
      %p98 = scmp.eq.s32.totalorder %s18, 1
      %p99 = por %p97, %p98
      %p100 = scmp.ne.s32.totalorder %s91, %s92
      %p101 = scmp.eq.s32.totalorder %s18, 0
      %p102 = por %p100, %p101
      %p103 = scmp.ne.s32.totalorder %s91, %s92
      %p104 = scmp.eq.s32.totalorder %s19, 1
      %p105 = por %p103, %p104
      %p107 = scmp.ne.s32.totalorder %s92, %s106
      %p108 = scmp.eq.s32.totalorder %s19, 0
      %p109 = por %p107, %p108
      %s110 = ssub.s32 %s13, %s20
      %p111 = scmp.eq.s32.totalorder %s110, 0
      %s113 = sadd.s32 %s112, 1
      %s114 = scalar_select %p111, %s112, %s113
      %p117 = pneg %p111
      %p118 = scmp.eq.s32.totalorder %s13, 1
      %p119 = por %p117, %p118
      %p120 = scmp.ne.s32.totalorder %s112, %s115
      %p121 = scmp.eq.s32.totalorder %s13, 0
      %p122 = por %p120, %p121
      %p123 = scmp.ne.s32.totalorder %s112, %s115
      %p124 = scmp.eq.s32.totalorder %s18, 1
      %p125 = por %p123, %p124
      %p126 = scmp.ne.s32.totalorder %s115, %s116
      %p127 = scmp.eq.s32.totalorder %s18, 0
      %p128 = por %p126, %p127
      %p129 = scmp.ne.s32.totalorder %s115, %s116
      %p130 = scmp.eq.s32.totalorder %s19, 1
      %p131 = por %p129, %p130
      %p133 = scmp.ne.s32.totalorder %s116, %s132
      %p134 = scmp.eq.s32.totalorder %s19, 0
      %p135 = por %p133, %p134
      %p136 = scmp.le.s32.totalorder 1, %s13
      %p137 = scmp.lt.s32.totalorder %s13, 3
      %p138 = pnand %p136, %p137
      %p139 = pneg %p138
      // Predicated region
      $region9: #{tpu_custom_call.1} parent=5 // pred_check
        _
      $region10: #{tpu_custom_call.1} parent=5 // pred_check_branch
        %141 = sbr.rel (%p138) target = $region12
      $region11: #{tpu_custom_call.1} parent=5 // pred_region
        %s142 = ssub.s32 %s13, 1
        // Predicated region
        $region13: #{tpu_custom_call.1} parent=11 // pred_check
          %p143 = pneg %p60
        $region14: #{tpu_custom_call.1} parent=11 // pred_check_branch
          %145 = sbr.rel (%p143) target = $region16
        $region15: #{tpu_custom_call.1} parent=11 // pred_region
          _
        $region16: #{tpu_custom_call.1} parent=11 // pred_fallthru
          _
        // Predicated region
        $region17: #{tpu_custom_call.1} parent=11 // pred_check
          %p146 = pneg %p81
        $region18: #{tpu_custom_call.1} parent=11 // pred_check_branch
          %148 = sbr.rel (%p146) target = $region20
        $region19: #{tpu_custom_call.1} parent=11 // pred_region
          _
        $region20: #{tpu_custom_call.1} parent=11 // pred_fallthru
          _
        // Predicated region
        $region21: #{tpu_custom_call.1} parent=11 // pred_check
          %p149 = pneg %p102
        $region22: #{tpu_custom_call.1} parent=11 // pred_check_branch
          %151 = sbr.rel (%p149) target = $region24
        $region23: #{tpu_custom_call.1} parent=11 // pred_region
          _
        $region24: #{tpu_custom_call.1} parent=11 // pred_fallthru
          _
      $region12: #{tpu_custom_call.1} parent=5 // pred_fallthru
        _
      %p152 = scmp.lt.s32.totalorder %s13, 2
      // Predicated region
      $region25: #{tpu_custom_call.1} parent=5 // pred_check
        %p153 = pneg %p152
      $region26: #{tpu_custom_call.1} parent=5 // pred_check_branch
        %155 = sbr.rel (%p153) target = $region28
      $region27: #{tpu_custom_call.1} parent=5 // pred_region
        // Predicated region
        $region29: #{tpu_custom_call.1} parent=27 // pred_check
          %p156 = pneg %p33
        $region30: #{tpu_custom_call.1} parent=27 // pred_check_branch
          %158 = sbr.rel (%p156) target = $region32
        $region31: #{tpu_custom_call.1} parent=27 // pred_region
          %s159 = smul.u32 32, %s13
          %p160 = scmp.lt.s32.totalorder %s159, 63
          %s161 = scalar_select %p160, %s159, 63
          %s162 = smul.addr %s161, 8
          %s163 = scalar_lea.vmem %s0, %s162
          %s164 = smul.u32 32, %s13
        $region32: #{tpu_custom_call.1} parent=27 // pred_fallthru
          _
      $region28: #{tpu_custom_call.1} parent=5 // pred_fallthru
        _
      %p165 = scmp.le.s32.totalorder 1, %s13
      %p166 = scmp.lt.s32.totalorder %s13, 3
      %p167 = pnand %p165, %p166
      %p168 = pneg %p167
      // Predicated region
      $region33: #{tpu_custom_call.1} parent=5 // pred_check
        _
      $region34: #{tpu_custom_call.1} parent=5 // pred_check_branch
        %170 = sbr.rel (%p167) target = $region36
      $region35: #{tpu_custom_call.1} parent=5 // pred_region
        %s171 = ssub.s32 %s13, 1
        %s172 = smul.u32 32, %s18
        %p173 = scmp.lt.s32.totalorder %s172, 63
        %s174 = scalar_select %p173, %s172, 63
        %s175 = smul.addr %s174, 8
        %s176 = scalar_lea.vmem %s0, %s175
        %p177 = pneg %p39
        %p178 = pneg %p36
        %p179 = pneg %p60
        %p180 = pneg %p57
        %p181 = pneg %p81
        %p182 = pneg %p78
        %p183 = pneg %p102
        %p184 = pneg %p99
        %p185 = pneg %p128
        %p186 = pneg %p125
        %s187 = sand.u32 %s115, 1
        %s188 = scalar_lea.sflag [#allocation3], %s187
        %s189 = sand.u32 %s115, 1
        %s190 = smul.addr %s189, 256
        %s191 = scalar_lea.vmem [#allocation2], %s190
        %s192 = smul.u32 32, %s18
        %p193 = scmp.lt.s32.totalorder %s192, 63
        %s194 = scalar_select %p193, %s192, 63
        %s195 = smul.addr %s194, 8
        %s196 = scalar_lea.vmem %s0, %s195
        %s197 = smul.u32 32, %s18
        %s198 = smul.u32 32, %s18
        %v199 = vld [vmem:[%s196] sm:$0xff]
        %v200 = vld [vmem:[%s196 + $0x8] sm:$0xff]
        %v201 = vld [vmem:[%s196 + $0x10] sm:$0xff]
        %v202 = vld [vmem:[%s196 + $0x18] sm:$0xff]
        %v203 = vld [vmem:[%s196 + $0x20] sm:$0xff]
        %v204 = vld [vmem:[%s196 + $0x28] sm:$0xff]
        %v205 = vld [vmem:[%s196 + $0x30] sm:$0xff]
        %v206 = vld [vmem:[%s196 + $0x38] sm:$0xff]
        %v207 = vld [vmem:[%s196 + $0x40] sm:$0xff]
        %v208 = vld [vmem:[%s196 + $0x48] sm:$0xff]
        %v209 = vld [vmem:[%s196 + $0x50] sm:$0xff]
        %v210 = vld [vmem:[%s196 + $0x58] sm:$0xff]
        %v211 = vld [vmem:[%s196 + $0x60] sm:$0xff]
        %v212 = vld [vmem:[%s196 + $0x68] sm:$0xff]
        %v213 = vld [vmem:[%s196 + $0x70] sm:$0xff]
        %v214 = vld [vmem:[%s196 + $0x78] sm:$0xff]
        %v215 = vld [vmem:[%s196 + $0x80] sm:$0xff]
        %v216 = vld [vmem:[%s196 + $0x88] sm:$0xff]
        %v217 = vld [vmem:[%s196 + $0x90] sm:$0xff]
        %v218 = vld [vmem:[%s196 + $0x98] sm:$0xff]
        %v219 = vld [vmem:[%s196 + $0xa0] sm:$0xff]
        %v220 = vld [vmem:[%s196 + $0xa8] sm:$0xff]
        %v221 = vld [vmem:[%s196 + $0xb0] sm:$0xff]
        %v222 = vld [vmem:[%s196 + $0xb8] sm:$0xff]
        %v223 = vld [vmem:[%s196 + $0xc0] sm:$0xff]
        %v224 = vld [vmem:[%s196 + $0xc8] sm:$0xff]
        %v225 = vld [vmem:[%s196 + $0xd0] sm:$0xff]
        %v226 = vld [vmem:[%s196 + $0xd8] sm:$0xff]
        %v227 = vld [vmem:[%s196 + $0xe0] sm:$0xff]
        %v228 = vld [vmem:[%s196 + $0xe8] sm:$0xff]
        %v229 = vld [vmem:[%s196 + $0xf0] sm:$0xff]
        %v230 = vld [vmem:[%s196 + $0xf8] sm:$0xff]
        %v231 = vld [vmem:[%s1] sm:$0xff]
        %vm232 = vcmask 64512
        %v234 = vsel %vm232, %v199, 0
        %v237 = vsel %vm232, %v200, 0
        %v240 = vsel %vm232, %v201, 0
        %v243 = vsel %vm232, %v202, 0
        %v246 = vsel %vm232, %v203, 0
        %v249 = vsel %vm232, %v204, 0
        %v252 = vsel %vm232, %v205, 0
        %v255 = vsel %vm232, %v206, 0
        %v258 = vsel %vm232, %v207, 0
        %v261 = vsel %vm232, %v208, 0
        %v264 = vsel %vm232, %v209, 0
        %v267 = vsel %vm232, %v210, 0
        %v270 = vsel %vm232, %v211, 0
        %v273 = vsel %vm232, %v212, 0
        %v276 = vsel %vm232, %v213, 0
        %v279 = vsel %vm232, %v214, 0
        %v282 = vsel %vm232, %v215, 0
        %v285 = vsel %vm232, %v216, 0
        %v288 = vsel %vm232, %v217, 0
        %v291 = vsel %vm232, %v218, 0
        %v294 = vsel %vm232, %v219, 0
        %v297 = vsel %vm232, %v220, 0
        %v300 = vsel %vm232, %v221, 0
        %v303 = vsel %vm232, %v222, 0
        %v306 = vsel %vm232, %v223, 0
        %v309 = vsel %vm232, %v224, 0
        %v312 = vsel %vm232, %v225, 0
        %v315 = vsel %vm232, %v226, 0
        %v318 = vsel %vm232, %v227, 0
        %v321 = vsel %vm232, %v228, 0
        %v324 = vsel %vm232, %v229, 0
        %v327 = vsel %vm232, %v230, 0
        %329 = vmatprep.subr.mxu0 0.0
        %v330 = vand.u32 %v231, 4294901760
        %331 = vmatpush1.msra.mxu0 %v330
        %332 = vmatprep.subr.mxu0 0.0
        %333 = vmatpush1.msra.mxu0 0.0
        %334 = vmatprep.subr.mxu0 0.0
        %335 = vmatpush1.msra.mxu0 0.0
        %336 = vmatprep.subr.mxu0 0.0
        %337 = vmatpush1.msra.mxu0 0.0
        %338 = vmatprep.subr.mxu0 0.0
        %339 = vmatpush1.msra.mxu0 0.0
        %340 = vmatprep.subr.mxu0 0.0
        %341 = vmatpush1.msra.mxu0 0.0
        %342 = vmatprep.subr.mxu0 0.0
        %343 = vmatpush1.msra.mxu0 0.0
        %344 = vmatprep.subr.mxu0 0.0
        %345 = vmatpush1.msra.mxu0 0.0
        %346 = vmatprep.subr.mxu0 0.0
        %347 = vmatpush1.msra.mxu0 0.0
        %348 = vmatprep.subr.mxu0 0.0
        %349 = vmatpush1.msra.mxu0 0.0
        %350 = vmatprep.subr.mxu0 0.0
        %351 = vmatpush1.msra.mxu0 0.0
        %352 = vmatprep.subr.mxu0 0.0
        %353 = vmatpush1.msra.mxu0 0.0
        %354 = vmatprep.subr.mxu0 0.0
        %355 = vmatpush1.msra.mxu0 0.0
        %356 = vmatprep.subr.mxu0 0.0
        %357 = vmatpush1.msra.mxu0 0.0
        %358 = vmatprep.subr.mxu0 0.0
        %359 = vmatpush1.msra.mxu0 0.0
        %360 = vmatprep.subr.mxu0 0.0
        %361 = vmatpush1.msra.mxu0 0.0
        %362 = vmatprep.subr.mxu0 0.0
        %363 = vmatpush1.msra.mxu0 0.0
        %364 = vmatprep.subr.mxu0 0.0
        %365 = vmatpush1.msra.mxu0 0.0
        %366 = vmatprep.subr.mxu0 0.0
        %367 = vmatpush1.msra.mxu0 0.0
        %368 = vmatprep.subr.mxu0 0.0
        %369 = vmatpush1.msra.mxu0 0.0
        %370 = vmatprep.subr.mxu0 0.0
        %371 = vmatpush1.msra.mxu0 0.0
        %372 = vmatprep.subr.mxu0 0.0
        %373 = vmatpush1.msra.mxu0 0.0
        %374 = vmatprep.subr.mxu0 0.0
        %375 = vmatpush1.msra.mxu0 0.0
        %376 = vmatprep.subr.mxu0 0.0
        %377 = vmatpush1.msra.mxu0 0.0
        %378 = vmatprep.subr.mxu0 0.0
        %379 = vmatpush1.msra.mxu0 0.0
        %380 = vmatprep.subr.mxu0 0.0
        %381 = vmatpush1.msra.mxu0 0.0
        %382 = vmatprep.subr.mxu0 0.0
        %383 = vmatpush1.msra.mxu0 0.0
        %384 = vmatprep.subr.mxu0 0.0
        %385 = vmatpush1.msra.mxu0 0.0
        %386 = vmatprep.subr.mxu0 0.0
        %387 = vmatpush1.msra.mxu0 0.0
        %388 = vmatprep.subr.mxu0 0.0
        %389 = vmatpush1.msra.mxu0 0.0
        %390 = vmatprep.subr.mxu0 0.0
        %391 = vmatpush1.msra.mxu0 0.0
        %392 = vmatprep.subr.mxu0 0.0
        %393 = vmatpush1.msra.mxu0 0.0
        %394 = vmatprep.mubr.f32.mxu0 0.0
        %v395 = vand.u32 %v234, 4294901760
        %v396 = vsub.f32 %v234, %v395
        %v397 = vand.u32 %v396, 4294901760
        %v398 = vsub.f32 %v396, %v397
        %v399 = vand.u32 %v398, 4294901760
        %400 = vmatmul.mubr.f32.gmra.mrb[0].mxu0 %v399
        %v401 = vpop.f32.mrb[0].mxu0
        %v402 = vadd.f32 0.0, %v401
        %v403 = vpop.f32.mrb[0].mxu0
        %404 = vmatprep.mubr.f32.mxu0 0.0
        %v405 = vand.u32 %v237, 4294901760
        %v406 = vsub.f32 %v237, %v405
        %v407 = vand.u32 %v406, 4294901760
        %v408 = vsub.f32 %v406, %v407
        %v409 = vand.u32 %v408, 4294901760
        %410 = vmatmul.mubr.f32.gmra.mrb[0].mxu0 %v409
        %v411 = vpop.f32.mrb[0].mxu0
        %v412 = vadd.f32 0.0, %v411
        %v413 = vpop.f32.mrb[0].mxu0
        %414 = vmatprep.mubr.f32.mxu0 0.0
        %v415 = vand.u32 %v240, 4294901760
        %v416 = vsub.f32 %v240, %v415
        %v417 = vand.u32 %v416, 4294901760
        %v418 = vsub.f32 %v416, %v417
        %v419 = vand.u32 %v418, 4294901760
        %420 = vmatmul.mubr.f32.gmra.mrb[0].mxu0 %v419
        %v421 = vpop.f32.mrb[0].mxu0
        %v422 = vadd.f32 0.0, %v421
        %v423 = vpop.f32.mrb[0].mxu0
        %424 = vmatprep.mubr.f32.mxu0 0.0
        %v425 = vand.u32 %v243, 4294901760
        %v426 = vsub.f32 %v243, %v425
        %v427 = vand.u32 %v426, 4294901760
        %v428 = vsub.f32 %v426, %v427
        %v429 = vand.u32 %v428, 4294901760
        %430 = vmatmul.mubr.f32.gmra.mrb[0].mxu0 %v429
        %v431 = vpop.f32.mrb[0].mxu0
        %v432 = vadd.f32 0.0, %v431
        %v433 = vpop.f32.mrb[0].mxu0
        %434 = vmatprep.mubr.f32.mxu0 0.0
        %v435 = vand.u32 %v246, 4294901760
        %v436 = vsub.f32 %v246, %v435
        %v437 = vand.u32 %v436, 4294901760
        %v438 = vsub.f32 %v436, %v437
        %v439 = vand.u32 %v438, 4294901760
        %440 = vmatmul.mubr.f32.gmra.mrb[0].mxu0 %v439
        %v441 = vpop.f32.mrb[0].mxu0
        %v442 = vadd.f32 0.0, %v441
        %v443 = vpop.f32.mrb[0].mxu0
        %444 = vmatprep.mubr.f32.mxu0 0.0
        %v445 = vand.u32 %v249, 4294901760
        %v446 = vsub.f32 %v249, %v445
        %v447 = vand.u32 %v446, 4294901760
        %v448 = vsub.f32 %v446, %v447
        %v449 = vand.u32 %v448, 4294901760
        %450 = vmatmul.mubr.f32.gmra.mrb[0].mxu0 %v449
        %v451 = vpop.f32.mrb[0].mxu0
        %v452 = vadd.f32 0.0, %v451
        %v453 = vpop.f32.mrb[0].mxu0
        %454 = vmatprep.mubr.f32.mxu0 0.0
        %v455 = vand.u32 %v252, 4294901760
        %v456 = vsub.f32 %v252, %v455
        %v457 = vand.u32 %v456, 4294901760
        %v458 = vsub.f32 %v456, %v457
        %v459 = vand.u32 %v458, 4294901760
        %460 = vmatmul.mubr.f32.gmra.mrb[0].mxu0 %v459
        %v461 = vpop.f32.mrb[0].mxu0
        %v462 = vadd.f32 0.0, %v461
        %v463 = vpop.f32.mrb[0].mxu0
        %464 = vmatprep.mubr.f32.mxu0 0.0
        %v465 = vand.u32 %v255, 4294901760
        %v466 = vsub.f32 %v255, %v465
        %v467 = vand.u32 %v466, 4294901760
        %v468 = vsub.f32 %v466, %v467
        %v469 = vand.u32 %v468, 4294901760
        %470 = vmatmul.mubr.f32.gmra.mrb[0].mxu0 %v469
        %v471 = vpop.f32.mrb[0].mxu0
        %v472 = vadd.f32 0.0, %v471
        %v473 = vpop.f32.mrb[0].mxu0
        %474 = vmatprep.mubr.f32.mxu0 0.0
        %v475 = vand.u32 %v258, 4294901760
        %v476 = vsub.f32 %v258, %v475
        %v477 = vand.u32 %v476, 4294901760
        %v478 = vsub.f32 %v476, %v477
        %v479 = vand.u32 %v478, 4294901760
        %480 = vmatmul.mubr.f32.gmra.mrb[0].mxu0 %v479
        %v481 = vpop.f32.mrb[0].mxu0
        %v482 = vadd.f32 0.0, %v481
        %v483 = vpop.f32.mrb[0].mxu0
        %484 = vmatprep.mubr.f32.mxu0 0.0
        %v485 = vand.u32 %v261, 4294901760
        %v486 = vsub.f32 %v261, %v485
        %v487 = vand.u32 %v486, 4294901760
        %v488 = vsub.f32 %v486, %v487
        %v489 = vand.u32 %v488, 4294901760
        %490 = vmatmul.mubr.f32.gmra.mrb[0].mxu0 %v489
        %v491 = vpop.f32.mrb[0].mxu0
        %v492 = vadd.f32 0.0, %v491
        %v493 = vpop.f32.mrb[0].mxu0
        %494 = vmatprep.mubr.f32.mxu0 0.0
        %v495 = vand.u32 %v264, 4294901760
        %v496 = vsub.f32 %v264, %v495
        %v497 = vand.u32 %v496, 4294901760
        %v498 = vsub.f32 %v496, %v497
        %v499 = vand.u32 %v498, 4294901760
        %500 = vmatmul.mubr.f32.gmra.mrb[0].mxu0 %v499
        %v501 = vpop.f32.mrb[0].mxu0
        %v502 = vadd.f32 0.0, %v501
        %v503 = vpop.f32.mrb[0].mxu0
        %504 = vmatprep.mubr.f32.mxu0 0.0
        %v505 = vand.u32 %v267, 4294901760
        %v506 = vsub.f32 %v267, %v505
        %v507 = vand.u32 %v506, 4294901760
        %v508 = vsub.f32 %v506, %v507
        %v509 = vand.u32 %v508, 4294901760
        %510 = vmatmul.mubr.f32.gmra.mrb[0].mxu0 %v509
        %v511 = vpop.f32.mrb[0].mxu0
        %v512 = vadd.f32 0.0, %v511
        %v513 = vpop.f32.mrb[0].mxu0
        %514 = vmatprep.mubr.f32.mxu0 0.0
        %v515 = vand.u32 %v270, 4294901760
        %v516 = vsub.f32 %v270, %v515
        %v517 = vand.u32 %v516, 4294901760
        %v518 = vsub.f32 %v516, %v517
        %v519 = vand.u32 %v518, 4294901760
        %520 = vmatmul.mubr.f32.gmra.mrb[0].mxu0 %v519
        %v521 = vpop.f32.mrb[0].mxu0
        %v522 = vadd.f32 0.0, %v521
        %v523 = vpop.f32.mrb[0].mxu0
        %524 = vmatprep.mubr.f32.mxu0 0.0
        %v525 = vand.u32 %v273, 4294901760
        %v526 = vsub.f32 %v273, %v525
        %v527 = vand.u32 %v526, 4294901760
        %v528 = vsub.f32 %v526, %v527
        %v529 = vand.u32 %v528, 4294901760
        %530 = vmatmul.mubr.f32.gmra.mrb[0].mxu0 %v529
        %v531 = vpop.f32.mrb[0].mxu0
        %v532 = vadd.f32 0.0, %v531
        %v533 = vpop.f32.mrb[0].mxu0
        %534 = vmatprep.mubr.f32.mxu0 0.0
        %v535 = vand.u32 %v276, 4294901760
        %v536 = vsub.f32 %v276, %v535
        %v537 = vand.u32 %v536, 4294901760
        %v538 = vsub.f32 %v536, %v537
        %v539 = vand.u32 %v538, 4294901760
        %540 = vmatmul.mubr.f32.gmra.mrb[0].mxu0 %v539
        %v541 = vpop.f32.mrb[0].mxu0
        %v542 = vadd.f32 0.0, %v541
        %v543 = vpop.f32.mrb[0].mxu0
        %544 = vmatprep.mubr.f32.mxu0 0.0
        %v545 = vand.u32 %v279, 4294901760
        %v546 = vsub.f32 %v279, %v545
        %v547 = vand.u32 %v546, 4294901760
        %v548 = vsub.f32 %v546, %v547
        %v549 = vand.u32 %v548, 4294901760
        %550 = vmatmul.mubr.f32.gmra.mrb[0].mxu0 %v549
        %v551 = vpop.f32.mrb[0].mxu0
        %v552 = vadd.f32 0.0, %v551
        %v553 = vpop.f32.mrb[0].mxu0
        %554 = vmatprep.mubr.f32.mxu0 0.0
        %v555 = vand.u32 %v282, 4294901760
        %v556 = vsub.f32 %v282, %v555
        %v557 = vand.u32 %v556, 4294901760
        %v558 = vsub.f32 %v556, %v557
        %v559 = vand.u32 %v558, 4294901760
        %560 = vmatmul.mubr.f32.gmra.mrb[0].mxu0 %v559
        %v561 = vpop.f32.mrb[0].mxu0
        %v562 = vadd.f32 0.0, %v561
        %v563 = vpop.f32.mrb[0].mxu0
        %564 = vmatprep.mubr.f32.mxu0 0.0
        %v565 = vand.u32 %v285, 4294901760
        %v566 = vsub.f32 %v285, %v565
        %v567 = vand.u32 %v566, 4294901760
        %v568 = vsub.f32 %v566, %v567
        %v569 = vand.u32 %v568, 4294901760
        %570 = vmatmul.mubr.f32.gmra.mrb[0].mxu0 %v569
        %v571 = vpop.f32.mrb[0].mxu0
        %v572 = vadd.f32 0.0, %v571
        %v573 = vpop.f32.mrb[0].mxu0
        %574 = vmatprep.mubr.f32.mxu0 0.0
        %v575 = vand.u32 %v288, 4294901760
        %v576 = vsub.f32 %v288, %v575
        %v577 = vand.u32 %v576, 4294901760
        %v578 = vsub.f32 %v576, %v577
        %v579 = vand.u32 %v578, 4294901760
        %580 = vmatmul.mubr.f32.gmra.mrb[0].mxu0 %v579
        %v581 = vpop.f32.mrb[0].mxu0
        %v582 = vadd.f32 0.0, %v581
        %v583 = vpop.f32.mrb[0].mxu0
        %584 = vmatprep.mubr.f32.mxu0 0.0
        %v585 = vand.u32 %v291, 4294901760
        %v586 = vsub.f32 %v291, %v585
        %v587 = vand.u32 %v586, 4294901760
        %v588 = vsub.f32 %v586, %v587
        %v589 = vand.u32 %v588, 4294901760
        %590 = vmatmul.mubr.f32.gmra.mrb[0].mxu0 %v589
        %v591 = vpop.f32.mrb[0].mxu0
        %v592 = vadd.f32 0.0, %v591
        %v593 = vpop.f32.mrb[0].mxu0
        %594 = vmatprep.mubr.f32.mxu0 0.0
        %v595 = vand.u32 %v294, 4294901760
        %v596 = vsub.f32 %v294, %v595
        %v597 = vand.u32 %v596, 4294901760
        %v598 = vsub.f32 %v596, %v597
        %v599 = vand.u32 %v598, 4294901760
        %600 = vmatmul.mubr.f32.gmra.mrb[0].mxu0 %v599
        %v601 = vpop.f32.mrb[0].mxu0
        %v602 = vadd.f32 0.0, %v601
        %v603 = vpop.f32.mrb[0].mxu0
        %604 = vmatprep.mubr.f32.mxu0 0.0
        %v605 = vand.u32 %v297, 4294901760
        %v606 = vsub.f32 %v297, %v605
        %v607 = vand.u32 %v606, 4294901760
        %v608 = vsub.f32 %v606, %v607
        %v609 = vand.u32 %v608, 4294901760
        %610 = vmatmul.mubr.f32.gmra.mrb[0].mxu0 %v609
        %v611 = vpop.f32.mrb[0].mxu0
        %v612 = vadd.f32 0.0, %v611
        %v613 = vpop.f32.mrb[0].mxu0
        %614 = vmatprep.mubr.f32.mxu0 0.0
        %v615 = vand.u32 %v300, 4294901760
        %v616 = vsub.f32 %v300, %v615
        %v617 = vand.u32 %v616, 4294901760
        %v618 = vsub.f32 %v616, %v617
        %v619 = vand.u32 %v618, 4294901760
        %620 = vmatmul.mubr.f32.gmra.mrb[0].mxu0 %v619
        %v621 = vpop.f32.mrb[0].mxu0
        %v622 = vadd.f32 0.0, %v621
        %v623 = vpop.f32.mrb[0].mxu0
        %624 = vmatprep.mubr.f32.mxu0 0.0
        %v625 = vand.u32 %v303, 4294901760
        %v626 = vsub.f32 %v303, %v625
        %v627 = vand.u32 %v626, 4294901760
        %v628 = vsub.f32 %v626, %v627
        %v629 = vand.u32 %v628, 4294901760
        %630 = vmatmul.mubr.f32.gmra.mrb[0].mxu0 %v629
        %v631 = vpop.f32.mrb[0].mxu0
        %v632 = vadd.f32 0.0, %v631
        %v633 = vpop.f32.mrb[0].mxu0
        %634 = vmatprep.mubr.f32.mxu0 0.0
        %v635 = vand.u32 %v306, 4294901760
        %v636 = vsub.f32 %v306, %v635
        %v637 = vand.u32 %v636, 4294901760
        %v638 = vsub.f32 %v636, %v637
        %v639 = vand.u32 %v638, 4294901760
        %640 = vmatmul.mubr.f32.gmra.mrb[0].mxu0 %v639
        %v641 = vpop.f32.mrb[0].mxu0
        %v642 = vadd.f32 0.0, %v641
        %v643 = vpop.f32.mrb[0].mxu0
        %644 = vmatprep.mubr.f32.mxu0 0.0
        %v645 = vand.u32 %v309, 4294901760
        %v646 = vsub.f32 %v309, %v645
        %v647 = vand.u32 %v646, 4294901760
        %v648 = vsub.f32 %v646, %v647
        %v649 = vand.u32 %v648, 4294901760
        %650 = vmatmul.mubr.f32.gmra.mrb[0].mxu0 %v649
        %v651 = vpop.f32.mrb[0].mxu0
        %v652 = vadd.f32 0.0, %v651
        %v653 = vpop.f32.mrb[0].mxu0
        %654 = vmatprep.mubr.f32.mxu0 0.0
        %v655 = vand.u32 %v312, 4294901760
        %v656 = vsub.f32 %v312, %v655
        %v657 = vand.u32 %v656, 4294901760
        %v658 = vsub.f32 %v656, %v657
        %v659 = vand.u32 %v658, 4294901760
        %660 = vmatmul.mubr.f32.gmra.mrb[0].mxu0 %v659
        %v661 = vpop.f32.mrb[0].mxu0
        %v662 = vadd.f32 0.0, %v661
        %v663 = vpop.f32.mrb[0].mxu0
        %664 = vmatprep.mubr.f32.mxu0 0.0
        %v665 = vand.u32 %v315, 4294901760
        %v666 = vsub.f32 %v315, %v665
        %v667 = vand.u32 %v666, 4294901760
        %v668 = vsub.f32 %v666, %v667
        %v669 = vand.u32 %v668, 4294901760
        %670 = vmatmul.mubr.f32.gmra.mrb[0].mxu0 %v669
        %v671 = vpop.f32.mrb[0].mxu0
        %v672 = vadd.f32 0.0, %v671
        %v673 = vpop.f32.mrb[0].mxu0
        %674 = vmatprep.mubr.f32.mxu0 0.0
        %v675 = vand.u32 %v318, 4294901760
        %v676 = vsub.f32 %v318, %v675
        %v677 = vand.u32 %v676, 4294901760
        %v678 = vsub.f32 %v676, %v677
        %v679 = vand.u32 %v678, 4294901760
        %680 = vmatmul.mubr.f32.gmra.mrb[0].mxu0 %v679
        %v681 = vpop.f32.mrb[0].mxu0
        %v682 = vadd.f32 0.0, %v681
        %v683 = vpop.f32.mrb[0].mxu0
        %684 = vmatprep.mubr.f32.mxu0 0.0
        %v685 = vand.u32 %v321, 4294901760
        %v686 = vsub.f32 %v321, %v685
        %v687 = vand.u32 %v686, 4294901760
        %v688 = vsub.f32 %v686, %v687
        %v689 = vand.u32 %v688, 4294901760
        %690 = vmatmul.mubr.f32.gmra.mrb[0].mxu0 %v689
        %v691 = vpop.f32.mrb[0].mxu0
        %v692 = vadd.f32 0.0, %v691
        %v693 = vpop.f32.mrb[0].mxu0
        %694 = vmatprep.mubr.f32.mxu0 0.0
        %v695 = vand.u32 %v324, 4294901760
        %v696 = vsub.f32 %v324, %v695
        %v697 = vand.u32 %v696, 4294901760
        %v698 = vsub.f32 %v696, %v697
        %v699 = vand.u32 %v698, 4294901760
        %700 = vmatmul.mubr.f32.gmra.mrb[0].mxu0 %v699
        %v701 = vpop.f32.mrb[0].mxu0
        %v702 = vadd.f32 0.0, %v701
        %v703 = vpop.f32.mrb[0].mxu0
        %704 = vmatprep.mubr.f32.mxu0 0.0
        %v705 = vand.u32 %v327, 4294901760
        %v706 = vsub.f32 %v327, %v705
        %v707 = vand.u32 %v706, 4294901760
        %v708 = vsub.f32 %v706, %v707
        %v709 = vand.u32 %v708, 4294901760
        %710 = vmatmul.mubr.f32.gmra.mrb[0].mxu0 %v709
        %v711 = vpop.f32.mrb[0].mxu0
        %v712 = vadd.f32 0.0, %v711
        %v713 = vpop.f32.mrb[0].mxu0
        %714 = vdwg.mxu0
        %715 = vmatprep.subr.mxu0 0.0
        %v716 = vand.u32 %v231, 4294901760
        %v717 = vsub.f32 %v231, %v716
        %v718 = vand.u32 %v717, 4294901760
        %v719 = vsub.f32 %v717, %v718
        %v720 = vand.u32 %v719, 4294901760
        %721 = vmatpush1.msra.mxu0 %v720
        %722 = vmatprep.subr.mxu0 0.0
        %723 = vmatpush1.msra.mxu0 0.0
        %724 = vmatprep.subr.mxu0 0.0
        %725 = vmatpush1.msra.mxu0 0.0
        %726 = vmatprep.subr.mxu0 0.0
        %727 = vmatpush1.msra.mxu0 0.0
        %728 = vmatprep.subr.mxu0 0.0
        %729 = vmatpush1.msra.mxu0 0.0
        %730 = vmatprep.subr.mxu0 0.0
        %731 = vmatpush1.msra.mxu0 0.0
        %732 = vmatprep.subr.mxu0 0.0
        %733 = vmatpush1.msra.mxu0 0.0
        %734 = vmatprep.subr.mxu0 0.0
        %735 = vmatpush1.msra.mxu0 0.0
        %736 = vmatprep.subr.mxu0 0.0
        %737 = vmatpush1.msra.mxu0 0.0
        %738 = vmatprep.subr.mxu0 0.0
        %739 = vmatpush1.msra.mxu0 0.0
        %740 = vmatprep.subr.mxu0 0.0
        %741 = vmatpush1.msra.mxu0 0.0
        %742 = vmatprep.subr.mxu0 0.0
        %743 = vmatpush1.msra.mxu0 0.0
        %744 = vmatprep.subr.mxu0 0.0
        %745 = vmatpush1.msra.mxu0 0.0
        %746 = vmatprep.subr.mxu0 0.0
        %747 = vmatpush1.msra.mxu0 0.0
        %748 = vmatprep.subr.mxu0 0.0
        %749 = vmatpush1.msra.mxu0 0.0
        %750 = vmatprep.subr.mxu0 0.0
        %751 = vmatpush1.msra.mxu0 0.0
        %752 = vmatprep.subr.mxu0 0.0
        %753 = vmatpush1.msra.mxu0 0.0
        %754 = vmatprep.subr.mxu0 0.0
        %755 = vmatpush1.msra.mxu0 0.0
        %756 = vmatprep.subr.mxu0 0.0
        %757 = vmatpush1.msra.mxu0 0.0
        %758 = vmatprep.subr.mxu0 0.0
        %759 = vmatpush1.msra.mxu0 0.0
        %760 = vmatprep.subr.mxu0 0.0
        %761 = vmatpush1.msra.mxu0 0.0
        %762 = vmatprep.subr.mxu0 0.0
        %763 = vmatpush1.msra.mxu0 0.0
        %764 = vmatprep.subr.mxu0 0.0
        %765 = vmatpush1.msra.mxu0 0.0
        %766 = vmatprep.subr.mxu0 0.0
        %767 = vmatpush1.msra.mxu0 0.0
        %768 = vmatprep.subr.mxu0 0.0
        %769 = vmatpush1.msra.mxu0 0.0
        %770 = vmatprep.subr.mxu0 0.0
        %771 = vmatpush1.msra.mxu0 0.0
        %772 = vmatprep.subr.mxu0 0.0
        %773 = vmatpush1.msra.mxu0 0.0
        %774 = vmatprep.subr.mxu0 0.0
        %775 = vmatpush1.msra.mxu0 0.0
        %776 = vmatprep.subr.mxu0 0.0
        %777 = vmatpush1.msra.mxu0 0.0
        %778 = vmatprep.subr.mxu0 0.0
        %779 = vmatpush1.msra.mxu0 0.0
        %780 = vmatprep.subr.mxu0 0.0
        %781 = vmatpush1.msra.mxu0 0.0
        %782 = vmatprep.subr.mxu0 0.0
        %783 = vmatpush1.msra.mxu0 0.0
        %784 = vmatprep.mubr.f32.mxu0 0.0
        %v785 = vand.u32 %v234, 4294901760
        %786 = vmatmul.mubr.f32.gmra.mrb[0].mxu0 %v785
        %v787 = vpop.f32.mrb[0].mxu0
        %v788 = vadd.f32 %v402, %v787
        %v789 = vpop.f32.mrb[0].mxu0
        %790 = vmatprep.mubr.f32.mxu0 0.0
        %v791 = vand.u32 %v237, 4294901760
        %792 = vmatmul.mubr.f32.gmra.mrb[0].mxu0 %v791
        %v793 = vpop.f32.mrb[0].mxu0
        %v794 = vadd.f32 %v412, %v793
        %v795 = vpop.f32.mrb[0].mxu0
        %796 = vmatprep.mubr.f32.mxu0 0.0
        %v797 = vand.u32 %v240, 4294901760
        %798 = vmatmul.mubr.f32.gmra.mrb[0].mxu0 %v797
        %v799 = vpop.f32.mrb[0].mxu0
        %v800 = vadd.f32 %v422, %v799
        %v801 = vpop.f32.mrb[0].mxu0
        %802 = vmatprep.mubr.f32.mxu0 0.0
        %v803 = vand.u32 %v243, 4294901760
        %804 = vmatmul.mubr.f32.gmra.mrb[0].mxu0 %v803
        %v805 = vpop.f32.mrb[0].mxu0
        %v806 = vadd.f32 %v432, %v805
        %v807 = vpop.f32.mrb[0].mxu0
        %808 = vmatprep.mubr.f32.mxu0 0.0
        %v809 = vand.u32 %v246, 4294901760
        %810 = vmatmul.mubr.f32.gmra.mrb[0].mxu0 %v809
        %v811 = vpop.f32.mrb[0].mxu0
        %v812 = vadd.f32 %v442, %v811
        %v813 = vpop.f32.mrb[0].mxu0
        %814 = vmatprep.mubr.f32.mxu0 0.0
        %v815 = vand.u32 %v249, 4294901760
        %816 = vmatmul.mubr.f32.gmra.mrb[0].mxu0 %v815
        %v817 = vpop.f32.mrb[0].mxu0
        %v818 = vadd.f32 %v452, %v817
        %v819 = vpop.f32.mrb[0].mxu0
        %820 = vmatprep.mubr.f32.mxu0 0.0
        %v821 = vand.u32 %v252, 4294901760
        %822 = vmatmul.mubr.f32.gmra.mrb[0].mxu0 %v821
        %v823 = vpop.f32.mrb[0].mxu0
        %v824 = vadd.f32 %v462, %v823
        %v825 = vpop.f32.mrb[0].mxu0
        %826 = vmatprep.mubr.f32.mxu0 0.0
        %v827 = vand.u32 %v255, 4294901760
        %828 = vmatmul.mubr.f32.gmra.mrb[0].mxu0 %v827
        %v829 = vpop.f32.mrb[0].mxu0
        %v830 = vadd.f32 %v472, %v829
        %v831 = vpop.f32.mrb[0].mxu0
        %832 = vmatprep.mubr.f32.mxu0 0.0
        %v833 = vand.u32 %v258, 4294901760
        %834 = vmatmul.mubr.f32.gmra.mrb[0].mxu0 %v833
        %v835 = vpop.f32.mrb[0].mxu0
        %v836 = vadd.f32 %v482, %v835
        %v837 = vpop.f32.mrb[0].mxu0
        %838 = vmatprep.mubr.f32.mxu0 0.0
        %v839 = vand.u32 %v261, 4294901760
        %840 = vmatmul.mubr.f32.gmra.mrb[0].mxu0 %v839
        %v841 = vpop.f32.mrb[0].mxu0
        %v842 = vadd.f32 %v492, %v841
        %v843 = vpop.f32.mrb[0].mxu0
        %844 = vmatprep.mubr.f32.mxu0 0.0
        %v845 = vand.u32 %v264, 4294901760
        %846 = vmatmul.mubr.f32.gmra.mrb[0].mxu0 %v845
        %v847 = vpop.f32.mrb[0].mxu0
        %v848 = vadd.f32 %v502, %v847
        %v849 = vpop.f32.mrb[0].mxu0
        %850 = vmatprep.mubr.f32.mxu0 0.0
        %v851 = vand.u32 %v267, 4294901760
        %852 = vmatmul.mubr.f32.gmra.mrb[0].mxu0 %v851
        %v853 = vpop.f32.mrb[0].mxu0
        %v854 = vadd.f32 %v512, %v853
        %v855 = vpop.f32.mrb[0].mxu0
        %856 = vmatprep.mubr.f32.mxu0 0.0
        %v857 = vand.u32 %v270, 4294901760
        %858 = vmatmul.mubr.f32.gmra.mrb[0].mxu0 %v857
        %v859 = vpop.f32.mrb[0].mxu0
        %v860 = vadd.f32 %v522, %v859
        %v861 = vpop.f32.mrb[0].mxu0
        %862 = vmatprep.mubr.f32.mxu0 0.0
        %v863 = vand.u32 %v273, 4294901760
        %864 = vmatmul.mubr.f32.gmra.mrb[0].mxu0 %v863
        %v865 = vpop.f32.mrb[0].mxu0
        %v866 = vadd.f32 %v532, %v865
        %v867 = vpop.f32.mrb[0].mxu0
        %868 = vmatprep.mubr.f32.mxu0 0.0
        %v869 = vand.u32 %v276, 4294901760
        %870 = vmatmul.mubr.f32.gmra.mrb[0].mxu0 %v869
        %v871 = vpop.f32.mrb[0].mxu0
        %v872 = vadd.f32 %v542, %v871
        %v873 = vpop.f32.mrb[0].mxu0
        %874 = vmatprep.mubr.f32.mxu0 0.0
        %v875 = vand.u32 %v279, 4294901760
        %876 = vmatmul.mubr.f32.gmra.mrb[0].mxu0 %v875
        %v877 = vpop.f32.mrb[0].mxu0
        %v878 = vadd.f32 %v552, %v877
        %v879 = vpop.f32.mrb[0].mxu0
        %880 = vmatprep.mubr.f32.mxu0 0.0
        %v881 = vand.u32 %v282, 4294901760
        %882 = vmatmul.mubr.f32.gmra.mrb[0].mxu0 %v881
        %v883 = vpop.f32.mrb[0].mxu0
        %v884 = vadd.f32 %v562, %v883
        %v885 = vpop.f32.mrb[0].mxu0
        %886 = vmatprep.mubr.f32.mxu0 0.0
        %v887 = vand.u32 %v285, 4294901760
        %888 = vmatmul.mubr.f32.gmra.mrb[0].mxu0 %v887
        %v889 = vpop.f32.mrb[0].mxu0
        %v890 = vadd.f32 %v572, %v889
        %v891 = vpop.f32.mrb[0].mxu0
        %892 = vmatprep.mubr.f32.mxu0 0.0
        %v893 = vand.u32 %v288, 4294901760
        %894 = vmatmul.mubr.f32.gmra.mrb[0].mxu0 %v893
        %v895 = vpop.f32.mrb[0].mxu0
        %v896 = vadd.f32 %v582, %v895
        %v897 = vpop.f32.mrb[0].mxu0
        %898 = vmatprep.mubr.f32.mxu0 0.0
        %v899 = vand.u32 %v291, 4294901760
        %900 = vmatmul.mubr.f32.gmra.mrb[0].mxu0 %v899
        %v901 = vpop.f32.mrb[0].mxu0
        %v902 = vadd.f32 %v592, %v901
        %v903 = vpop.f32.mrb[0].mxu0
        %904 = vmatprep.mubr.f32.mxu0 0.0
        %v905 = vand.u32 %v294, 4294901760
        %906 = vmatmul.mubr.f32.gmra.mrb[0].mxu0 %v905
        %v907 = vpop.f32.mrb[0].mxu0
        %v908 = vadd.f32 %v602, %v907
        %v909 = vpop.f32.mrb[0].mxu0
        %910 = vmatprep.mubr.f32.mxu0 0.0
        %v911 = vand.u32 %v297, 4294901760
        %912 = vmatmul.mubr.f32.gmra.mrb[0].mxu0 %v911
        %v913 = vpop.f32.mrb[0].mxu0
        %v914 = vadd.f32 %v612, %v913
        %v915 = vpop.f32.mrb[0].mxu0
        %916 = vmatprep.mubr.f32.mxu0 0.0
        %v917 = vand.u32 %v300, 4294901760
        %918 = vmatmul.mubr.f32.gmra.mrb[0].mxu0 %v917
        %v919 = vpop.f32.mrb[0].mxu0
        %v920 = vadd.f32 %v622, %v919
        %v921 = vpop.f32.mrb[0].mxu0
        %922 = vmatprep.mubr.f32.mxu0 0.0
        %v923 = vand.u32 %v303, 4294901760
        %924 = vmatmul.mubr.f32.gmra.mrb[0].mxu0 %v923
        %v925 = vpop.f32.mrb[0].mxu0
        %v926 = vadd.f32 %v632, %v925
        %v927 = vpop.f32.mrb[0].mxu0
        %928 = vmatprep.mubr.f32.mxu0 0.0
        %v929 = vand.u32 %v306, 4294901760
        %930 = vmatmul.mubr.f32.gmra.mrb[0].mxu0 %v929
        %v931 = vpop.f32.mrb[0].mxu0
        %v932 = vadd.f32 %v642, %v931
        %v933 = vpop.f32.mrb[0].mxu0
        %934 = vmatprep.mubr.f32.mxu0 0.0
        %v935 = vand.u32 %v309, 4294901760
        %936 = vmatmul.mubr.f32.gmra.mrb[0].mxu0 %v935
        %v937 = vpop.f32.mrb[0].mxu0
        %v938 = vadd.f32 %v652, %v937
        %v939 = vpop.f32.mrb[0].mxu0
        %940 = vmatprep.mubr.f32.mxu0 0.0
        %v941 = vand.u32 %v312, 4294901760
        %942 = vmatmul.mubr.f32.gmra.mrb[0].mxu0 %v941
        %v943 = vpop.f32.mrb[0].mxu0
        %v944 = vadd.f32 %v662, %v943
        %v945 = vpop.f32.mrb[0].mxu0
        %946 = vmatprep.mubr.f32.mxu0 0.0
        %v947 = vand.u32 %v315, 4294901760
        %948 = vmatmul.mubr.f32.gmra.mrb[0].mxu0 %v947
        %v949 = vpop.f32.mrb[0].mxu0
        %v950 = vadd.f32 %v672, %v949
        %v951 = vpop.f32.mrb[0].mxu0
        %952 = vmatprep.mubr.f32.mxu0 0.0
        %v953 = vand.u32 %v318, 4294901760
        %954 = vmatmul.mubr.f32.gmra.mrb[0].mxu0 %v953
        %v955 = vpop.f32.mrb[0].mxu0
        %v956 = vadd.f32 %v682, %v955
        %v957 = vpop.f32.mrb[0].mxu0
        %958 = vmatprep.mubr.f32.mxu0 0.0
        %v959 = vand.u32 %v321, 4294901760
        %960 = vmatmul.mubr.f32.gmra.mrb[0].mxu0 %v959
        %v961 = vpop.f32.mrb[0].mxu0
        %v962 = vadd.f32 %v692, %v961
        %v963 = vpop.f32.mrb[0].mxu0
        %964 = vmatprep.mubr.f32.mxu0 0.0
        %v965 = vand.u32 %v324, 4294901760
        %966 = vmatmul.mubr.f32.gmra.mrb[0].mxu0 %v965
        %v967 = vpop.f32.mrb[0].mxu0
        %v968 = vadd.f32 %v702, %v967
        %v969 = vpop.f32.mrb[0].mxu0
        %970 = vmatprep.mubr.f32.mxu0 0.0
        %v971 = vand.u32 %v327, 4294901760
        %972 = vmatmul.mubr.f32.gmra.mrb[0].mxu0 %v971
        %v973 = vpop.f32.mrb[0].mxu0
        %v974 = vadd.f32 %v712, %v973
        %v975 = vpop.f32.mrb[0].mxu0
        %976 = vdwg.mxu0
        %977 = vmatprep.subr.mxu0 0.0
        %v978 = vand.u32 %v231, 4294901760
        %v979 = vsub.f32 %v231, %v978
        %980 = vmatpush1.msra.mxu0 %v979
        %981 = vmatprep.subr.mxu0 0.0
        %982 = vmatpush1.msra.mxu0 0.0
        %983 = vmatprep.subr.mxu0 0.0
        %984 = vmatpush1.msra.mxu0 0.0
        %985 = vmatprep.subr.mxu0 0.0
        %986 = vmatpush1.msra.mxu0 0.0
        %987 = vmatprep.subr.mxu0 0.0
        %988 = vmatpush1.msra.mxu0 0.0
        %989 = vmatprep.subr.mxu0 0.0
        %990 = vmatpush1.msra.mxu0 0.0
        %991 = vmatprep.subr.mxu0 0.0
        %992 = vmatpush1.msra.mxu0 0.0
        %993 = vmatprep.subr.mxu0 0.0
        %994 = vmatpush1.msra.mxu0 0.0
        %995 = vmatprep.subr.mxu0 0.0
        %996 = vmatpush1.msra.mxu0 0.0
        %997 = vmatprep.subr.mxu0 0.0
        %998 = vmatpush1.msra.mxu0 0.0
        %999 = vmatprep.subr.mxu0 0.0
        %1000 = vmatpush1.msra.mxu0 0.0
        %1001 = vmatprep.subr.mxu0 0.0
        %1002 = vmatpush1.msra.mxu0 0.0
        %1003 = vmatprep.subr.mxu0 0.0
        %1004 = vmatpush1.msra.mxu0 0.0
        %1005 = vmatprep.subr.mxu0 0.0
        %1006 = vmatpush1.msra.mxu0 0.0
        %1007 = vmatprep.subr.mxu0 0.0
        %1008 = vmatpush1.msra.mxu0 0.0
        %1009 = vmatprep.subr.mxu0 0.0
        %1010 = vmatpush1.msra.mxu0 0.0
        %1011 = vmatprep.subr.mxu0 0.0
        %1012 = vmatpush1.msra.mxu0 0.0
        %1013 = vmatprep.subr.mxu0 0.0
        %1014 = vmatpush1.msra.mxu0 0.0
        %1015 = vmatprep.subr.mxu0 0.0
        %1016 = vmatpush1.msra.mxu0 0.0
        %1017 = vmatprep.subr.mxu0 0.0
        %1018 = vmatpush1.msra.mxu0 0.0
        %1019 = vmatprep.subr.mxu0 0.0
        %1020 = vmatpush1.msra.mxu0 0.0
        %1021 = vmatprep.subr.mxu0 0.0
        %1022 = vmatpush1.msra.mxu0 0.0
        %1023 = vmatprep.subr.mxu0 0.0
        %1024 = vmatpush1.msra.mxu0 0.0
        %1025 = vmatprep.subr.mxu0 0.0
        %1026 = vmatpush1.msra.mxu0 0.0
        %1027 = vmatprep.subr.mxu0 0.0
        %1028 = vmatpush1.msra.mxu0 0.0
        %1029 = vmatprep.subr.mxu0 0.0
        %1030 = vmatpush1.msra.mxu0 0.0
        %1031 = vmatprep.subr.mxu0 0.0
        %1032 = vmatpush1.msra.mxu0 0.0
        %1033 = vmatprep.subr.mxu0 0.0
        %1034 = vmatpush1.msra.mxu0 0.0
        %1035 = vmatprep.subr.mxu0 0.0
        %1036 = vmatpush1.msra.mxu0 0.0
        %1037 = vmatprep.subr.mxu0 0.0
        %1038 = vmatpush1.msra.mxu0 0.0
        %1039 = vmatprep.subr.mxu0 0.0
        %1040 = vmatpush1.msra.mxu0 0.0
        %1041 = vmatprep.subr.mxu0 0.0
        %1042 = vmatpush1.msra.mxu0 0.0
        %1043 = vmatprep.mubr.f32.mxu0 0.0
        %v1044 = vand.u32 %v234, 4294901760
        %v1045 = vsub.f32 %v234, %v1044
        %1046 = vmatmul.mubr.f32.gmra.mrb[0].mxu0 %v1045
        %v1047 = vpop.f32.mrb[0].mxu0
        %v1048 = vadd.f32 %v788, %v1047
        %v1049 = vpop.f32.mrb[0].mxu0
        %1050 = vmatprep.mubr.f32.mxu0 0.0
        %v1051 = vand.u32 %v237, 4294901760
        %v1052 = vsub.f32 %v237, %v1051
        %1053 = vmatmul.mubr.f32.gmra.mrb[0].mxu0 %v1052
        %v1054 = vpop.f32.mrb[0].mxu0
        %v1055 = vadd.f32 %v794, %v1054
        %v1056 = vpop.f32.mrb[0].mxu0
        %1057 = vmatprep.mubr.f32.mxu0 0.0
        %v1058 = vand.u32 %v240, 4294901760
        %v1059 = vsub.f32 %v240, %v1058
        %1060 = vmatmul.mubr.f32.gmra.mrb[0].mxu0 %v1059
        %v1061 = vpop.f32.mrb[0].mxu0
        %v1062 = vadd.f32 %v800, %v1061
        %v1063 = vpop.f32.mrb[0].mxu0
        %1064 = vmatprep.mubr.f32.mxu0 0.0
        %v1065 = vand.u32 %v243, 4294901760
        %v1066 = vsub.f32 %v243, %v1065
        %1067 = vmatmul.mubr.f32.gmra.mrb[0].mxu0 %v1066
        %v1068 = vpop.f32.mrb[0].mxu0
        %v1069 = vadd.f32 %v806, %v1068
        %v1070 = vpop.f32.mrb[0].mxu0
        %1071 = vmatprep.mubr.f32.mxu0 0.0
        %v1072 = vand.u32 %v246, 4294901760
        %v1073 = vsub.f32 %v246, %v1072
        %1074 = vmatmul.mubr.f32.gmra.mrb[0].mxu0 %v1073
        %v1075 = vpop.f32.mrb[0].mxu0
        %v1076 = vadd.f32 %v812, %v1075
        %v1077 = vpop.f32.mrb[0].mxu0
        %1078 = vmatprep.mubr.f32.mxu0 0.0
        %v1079 = vand.u32 %v249, 4294901760
        %v1080 = vsub.f32 %v249, %v1079
        %1081 = vmatmul.mubr.f32.gmra.mrb[0].mxu0 %v1080
        %v1082 = vpop.f32.mrb[0].mxu0
        %v1083 = vadd.f32 %v818, %v1082
        %v1084 = vpop.f32.mrb[0].mxu0
        %1085 = vmatprep.mubr.f32.mxu0 0.0
        %v1086 = vand.u32 %v252, 4294901760
        %v1087 = vsub.f32 %v252, %v1086
        %1088 = vmatmul.mubr.f32.gmra.mrb[0].mxu0 %v1087
        %v1089 = vpop.f32.mrb[0].mxu0
        %v1090 = vadd.f32 %v824, %v1089
        %v1091 = vpop.f32.mrb[0].mxu0
        %1092 = vmatprep.mubr.f32.mxu0 0.0
        %v1093 = vand.u32 %v255, 4294901760
        %v1094 = vsub.f32 %v255, %v1093
        %1095 = vmatmul.mubr.f32.gmra.mrb[0].mxu0 %v1094
        %v1096 = vpop.f32.mrb[0].mxu0
        %v1097 = vadd.f32 %v830, %v1096
        %v1098 = vpop.f32.mrb[0].mxu0
        %1099 = vmatprep.mubr.f32.mxu0 0.0
        %v1100 = vand.u32 %v258, 4294901760
        %v1101 = vsub.f32 %v258, %v1100
        %1102 = vmatmul.mubr.f32.gmra.mrb[0].mxu0 %v1101
        %v1103 = vpop.f32.mrb[0].mxu0
        %v1104 = vadd.f32 %v836, %v1103
        %v1105 = vpop.f32.mrb[0].mxu0
        %1106 = vmatprep.mubr.f32.mxu0 0.0
        %v1107 = vand.u32 %v261, 4294901760
        %v1108 = vsub.f32 %v261, %v1107
        %1109 = vmatmul.mubr.f32.gmra.mrb[0].mxu0 %v1108
        %v1110 = vpop.f32.mrb[0].mxu0
        %v1111 = vadd.f32 %v842, %v1110
        %v1112 = vpop.f32.mrb[0].mxu0
        %1113 = vmatprep.mubr.f32.mxu0 0.0
        %v1114 = vand.u32 %v264, 4294901760
        %v1115 = vsub.f32 %v264, %v1114
        %1116 = vmatmul.mubr.f32.gmra.mrb[0].mxu0 %v1115
        %v1117 = vpop.f32.mrb[0].mxu0
        %v1118 = vadd.f32 %v848, %v1117
        %v1119 = vpop.f32.mrb[0].mxu0
        %1120 = vmatprep.mubr.f32.mxu0 0.0
        %v1121 = vand.u32 %v267, 4294901760
        %v1122 = vsub.f32 %v267, %v1121
        %1123 = vmatmul.mubr.f32.gmra.mrb[0].mxu0 %v1122
        %v1124 = vpop.f32.mrb[0].mxu0
        %v1125 = vadd.f32 %v854, %v1124
        %v1126 = vpop.f32.mrb[0].mxu0
        %1127 = vmatprep.mubr.f32.mxu0 0.0
        %v1128 = vand.u32 %v270, 4294901760
        %v1129 = vsub.f32 %v270, %v1128
        %1130 = vmatmul.mubr.f32.gmra.mrb[0].mxu0 %v1129
        %v1131 = vpop.f32.mrb[0].mxu0
        %v1132 = vadd.f32 %v860, %v1131
        %v1133 = vpop.f32.mrb[0].mxu0
        %1134 = vmatprep.mubr.f32.mxu0 0.0
        %v1135 = vand.u32 %v273, 4294901760
        %v1136 = vsub.f32 %v273, %v1135
        %1137 = vmatmul.mubr.f32.gmra.mrb[0].mxu0 %v1136
        %v1138 = vpop.f32.mrb[0].mxu0
        %v1139 = vadd.f32 %v866, %v1138
        %v1140 = vpop.f32.mrb[0].mxu0
        %1141 = vmatprep.mubr.f32.mxu0 0.0
        %v1142 = vand.u32 %v276, 4294901760
        %v1143 = vsub.f32 %v276, %v1142
        %1144 = vmatmul.mubr.f32.gmra.mrb[0].mxu0 %v1143
        %v1145 = vpop.f32.mrb[0].mxu0
        %v1146 = vadd.f32 %v872, %v1145
        %v1147 = vpop.f32.mrb[0].mxu0
        %1148 = vmatprep.mubr.f32.mxu0 0.0
        %v1149 = vand.u32 %v279, 4294901760
        %v1150 = vsub.f32 %v279, %v1149
        %1151 = vmatmul.mubr.f32.gmra.mrb[0].mxu0 %v1150
        %v1152 = vpop.f32.mrb[0].mxu0
        %v1153 = vadd.f32 %v878, %v1152
        %v1154 = vpop.f32.mrb[0].mxu0
        %1155 = vmatprep.mubr.f32.mxu0 0.0
        %v1156 = vand.u32 %v282, 4294901760
        %v1157 = vsub.f32 %v282, %v1156
        %1158 = vmatmul.mubr.f32.gmra.mrb[0].mxu0 %v1157
        %v1159 = vpop.f32.mrb[0].mxu0
        %v1160 = vadd.f32 %v884, %v1159
        %v1161 = vpop.f32.mrb[0].mxu0
        %1162 = vmatprep.mubr.f32.mxu0 0.0
        %v1163 = vand.u32 %v285, 4294901760
        %v1164 = vsub.f32 %v285, %v1163
        %1165 = vmatmul.mubr.f32.gmra.mrb[0].mxu0 %v1164
        %v1166 = vpop.f32.mrb[0].mxu0
        %v1167 = vadd.f32 %v890, %v1166
        %v1168 = vpop.f32.mrb[0].mxu0
        %1169 = vmatprep.mubr.f32.mxu0 0.0
        %v1170 = vand.u32 %v288, 4294901760
        %v1171 = vsub.f32 %v288, %v1170
        %1172 = vmatmul.mubr.f32.gmra.mrb[0].mxu0 %v1171
        %v1173 = vpop.f32.mrb[0].mxu0
        %v1174 = vadd.f32 %v896, %v1173
        %v1175 = vpop.f32.mrb[0].mxu0
        %1176 = vmatprep.mubr.f32.mxu0 0.0
        %v1177 = vand.u32 %v291, 4294901760
        %v1178 = vsub.f32 %v291, %v1177
        %1179 = vmatmul.mubr.f32.gmra.mrb[0].mxu0 %v1178
        %v1180 = vpop.f32.mrb[0].mxu0
        %v1181 = vadd.f32 %v902, %v1180
        %v1182 = vpop.f32.mrb[0].mxu0
        %1183 = vmatprep.mubr.f32.mxu0 0.0
        %v1184 = vand.u32 %v294, 4294901760
        %v1185 = vsub.f32 %v294, %v1184
        %1186 = vmatmul.mubr.f32.gmra.mrb[0].mxu0 %v1185
        %v1187 = vpop.f32.mrb[0].mxu0
        %v1188 = vadd.f32 %v908, %v1187
        %v1189 = vpop.f32.mrb[0].mxu0
        %1190 = vmatprep.mubr.f32.mxu0 0.0
        %v1191 = vand.u32 %v297, 4294901760
        %v1192 = vsub.f32 %v297, %v1191
        %1193 = vmatmul.mubr.f32.gmra.mrb[0].mxu0 %v1192
        %v1194 = vpop.f32.mrb[0].mxu0
        %v1195 = vadd.f32 %v914, %v1194
        %v1196 = vpop.f32.mrb[0].mxu0
        %1197 = vmatprep.mubr.f32.mxu0 0.0
        %v1198 = vand.u32 %v300, 4294901760
        %v1199 = vsub.f32 %v300, %v1198
        %1200 = vmatmul.mubr.f32.gmra.mrb[0].mxu0 %v1199
        %v1201 = vpop.f32.mrb[0].mxu0
        %v1202 = vadd.f32 %v920, %v1201
        %v1203 = vpop.f32.mrb[0].mxu0
        %1204 = vmatprep.mubr.f32.mxu0 0.0
        %v1205 = vand.u32 %v303, 4294901760
        %v1206 = vsub.f32 %v303, %v1205
        %1207 = vmatmul.mubr.f32.gmra.mrb[0].mxu0 %v1206
        %v1208 = vpop.f32.mrb[0].mxu0
        %v1209 = vadd.f32 %v926, %v1208
        %v1210 = vpop.f32.mrb[0].mxu0
        %1211 = vmatprep.mubr.f32.mxu0 0.0
        %v1212 = vand.u32 %v306, 4294901760
        %v1213 = vsub.f32 %v306, %v1212
        %1214 = vmatmul.mubr.f32.gmra.mrb[0].mxu0 %v1213
        %v1215 = vpop.f32.mrb[0].mxu0
        %v1216 = vadd.f32 %v932, %v1215
        %v1217 = vpop.f32.mrb[0].mxu0
        %1218 = vmatprep.mubr.f32.mxu0 0.0
        %v1219 = vand.u32 %v309, 4294901760
        %v1220 = vsub.f32 %v309, %v1219
        %1221 = vmatmul.mubr.f32.gmra.mrb[0].mxu0 %v1220
        %v1222 = vpop.f32.mrb[0].mxu0
        %v1223 = vadd.f32 %v938, %v1222
        %v1224 = vpop.f32.mrb[0].mxu0
        %1225 = vmatprep.mubr.f32.mxu0 0.0
        %v1226 = vand.u32 %v312, 4294901760
        %v1227 = vsub.f32 %v312, %v1226
        %1228 = vmatmul.mubr.f32.gmra.mrb[0].mxu0 %v1227
        %v1229 = vpop.f32.mrb[0].mxu0
        %v1230 = vadd.f32 %v944, %v1229
        %v1231 = vpop.f32.mrb[0].mxu0
        %1232 = vmatprep.mubr.f32.mxu0 0.0
        %v1233 = vand.u32 %v315, 4294901760
        %v1234 = vsub.f32 %v315, %v1233
        %1235 = vmatmul.mubr.f32.gmra.mrb[0].mxu0 %v1234
        %v1236 = vpop.f32.mrb[0].mxu0
        %v1237 = vadd.f32 %v950, %v1236
        %v1238 = vpop.f32.mrb[0].mxu0
        %1239 = vmatprep.mubr.f32.mxu0 0.0
        %v1240 = vand.u32 %v318, 4294901760
        %v1241 = vsub.f32 %v318, %v1240
        %1242 = vmatmul.mubr.f32.gmra.mrb[0].mxu0 %v1241
        %v1243 = vpop.f32.mrb[0].mxu0
        %v1244 = vadd.f32 %v956, %v1243
        %v1245 = vpop.f32.mrb[0].mxu0
        %1246 = vmatprep.mubr.f32.mxu0 0.0
        %v1247 = vand.u32 %v321, 4294901760
        %v1248 = vsub.f32 %v321, %v1247
        %1249 = vmatmul.mubr.f32.gmra.mrb[0].mxu0 %v1248
        %v1250 = vpop.f32.mrb[0].mxu0
        %v1251 = vadd.f32 %v962, %v1250
        %v1252 = vpop.f32.mrb[0].mxu0
        %1253 = vmatprep.mubr.f32.mxu0 0.0
        %v1254 = vand.u32 %v324, 4294901760
        %v1255 = vsub.f32 %v324, %v1254
        %1256 = vmatmul.mubr.f32.gmra.mrb[0].mxu0 %v1255
        %v1257 = vpop.f32.mrb[0].mxu0
        %v1258 = vadd.f32 %v968, %v1257
        %v1259 = vpop.f32.mrb[0].mxu0
        %1260 = vmatprep.mubr.f32.mxu0 0.0
        %v1261 = vand.u32 %v327, 4294901760
        %v1262 = vsub.f32 %v327, %v1261
        %1263 = vmatmul.mubr.f32.gmra.mrb[0].mxu0 %v1262
        %v1264 = vpop.f32.mrb[0].mxu0
        %v1265 = vadd.f32 %v974, %v1264
        %v1266 = vpop.f32.mrb[0].mxu0
        %1267 = vdwg.mxu0
        %1268 = vmatprep.subr.mxu0 0.0
        %v1269 = vand.u32 %v231, 4294901760
        %1270 = vmatpush1.msra.mxu0 %v1269
        %1271 = vmatprep.subr.mxu0 0.0
        %1272 = vmatpush1.msra.mxu0 0.0
        %1273 = vmatprep.subr.mxu0 0.0
        %1274 = vmatpush1.msra.mxu0 0.0
        %1275 = vmatprep.subr.mxu0 0.0
        %1276 = vmatpush1.msra.mxu0 0.0
        %1277 = vmatprep.subr.mxu0 0.0
        %1278 = vmatpush1.msra.mxu0 0.0
        %1279 = vmatprep.subr.mxu0 0.0
        %1280 = vmatpush1.msra.mxu0 0.0
        %1281 = vmatprep.subr.mxu0 0.0
        %1282 = vmatpush1.msra.mxu0 0.0
        %1283 = vmatprep.subr.mxu0 0.0
        %1284 = vmatpush1.msra.mxu0 0.0
        %1285 = vmatprep.subr.mxu0 0.0
        %1286 = vmatpush1.msra.mxu0 0.0
        %1287 = vmatprep.subr.mxu0 0.0
        %1288 = vmatpush1.msra.mxu0 0.0
        %1289 = vmatprep.subr.mxu0 0.0
        %1290 = vmatpush1.msra.mxu0 0.0
        %1291 = vmatprep.subr.mxu0 0.0
        %1292 = vmatpush1.msra.mxu0 0.0
        %1293 = vmatprep.subr.mxu0 0.0
        %1294 = vmatpush1.msra.mxu0 0.0
        %1295 = vmatprep.subr.mxu0 0.0
        %1296 = vmatpush1.msra.mxu0 0.0
        %1297 = vmatprep.subr.mxu0 0.0
        %1298 = vmatpush1.msra.mxu0 0.0
        %1299 = vmatprep.subr.mxu0 0.0
        %1300 = vmatpush1.msra.mxu0 0.0
        %1301 = vmatprep.subr.mxu0 0.0
        %1302 = vmatpush1.msra.mxu0 0.0
        %1303 = vmatprep.subr.mxu0 0.0
        %1304 = vmatpush1.msra.mxu0 0.0
        %1305 = vmatprep.subr.mxu0 0.0
        %1306 = vmatpush1.msra.mxu0 0.0
        %1307 = vmatprep.subr.mxu0 0.0
        %1308 = vmatpush1.msra.mxu0 0.0
        %1309 = vmatprep.subr.mxu0 0.0
        %1310 = vmatpush1.msra.mxu0 0.0
        %1311 = vmatprep.subr.mxu0 0.0
        %1312 = vmatpush1.msra.mxu0 0.0
        %1313 = vmatprep.subr.mxu0 0.0
        %1314 = vmatpush1.msra.mxu0 0.0
        %1315 = vmatprep.subr.mxu0 0.0
        %1316 = vmatpush1.msra.mxu0 0.0
        %1317 = vmatprep.subr.mxu0 0.0
        %1318 = vmatpush1.msra.mxu0 0.0
        %1319 = vmatprep.subr.mxu0 0.0
        %1320 = vmatpush1.msra.mxu0 0.0
        %1321 = vmatprep.subr.mxu0 0.0
        %1322 = vmatpush1.msra.mxu0 0.0
        %1323 = vmatprep.subr.mxu0 0.0
        %1324 = vmatpush1.msra.mxu0 0.0
        %1325 = vmatprep.subr.mxu0 0.0
        %1326 = vmatpush1.msra.mxu0 0.0
        %1327 = vmatprep.subr.mxu0 0.0
        %1328 = vmatpush1.msra.mxu0 0.0
        %1329 = vmatprep.subr.mxu0 0.0
        %1330 = vmatpush1.msra.mxu0 0.0
        %1331 = vmatprep.subr.mxu0 0.0
        %1332 = vmatpush1.msra.mxu0 0.0
        %1333 = vmatprep.mubr.f32.mxu0 0.0
        %v1334 = vand.u32 %v234, 4294901760
        %v1335 = vsub.f32 %v234, %v1334
        %v1336 = vand.u32 %v1335, 4294901760
        %1337 = vmatmul.mubr.f32.gmra.mrb[0].mxu0 %v1336
        %v1338 = vpop.f32.mrb[0].mxu0
        %v1339 = vadd.f32 %v1048, %v1338
        %v1340 = vpop.f32.mrb[0].mxu0
        %1341 = vmatprep.mubr.f32.mxu0 0.0
        %v1342 = vand.u32 %v237, 4294901760
        %v1343 = vsub.f32 %v237, %v1342
        %v1344 = vand.u32 %v1343, 4294901760
        %1345 = vmatmul.mubr.f32.gmra.mrb[0].mxu0 %v1344
        %v1346 = vpop.f32.mrb[0].mxu0
        %v1347 = vadd.f32 %v1055, %v1346
        %v1348 = vpop.f32.mrb[0].mxu0
        %1349 = vmatprep.mubr.f32.mxu0 0.0
        %v1350 = vand.u32 %v240, 4294901760
        %v1351 = vsub.f32 %v240, %v1350
        %v1352 = vand.u32 %v1351, 4294901760
        %1353 = vmatmul.mubr.f32.gmra.mrb[0].mxu0 %v1352
        %v1354 = vpop.f32.mrb[0].mxu0
        %v1355 = vadd.f32 %v1062, %v1354
        %v1356 = vpop.f32.mrb[0].mxu0
        %1357 = vmatprep.mubr.f32.mxu0 0.0
        %v1358 = vand.u32 %v243, 4294901760
        %v1359 = vsub.f32 %v243, %v1358
        %v1360 = vand.u32 %v1359, 4294901760
        %1361 = vmatmul.mubr.f32.gmra.mrb[0].mxu0 %v1360
        %v1362 = vpop.f32.mrb[0].mxu0
        %v1363 = vadd.f32 %v1069, %v1362
        %v1364 = vpop.f32.mrb[0].mxu0
        %1365 = vmatprep.mubr.f32.mxu0 0.0
        %v1366 = vand.u32 %v246, 4294901760
        %v1367 = vsub.f32 %v246, %v1366
        %v1368 = vand.u32 %v1367, 4294901760
        %1369 = vmatmul.mubr.f32.gmra.mrb[0].mxu0 %v1368
        %v1370 = vpop.f32.mrb[0].mxu0
        %v1371 = vadd.f32 %v1076, %v1370
        %v1372 = vpop.f32.mrb[0].mxu0
        %1373 = vmatprep.mubr.f32.mxu0 0.0
        %v1374 = vand.u32 %v249, 4294901760
        %v1375 = vsub.f32 %v249, %v1374
        %v1376 = vand.u32 %v1375, 4294901760
        %1377 = vmatmul.mubr.f32.gmra.mrb[0].mxu0 %v1376
        %v1378 = vpop.f32.mrb[0].mxu0
        %v1379 = vadd.f32 %v1083, %v1378
        %v1380 = vpop.f32.mrb[0].mxu0
        %1381 = vmatprep.mubr.f32.mxu0 0.0
        %v1382 = vand.u32 %v252, 4294901760
        %v1383 = vsub.f32 %v252, %v1382
        %v1384 = vand.u32 %v1383, 4294901760
        %1385 = vmatmul.mubr.f32.gmra.mrb[0].mxu0 %v1384
        %v1386 = vpop.f32.mrb[0].mxu0
        %v1387 = vadd.f32 %v1090, %v1386
        %v1388 = vpop.f32.mrb[0].mxu0
        %1389 = vmatprep.mubr.f32.mxu0 0.0
        %v1390 = vand.u32 %v255, 4294901760
        %v1391 = vsub.f32 %v255, %v1390
        %v1392 = vand.u32 %v1391, 4294901760
        %1393 = vmatmul.mubr.f32.gmra.mrb[0].mxu0 %v1392
        %v1394 = vpop.f32.mrb[0].mxu0
        %v1395 = vadd.f32 %v1097, %v1394
        %v1396 = vpop.f32.mrb[0].mxu0
        %1397 = vmatprep.mubr.f32.mxu0 0.0
        %v1398 = vand.u32 %v258, 4294901760
        %v1399 = vsub.f32 %v258, %v1398
        %v1400 = vand.u32 %v1399, 4294901760
        %1401 = vmatmul.mubr.f32.gmra.mrb[0].mxu0 %v1400
        %v1402 = vpop.f32.mrb[0].mxu0
        %v1403 = vadd.f32 %v1104, %v1402
        %v1404 = vpop.f32.mrb[0].mxu0
        %1405 = vmatprep.mubr.f32.mxu0 0.0
        %v1406 = vand.u32 %v261, 4294901760
        %v1407 = vsub.f32 %v261, %v1406
        %v1408 = vand.u32 %v1407, 4294901760
        %1409 = vmatmul.mubr.f32.gmra.mrb[0].mxu0 %v1408
        %v1410 = vpop.f32.mrb[0].mxu0
        %v1411 = vadd.f32 %v1111, %v1410
        %v1412 = vpop.f32.mrb[0].mxu0
        %1413 = vmatprep.mubr.f32.mxu0 0.0
        %v1414 = vand.u32 %v264, 4294901760
        %v1415 = vsub.f32 %v264, %v1414
        %v1416 = vand.u32 %v1415, 4294901760
        %1417 = vmatmul.mubr.f32.gmra.mrb[0].mxu0 %v1416
        %v1418 = vpop.f32.mrb[0].mxu0
        %v1419 = vadd.f32 %v1118, %v1418
        %v1420 = vpop.f32.mrb[0].mxu0
        %1421 = vmatprep.mubr.f32.mxu0 0.0
        %v1422 = vand.u32 %v267, 4294901760
        %v1423 = vsub.f32 %v267, %v1422
        %v1424 = vand.u32 %v1423, 4294901760
        %1425 = vmatmul.mubr.f32.gmra.mrb[0].mxu0 %v1424
        %v1426 = vpop.f32.mrb[0].mxu0
        %v1427 = vadd.f32 %v1125, %v1426
        %v1428 = vpop.f32.mrb[0].mxu0
        %1429 = vmatprep.mubr.f32.mxu0 0.0
        %v1430 = vand.u32 %v270, 4294901760
        %v1431 = vsub.f32 %v270, %v1430
        %v1432 = vand.u32 %v1431, 4294901760
        %1433 = vmatmul.mubr.f32.gmra.mrb[0].mxu0 %v1432
        %v1434 = vpop.f32.mrb[0].mxu0
        %v1435 = vadd.f32 %v1132, %v1434
        %v1436 = vpop.f32.mrb[0].mxu0
        %1437 = vmatprep.mubr.f32.mxu0 0.0
        %v1438 = vand.u32 %v273, 4294901760
        %v1439 = vsub.f32 %v273, %v1438
        %v1440 = vand.u32 %v1439, 4294901760
        %1441 = vmatmul.mubr.f32.gmra.mrb[0].mxu0 %v1440
        %v1442 = vpop.f32.mrb[0].mxu0
        %v1443 = vadd.f32 %v1139, %v1442
        %v1444 = vpop.f32.mrb[0].mxu0
        %1445 = vmatprep.mubr.f32.mxu0 0.0
        %v1446 = vand.u32 %v276, 4294901760
        %v1447 = vsub.f32 %v276, %v1446
        %v1448 = vand.u32 %v1447, 4294901760
        %1449 = vmatmul.mubr.f32.gmra.mrb[0].mxu0 %v1448
        %v1450 = vpop.f32.mrb[0].mxu0
        %v1451 = vadd.f32 %v1146, %v1450
        %v1452 = vpop.f32.mrb[0].mxu0
        %1453 = vmatprep.mubr.f32.mxu0 0.0
        %v1454 = vand.u32 %v279, 4294901760
        %v1455 = vsub.f32 %v279, %v1454
        %v1456 = vand.u32 %v1455, 4294901760
        %1457 = vmatmul.mubr.f32.gmra.mrb[0].mxu0 %v1456
        %v1458 = vpop.f32.mrb[0].mxu0
        %v1459 = vadd.f32 %v1153, %v1458
        %v1460 = vpop.f32.mrb[0].mxu0
        %1461 = vmatprep.mubr.f32.mxu0 0.0
        %v1462 = vand.u32 %v282, 4294901760
        %v1463 = vsub.f32 %v282, %v1462
        %v1464 = vand.u32 %v1463, 4294901760
        %1465 = vmatmul.mubr.f32.gmra.mrb[0].mxu0 %v1464
        %v1466 = vpop.f32.mrb[0].mxu0
        %v1467 = vadd.f32 %v1160, %v1466
        %v1468 = vpop.f32.mrb[0].mxu0
        %1469 = vmatprep.mubr.f32.mxu0 0.0
        %v1470 = vand.u32 %v285, 4294901760
        %v1471 = vsub.f32 %v285, %v1470
        %v1472 = vand.u32 %v1471, 4294901760
        %1473 = vmatmul.mubr.f32.gmra.mrb[0].mxu0 %v1472
        %v1474 = vpop.f32.mrb[0].mxu0
        %v1475 = vadd.f32 %v1167, %v1474
        %v1476 = vpop.f32.mrb[0].mxu0
        %1477 = vmatprep.mubr.f32.mxu0 0.0
        %v1478 = vand.u32 %v288, 4294901760
        %v1479 = vsub.f32 %v288, %v1478
        %v1480 = vand.u32 %v1479, 4294901760
        %1481 = vmatmul.mubr.f32.gmra.mrb[0].mxu0 %v1480
        %v1482 = vpop.f32.mrb[0].mxu0
        %v1483 = vadd.f32 %v1174, %v1482
        %v1484 = vpop.f32.mrb[0].mxu0
        %1485 = vmatprep.mubr.f32.mxu0 0.0
        %v1486 = vand.u32 %v291, 4294901760
        %v1487 = vsub.f32 %v291, %v1486
        %v1488 = vand.u32 %v1487, 4294901760
        %1489 = vmatmul.mubr.f32.gmra.mrb[0].mxu0 %v1488
        %v1490 = vpop.f32.mrb[0].mxu0
        %v1491 = vadd.f32 %v1181, %v1490
        %v1492 = vpop.f32.mrb[0].mxu0
        %1493 = vmatprep.mubr.f32.mxu0 0.0
        %v1494 = vand.u32 %v294, 4294901760
        %v1495 = vsub.f32 %v294, %v1494
        %v1496 = vand.u32 %v1495, 4294901760
        %1497 = vmatmul.mubr.f32.gmra.mrb[0].mxu0 %v1496
        %v1498 = vpop.f32.mrb[0].mxu0
        %v1499 = vadd.f32 %v1188, %v1498
        %v1500 = vpop.f32.mrb[0].mxu0
        %1501 = vmatprep.mubr.f32.mxu0 0.0
        %v1502 = vand.u32 %v297, 4294901760
        %v1503 = vsub.f32 %v297, %v1502
        %v1504 = vand.u32 %v1503, 4294901760
        %1505 = vmatmul.mubr.f32.gmra.mrb[0].mxu0 %v1504
        %v1506 = vpop.f32.mrb[0].mxu0
        %v1507 = vadd.f32 %v1195, %v1506
        %v1508 = vpop.f32.mrb[0].mxu0
        %1509 = vmatprep.mubr.f32.mxu0 0.0
        %v1510 = vand.u32 %v300, 4294901760
        %v1511 = vsub.f32 %v300, %v1510
        %v1512 = vand.u32 %v1511, 4294901760
        %1513 = vmatmul.mubr.f32.gmra.mrb[0].mxu0 %v1512
        %v1514 = vpop.f32.mrb[0].mxu0
        %v1515 = vadd.f32 %v1202, %v1514
        %v1516 = vpop.f32.mrb[0].mxu0
        %1517 = vmatprep.mubr.f32.mxu0 0.0
        %v1518 = vand.u32 %v303, 4294901760
        %v1519 = vsub.f32 %v303, %v1518
        %v1520 = vand.u32 %v1519, 4294901760
        %1521 = vmatmul.mubr.f32.gmra.mrb[0].mxu0 %v1520
        %v1522 = vpop.f32.mrb[0].mxu0
        %v1523 = vadd.f32 %v1209, %v1522
        %v1524 = vpop.f32.mrb[0].mxu0
        %1525 = vmatprep.mubr.f32.mxu0 0.0
        %v1526 = vand.u32 %v306, 4294901760
        %v1527 = vsub.f32 %v306, %v1526
        %v1528 = vand.u32 %v1527, 4294901760
        %1529 = vmatmul.mubr.f32.gmra.mrb[0].mxu0 %v1528
        %v1530 = vpop.f32.mrb[0].mxu0
        %v1531 = vadd.f32 %v1216, %v1530
        %v1532 = vpop.f32.mrb[0].mxu0
        %1533 = vmatprep.mubr.f32.mxu0 0.0
        %v1534 = vand.u32 %v309, 4294901760
        %v1535 = vsub.f32 %v309, %v1534
        %v1536 = vand.u32 %v1535, 4294901760
        %1537 = vmatmul.mubr.f32.gmra.mrb[0].mxu0 %v1536
        %v1538 = vpop.f32.mrb[0].mxu0
        %v1539 = vadd.f32 %v1223, %v1538
        %v1540 = vpop.f32.mrb[0].mxu0
        %1541 = vmatprep.mubr.f32.mxu0 0.0
        %v1542 = vand.u32 %v312, 4294901760
        %v1543 = vsub.f32 %v312, %v1542
        %v1544 = vand.u32 %v1543, 4294901760
        %1545 = vmatmul.mubr.f32.gmra.mrb[0].mxu0 %v1544
        %v1546 = vpop.f32.mrb[0].mxu0
        %v1547 = vadd.f32 %v1230, %v1546
        %v1548 = vpop.f32.mrb[0].mxu0
        %1549 = vmatprep.mubr.f32.mxu0 0.0
        %v1550 = vand.u32 %v315, 4294901760
        %v1551 = vsub.f32 %v315, %v1550
        %v1552 = vand.u32 %v1551, 4294901760
        %1553 = vmatmul.mubr.f32.gmra.mrb[0].mxu0 %v1552
        %v1554 = vpop.f32.mrb[0].mxu0
        %v1555 = vadd.f32 %v1237, %v1554
        %v1556 = vpop.f32.mrb[0].mxu0
        %1557 = vmatprep.mubr.f32.mxu0 0.0
        %v1558 = vand.u32 %v318, 4294901760
        %v1559 = vsub.f32 %v318, %v1558
        %v1560 = vand.u32 %v1559, 4294901760
        %1561 = vmatmul.mubr.f32.gmra.mrb[0].mxu0 %v1560
        %v1562 = vpop.f32.mrb[0].mxu0
        %v1563 = vadd.f32 %v1244, %v1562
        %v1564 = vpop.f32.mrb[0].mxu0
        %1565 = vmatprep.mubr.f32.mxu0 0.0
        %v1566 = vand.u32 %v321, 4294901760
        %v1567 = vsub.f32 %v321, %v1566
        %v1568 = vand.u32 %v1567, 4294901760
        %1569 = vmatmul.mubr.f32.gmra.mrb[0].mxu0 %v1568
        %v1570 = vpop.f32.mrb[0].mxu0
        %v1571 = vadd.f32 %v1251, %v1570
        %v1572 = vpop.f32.mrb[0].mxu0
        %1573 = vmatprep.mubr.f32.mxu0 0.0
        %v1574 = vand.u32 %v324, 4294901760
        %v1575 = vsub.f32 %v324, %v1574
        %v1576 = vand.u32 %v1575, 4294901760
        %1577 = vmatmul.mubr.f32.gmra.mrb[0].mxu0 %v1576
        %v1578 = vpop.f32.mrb[0].mxu0
        %v1579 = vadd.f32 %v1258, %v1578
        %v1580 = vpop.f32.mrb[0].mxu0
        %1581 = vmatprep.mubr.f32.mxu0 0.0
        %v1582 = vand.u32 %v327, 4294901760
        %v1583 = vsub.f32 %v327, %v1582
        %v1584 = vand.u32 %v1583, 4294901760
        %1585 = vmatmul.mubr.f32.gmra.mrb[0].mxu0 %v1584
        %v1586 = vpop.f32.mrb[0].mxu0
        %v1587 = vadd.f32 %v1265, %v1586
        %v1588 = vpop.f32.mrb[0].mxu0
        %1589 = vdwg.mxu0
        %1590 = vmatprep.subr.mxu0 0.0
        %v1591 = vand.u32 %v231, 4294901760
        %v1592 = vsub.f32 %v231, %v1591
        %v1593 = vand.u32 %v1592, 4294901760
        %1594 = vmatpush1.msra.mxu0 %v1593
        %1595 = vmatprep.subr.mxu0 0.0
        %1596 = vmatpush1.msra.mxu0 0.0
        %1597 = vmatprep.subr.mxu0 0.0
        %1598 = vmatpush1.msra.mxu0 0.0
        %1599 = vmatprep.subr.mxu0 0.0
        %1600 = vmatpush1.msra.mxu0 0.0
        %1601 = vmatprep.subr.mxu0 0.0
        %1602 = vmatpush1.msra.mxu0 0.0
        %1603 = vmatprep.subr.mxu0 0.0
        %1604 = vmatpush1.msra.mxu0 0.0
        %1605 = vmatprep.subr.mxu0 0.0
        %1606 = vmatpush1.msra.mxu0 0.0
        %1607 = vmatprep.subr.mxu0 0.0
        %1608 = vmatpush1.msra.mxu0 0.0
        %1609 = vmatprep.subr.mxu0 0.0
        %1610 = vmatpush1.msra.mxu0 0.0
        %1611 = vmatprep.subr.mxu0 0.0
        %1612 = vmatpush1.msra.mxu0 0.0
        %1613 = vmatprep.subr.mxu0 0.0
        %1614 = vmatpush1.msra.mxu0 0.0
        %1615 = vmatprep.subr.mxu0 0.0
        %1616 = vmatpush1.msra.mxu0 0.0
        %1617 = vmatprep.subr.mxu0 0.0
        %1618 = vmatpush1.msra.mxu0 0.0
        %1619 = vmatprep.subr.mxu0 0.0
        %1620 = vmatpush1.msra.mxu0 0.0
        %1621 = vmatprep.subr.mxu0 0.0
        %1622 = vmatpush1.msra.mxu0 0.0
        %1623 = vmatprep.subr.mxu0 0.0
        %1624 = vmatpush1.msra.mxu0 0.0
        %1625 = vmatprep.subr.mxu0 0.0
        %1626 = vmatpush1.msra.mxu0 0.0
        %1627 = vmatprep.subr.mxu0 0.0
        %1628 = vmatpush1.msra.mxu0 0.0
        %1629 = vmatprep.subr.mxu0 0.0
        %1630 = vmatpush1.msra.mxu0 0.0
        %1631 = vmatprep.subr.mxu0 0.0
        %1632 = vmatpush1.msra.mxu0 0.0
        %1633 = vmatprep.subr.mxu0 0.0
        %1634 = vmatpush1.msra.mxu0 0.0
        %1635 = vmatprep.subr.mxu0 0.0
        %1636 = vmatpush1.msra.mxu0 0.0
        %1637 = vmatprep.subr.mxu0 0.0
        %1638 = vmatpush1.msra.mxu0 0.0
        %1639 = vmatprep.subr.mxu0 0.0
        %1640 = vmatpush1.msra.mxu0 0.0
        %1641 = vmatprep.subr.mxu0 0.0
        %1642 = vmatpush1.msra.mxu0 0.0
        %1643 = vmatprep.subr.mxu0 0.0
        %1644 = vmatpush1.msra.mxu0 0.0
        %1645 = vmatprep.subr.mxu0 0.0
        %1646 = vmatpush1.msra.mxu0 0.0
        %1647 = vmatprep.subr.mxu0 0.0
        %1648 = vmatpush1.msra.mxu0 0.0
        %1649 = vmatprep.subr.mxu0 0.0
        %1650 = vmatpush1.msra.mxu0 0.0
        %1651 = vmatprep.subr.mxu0 0.0
        %1652 = vmatpush1.msra.mxu0 0.0
        %1653 = vmatprep.subr.mxu0 0.0
        %1654 = vmatpush1.msra.mxu0 0.0
        %1655 = vmatprep.subr.mxu0 0.0
        %1656 = vmatpush1.msra.mxu0 0.0
        %1657 = vmatprep.mubr.f32.mxu0 0.0
        %v1658 = vand.u32 %v234, 4294901760
        %1659 = vmatmul.mubr.f32.gmra.mrb[0].mxu0 %v1658
        %v1660 = vpop.f32.mrb[0].mxu0
        %v1661 = vadd.f32 %v1339, %v1660
        %v1662 = vpop.f32.mrb[0].mxu0
        %1663 = vmatprep.mubr.f32.mxu0 0.0
        %v1664 = vand.u32 %v237, 4294901760
        %1665 = vmatmul.mubr.f32.gmra.mrb[0].mxu0 %v1664
        %v1666 = vpop.f32.mrb[0].mxu0
        %v1667 = vadd.f32 %v1347, %v1666
        %v1668 = vpop.f32.mrb[0].mxu0
        %1669 = vmatprep.mubr.f32.mxu0 0.0
        %v1670 = vand.u32 %v240, 4294901760
        %1671 = vmatmul.mubr.f32.gmra.mrb[0].mxu0 %v1670
        %v1672 = vpop.f32.mrb[0].mxu0
        %v1673 = vadd.f32 %v1355, %v1672
        %v1674 = vpop.f32.mrb[0].mxu0
        %1675 = vmatprep.mubr.f32.mxu0 0.0
        %v1676 = vand.u32 %v243, 4294901760
        %1677 = vmatmul.mubr.f32.gmra.mrb[0].mxu0 %v1676
        %v1678 = vpop.f32.mrb[0].mxu0
        %v1679 = vadd.f32 %v1363, %v1678
        %v1680 = vpop.f32.mrb[0].mxu0
        %1681 = vmatprep.mubr.f32.mxu0 0.0
        %v1682 = vand.u32 %v246, 4294901760
        %1683 = vmatmul.mubr.f32.gmra.mrb[0].mxu0 %v1682
        %v1684 = vpop.f32.mrb[0].mxu0
        %v1685 = vadd.f32 %v1371, %v1684
        %v1686 = vpop.f32.mrb[0].mxu0
        %1687 = vmatprep.mubr.f32.mxu0 0.0
        %v1688 = vand.u32 %v249, 4294901760
        %1689 = vmatmul.mubr.f32.gmra.mrb[0].mxu0 %v1688
        %v1690 = vpop.f32.mrb[0].mxu0
        %v1691 = vadd.f32 %v1379, %v1690
        %v1692 = vpop.f32.mrb[0].mxu0
        %1693 = vmatprep.mubr.f32.mxu0 0.0
        %v1694 = vand.u32 %v252, 4294901760
        %1695 = vmatmul.mubr.f32.gmra.mrb[0].mxu0 %v1694
        %v1696 = vpop.f32.mrb[0].mxu0
        %v1697 = vadd.f32 %v1387, %v1696
        %v1698 = vpop.f32.mrb[0].mxu0
        %1699 = vmatprep.mubr.f32.mxu0 0.0
        %v1700 = vand.u32 %v255, 4294901760
        %1701 = vmatmul.mubr.f32.gmra.mrb[0].mxu0 %v1700
        %v1702 = vpop.f32.mrb[0].mxu0
        %v1703 = vadd.f32 %v1395, %v1702
        %v1704 = vpop.f32.mrb[0].mxu0
        %1705 = vmatprep.mubr.f32.mxu0 0.0
        %v1706 = vand.u32 %v258, 4294901760
        %1707 = vmatmul.mubr.f32.gmra.mrb[0].mxu0 %v1706
        %v1708 = vpop.f32.mrb[0].mxu0
        %v1709 = vadd.f32 %v1403, %v1708
        %v1710 = vpop.f32.mrb[0].mxu0
        %1711 = vmatprep.mubr.f32.mxu0 0.0
        %v1712 = vand.u32 %v261, 4294901760
        %1713 = vmatmul.mubr.f32.gmra.mrb[0].mxu0 %v1712
        %v1714 = vpop.f32.mrb[0].mxu0
        %v1715 = vadd.f32 %v1411, %v1714
        %v1716 = vpop.f32.mrb[0].mxu0
        %1717 = vmatprep.mubr.f32.mxu0 0.0
        %v1718 = vand.u32 %v264, 4294901760
        %1719 = vmatmul.mubr.f32.gmra.mrb[0].mxu0 %v1718
        %v1720 = vpop.f32.mrb[0].mxu0
        %v1721 = vadd.f32 %v1419, %v1720
        %v1722 = vpop.f32.mrb[0].mxu0
        %1723 = vmatprep.mubr.f32.mxu0 0.0
        %v1724 = vand.u32 %v267, 4294901760
        %1725 = vmatmul.mubr.f32.gmra.mrb[0].mxu0 %v1724
        %v1726 = vpop.f32.mrb[0].mxu0
        %v1727 = vadd.f32 %v1427, %v1726
        %v1728 = vpop.f32.mrb[0].mxu0
        %1729 = vmatprep.mubr.f32.mxu0 0.0
        %v1730 = vand.u32 %v270, 4294901760
        %1731 = vmatmul.mubr.f32.gmra.mrb[0].mxu0 %v1730
        %v1732 = vpop.f32.mrb[0].mxu0
        %v1733 = vadd.f32 %v1435, %v1732
        %v1734 = vpop.f32.mrb[0].mxu0
        %1735 = vmatprep.mubr.f32.mxu0 0.0
        %v1736 = vand.u32 %v273, 4294901760
        %1737 = vmatmul.mubr.f32.gmra.mrb[0].mxu0 %v1736
        %v1738 = vpop.f32.mrb[0].mxu0
        %v1739 = vadd.f32 %v1443, %v1738
        %v1740 = vpop.f32.mrb[0].mxu0
        %1741 = vmatprep.mubr.f32.mxu0 0.0
        %v1742 = vand.u32 %v276, 4294901760
        %1743 = vmatmul.mubr.f32.gmra.mrb[0].mxu0 %v1742
        %v1744 = vpop.f32.mrb[0].mxu0
        %v1745 = vadd.f32 %v1451, %v1744
        %v1746 = vpop.f32.mrb[0].mxu0
        %1747 = vmatprep.mubr.f32.mxu0 0.0
        %v1748 = vand.u32 %v279, 4294901760
        %1749 = vmatmul.mubr.f32.gmra.mrb[0].mxu0 %v1748
        %v1750 = vpop.f32.mrb[0].mxu0
        %v1751 = vadd.f32 %v1459, %v1750
        %v1752 = vpop.f32.mrb[0].mxu0
        %1753 = vmatprep.mubr.f32.mxu0 0.0
        %v1754 = vand.u32 %v282, 4294901760
        %1755 = vmatmul.mubr.f32.gmra.mrb[0].mxu0 %v1754
        %v1756 = vpop.f32.mrb[0].mxu0
        %v1757 = vadd.f32 %v1467, %v1756
        %v1758 = vpop.f32.mrb[0].mxu0
        %1759 = vmatprep.mubr.f32.mxu0 0.0
        %v1760 = vand.u32 %v285, 4294901760
        %1761 = vmatmul.mubr.f32.gmra.mrb[0].mxu0 %v1760
        %v1762 = vpop.f32.mrb[0].mxu0
        %v1763 = vadd.f32 %v1475, %v1762
        %v1764 = vpop.f32.mrb[0].mxu0
        %1765 = vmatprep.mubr.f32.mxu0 0.0
        %v1766 = vand.u32 %v288, 4294901760
        %1767 = vmatmul.mubr.f32.gmra.mrb[0].mxu0 %v1766
        %v1768 = vpop.f32.mrb[0].mxu0
        %v1769 = vadd.f32 %v1483, %v1768
        %v1770 = vpop.f32.mrb[0].mxu0
        %1771 = vmatprep.mubr.f32.mxu0 0.0
        %v1772 = vand.u32 %v291, 4294901760
        %1773 = vmatmul.mubr.f32.gmra.mrb[0].mxu0 %v1772
        %v1774 = vpop.f32.mrb[0].mxu0
        %v1775 = vadd.f32 %v1491, %v1774
        %v1776 = vpop.f32.mrb[0].mxu0
        %1777 = vmatprep.mubr.f32.mxu0 0.0
        %v1778 = vand.u32 %v294, 4294901760
        %1779 = vmatmul.mubr.f32.gmra.mrb[0].mxu0 %v1778
        %v1780 = vpop.f32.mrb[0].mxu0
        %v1781 = vadd.f32 %v1499, %v1780
        %v1782 = vpop.f32.mrb[0].mxu0
        %1783 = vmatprep.mubr.f32.mxu0 0.0
        %v1784 = vand.u32 %v297, 4294901760
        %1785 = vmatmul.mubr.f32.gmra.mrb[0].mxu0 %v1784
        %v1786 = vpop.f32.mrb[0].mxu0
        %v1787 = vadd.f32 %v1507, %v1786
        %v1788 = vpop.f32.mrb[0].mxu0
        %1789 = vmatprep.mubr.f32.mxu0 0.0
        %v1790 = vand.u32 %v300, 4294901760
        %1791 = vmatmul.mubr.f32.gmra.mrb[0].mxu0 %v1790
        %v1792 = vpop.f32.mrb[0].mxu0
        %v1793 = vadd.f32 %v1515, %v1792
        %v1794 = vpop.f32.mrb[0].mxu0
        %1795 = vmatprep.mubr.f32.mxu0 0.0
        %v1796 = vand.u32 %v303, 4294901760
        %1797 = vmatmul.mubr.f32.gmra.mrb[0].mxu0 %v1796
        %v1798 = vpop.f32.mrb[0].mxu0
        %v1799 = vadd.f32 %v1523, %v1798
        %v1800 = vpop.f32.mrb[0].mxu0
        %1801 = vmatprep.mubr.f32.mxu0 0.0
        %v1802 = vand.u32 %v306, 4294901760
        %1803 = vmatmul.mubr.f32.gmra.mrb[0].mxu0 %v1802
        %v1804 = vpop.f32.mrb[0].mxu0
        %v1805 = vadd.f32 %v1531, %v1804
        %v1806 = vpop.f32.mrb[0].mxu0
        %1807 = vmatprep.mubr.f32.mxu0 0.0
        %v1808 = vand.u32 %v309, 4294901760
        %1809 = vmatmul.mubr.f32.gmra.mrb[0].mxu0 %v1808
        %v1810 = vpop.f32.mrb[0].mxu0
        %v1811 = vadd.f32 %v1539, %v1810
        %v1812 = vpop.f32.mrb[0].mxu0
        %1813 = vmatprep.mubr.f32.mxu0 0.0
        %v1814 = vand.u32 %v312, 4294901760
        %1815 = vmatmul.mubr.f32.gmra.mrb[0].mxu0 %v1814
        %v1816 = vpop.f32.mrb[0].mxu0
        %v1817 = vadd.f32 %v1547, %v1816
        %v1818 = vpop.f32.mrb[0].mxu0
        %1819 = vmatprep.mubr.f32.mxu0 0.0
        %v1820 = vand.u32 %v315, 4294901760
        %1821 = vmatmul.mubr.f32.gmra.mrb[0].mxu0 %v1820
        %v1822 = vpop.f32.mrb[0].mxu0
        %v1823 = vadd.f32 %v1555, %v1822
        %v1824 = vpop.f32.mrb[0].mxu0
        %1825 = vmatprep.mubr.f32.mxu0 0.0
        %v1826 = vand.u32 %v318, 4294901760
        %1827 = vmatmul.mubr.f32.gmra.mrb[0].mxu0 %v1826
        %v1828 = vpop.f32.mrb[0].mxu0
        %v1829 = vadd.f32 %v1563, %v1828
        %v1830 = vpop.f32.mrb[0].mxu0
        %1831 = vmatprep.mubr.f32.mxu0 0.0
        %v1832 = vand.u32 %v321, 4294901760
        %1833 = vmatmul.mubr.f32.gmra.mrb[0].mxu0 %v1832
        %v1834 = vpop.f32.mrb[0].mxu0
        %v1835 = vadd.f32 %v1571, %v1834
        %v1836 = vpop.f32.mrb[0].mxu0
        %1837 = vmatprep.mubr.f32.mxu0 0.0
        %v1838 = vand.u32 %v324, 4294901760
        %1839 = vmatmul.mubr.f32.gmra.mrb[0].mxu0 %v1838
        %v1840 = vpop.f32.mrb[0].mxu0
        %v1841 = vadd.f32 %v1579, %v1840
        %v1842 = vpop.f32.mrb[0].mxu0
        %1843 = vmatprep.mubr.f32.mxu0 0.0
        %v1844 = vand.u32 %v327, 4294901760
        %1845 = vmatmul.mubr.f32.gmra.mrb[0].mxu0 %v1844
        %v1846 = vpop.f32.mrb[0].mxu0
        %v1847 = vadd.f32 %v1587, %v1846
        %v1848 = vpop.f32.mrb[0].mxu0
        %1849 = vdwg.mxu0
        %1850 = vmatprep.subr.mxu0 0.0
        %v1851 = vand.u32 %v231, 4294901760
        %1852 = vmatpush1.msra.mxu0 %v1851
        %1853 = vmatprep.subr.mxu0 0.0
        %1854 = vmatpush1.msra.mxu0 0.0
        %1855 = vmatprep.subr.mxu0 0.0
        %1856 = vmatpush1.msra.mxu0 0.0
        %1857 = vmatprep.subr.mxu0 0.0
        %1858 = vmatpush1.msra.mxu0 0.0
        %1859 = vmatprep.subr.mxu0 0.0
        %1860 = vmatpush1.msra.mxu0 0.0
        %1861 = vmatprep.subr.mxu0 0.0
        %1862 = vmatpush1.msra.mxu0 0.0
        %1863 = vmatprep.subr.mxu0 0.0
        %1864 = vmatpush1.msra.mxu0 0.0
        %1865 = vmatprep.subr.mxu0 0.0
        %1866 = vmatpush1.msra.mxu0 0.0
        %1867 = vmatprep.subr.mxu0 0.0
        %1868 = vmatpush1.msra.mxu0 0.0
        %1869 = vmatprep.subr.mxu0 0.0
        %1870 = vmatpush1.msra.mxu0 0.0
        %1871 = vmatprep.subr.mxu0 0.0
        %1872 = vmatpush1.msra.mxu0 0.0
        %1873 = vmatprep.subr.mxu0 0.0
        %1874 = vmatpush1.msra.mxu0 0.0
        %1875 = vmatprep.subr.mxu0 0.0
        %1876 = vmatpush1.msra.mxu0 0.0
        %1877 = vmatprep.subr.mxu0 0.0
        %1878 = vmatpush1.msra.mxu0 0.0
        %1879 = vmatprep.subr.mxu0 0.0
        %1880 = vmatpush1.msra.mxu0 0.0
        %1881 = vmatprep.subr.mxu0 0.0
        %1882 = vmatpush1.msra.mxu0 0.0
        %1883 = vmatprep.subr.mxu0 0.0
        %1884 = vmatpush1.msra.mxu0 0.0
        %1885 = vmatprep.subr.mxu0 0.0
        %1886 = vmatpush1.msra.mxu0 0.0
        %1887 = vmatprep.subr.mxu0 0.0
        %1888 = vmatpush1.msra.mxu0 0.0
        %1889 = vmatprep.subr.mxu0 0.0
        %1890 = vmatpush1.msra.mxu0 0.0
        %1891 = vmatprep.subr.mxu0 0.0
        %1892 = vmatpush1.msra.mxu0 0.0
        %1893 = vmatprep.subr.mxu0 0.0
        %1894 = vmatpush1.msra.mxu0 0.0
        %1895 = vmatprep.subr.mxu0 0.0
        %1896 = vmatpush1.msra.mxu0 0.0
        %1897 = vmatprep.subr.mxu0 0.0
        %1898 = vmatpush1.msra.mxu0 0.0
        %1899 = vmatprep.subr.mxu0 0.0
        %1900 = vmatpush1.msra.mxu0 0.0
        %1901 = vmatprep.subr.mxu0 0.0
        %1902 = vmatpush1.msra.mxu0 0.0
        %1903 = vmatprep.subr.mxu0 0.0
        %1904 = vmatpush1.msra.mxu0 0.0
        %1905 = vmatprep.subr.mxu0 0.0
        %1906 = vmatpush1.msra.mxu0 0.0
        %1907 = vmatprep.subr.mxu0 0.0
        %1908 = vmatpush1.msra.mxu0 0.0
        %1909 = vmatprep.subr.mxu0 0.0
        %1910 = vmatpush1.msra.mxu0 0.0
        %1911 = vmatprep.subr.mxu0 0.0
        %1912 = vmatpush1.msra.mxu0 0.0
        %1913 = vmatprep.subr.mxu0 0.0
        %1914 = vmatpush1.msra.mxu0 0.0
        %1915 = vmatprep.mubr.f32.mxu0 0.0
        %v1916 = vand.u32 %v234, 4294901760
        %1917 = vmatmul.mubr.f32.gmra.mrb[0].mxu0 %v1916
        %v1918 = vpop.f32.mrb[0].mxu0
        %v1919 = vadd.f32 %v1661, %v1918
        %v1920 = vpop.f32.mrb[0].mxu0
        %1921 = vmatprep.mubr.f32.mxu0 0.0
        %v1922 = vand.u32 %v237, 4294901760
        %1923 = vmatmul.mubr.f32.gmra.mrb[0].mxu0 %v1922
        %v1924 = vpop.f32.mrb[0].mxu0
        %v1925 = vadd.f32 %v1667, %v1924
        %v1926 = vpop.f32.mrb[0].mxu0
        %1927 = vmatprep.mubr.f32.mxu0 0.0
        %v1928 = vand.u32 %v240, 4294901760
        %1929 = vmatmul.mubr.f32.gmra.mrb[0].mxu0 %v1928
        %v1930 = vpop.f32.mrb[0].mxu0
        %v1931 = vadd.f32 %v1673, %v1930
        %v1932 = vpop.f32.mrb[0].mxu0
        %1933 = vmatprep.mubr.f32.mxu0 0.0
        %v1934 = vand.u32 %v243, 4294901760
        %1935 = vmatmul.mubr.f32.gmra.mrb[0].mxu0 %v1934
        %v1936 = vpop.f32.mrb[0].mxu0
        %v1937 = vadd.f32 %v1679, %v1936
        %v1938 = vpop.f32.mrb[0].mxu0
        %1939 = vmatprep.mubr.f32.mxu0 0.0
        %v1940 = vand.u32 %v246, 4294901760
        %1941 = vmatmul.mubr.f32.gmra.mrb[0].mxu0 %v1940
        %v1942 = vpop.f32.mrb[0].mxu0
        %v1943 = vadd.f32 %v1685, %v1942
        %v1944 = vpop.f32.mrb[0].mxu0
        %1945 = vmatprep.mubr.f32.mxu0 0.0
        %v1946 = vand.u32 %v249, 4294901760
        %1947 = vmatmul.mubr.f32.gmra.mrb[0].mxu0 %v1946
        %v1948 = vpop.f32.mrb[0].mxu0
        %v1949 = vadd.f32 %v1691, %v1948
        %v1950 = vpop.f32.mrb[0].mxu0
        %1951 = vmatprep.mubr.f32.mxu0 0.0
        %v1952 = vand.u32 %v252, 4294901760
        %1953 = vmatmul.mubr.f32.gmra.mrb[0].mxu0 %v1952
        %v1954 = vpop.f32.mrb[0].mxu0
        %v1955 = vadd.f32 %v1697, %v1954
        %v1956 = vpop.f32.mrb[0].mxu0
        %1957 = vmatprep.mubr.f32.mxu0 0.0
        %v1958 = vand.u32 %v255, 4294901760
        %1959 = vmatmul.mubr.f32.gmra.mrb[0].mxu0 %v1958
        %v1960 = vpop.f32.mrb[0].mxu0
        %v1961 = vadd.f32 %v1703, %v1960
        %v1962 = vpop.f32.mrb[0].mxu0
        %1963 = vmatprep.mubr.f32.mxu0 0.0
        %v1964 = vand.u32 %v258, 4294901760
        %1965 = vmatmul.mubr.f32.gmra.mrb[0].mxu0 %v1964
        %v1966 = vpop.f32.mrb[0].mxu0
        %v1967 = vadd.f32 %v1709, %v1966
        %v1968 = vpop.f32.mrb[0].mxu0
        %1969 = vmatprep.mubr.f32.mxu0 0.0
        %v1970 = vand.u32 %v261, 4294901760
        %1971 = vmatmul.mubr.f32.gmra.mrb[0].mxu0 %v1970
        %v1972 = vpop.f32.mrb[0].mxu0
        %v1973 = vadd.f32 %v1715, %v1972
        %v1974 = vpop.f32.mrb[0].mxu0
        %1975 = vmatprep.mubr.f32.mxu0 0.0
        %v1976 = vand.u32 %v264, 4294901760
        %1977 = vmatmul.mubr.f32.gmra.mrb[0].mxu0 %v1976
        %v1978 = vpop.f32.mrb[0].mxu0
        %v1979 = vadd.f32 %v1721, %v1978
        %v1980 = vpop.f32.mrb[0].mxu0
        %1981 = vmatprep.mubr.f32.mxu0 0.0
        %v1982 = vand.u32 %v267, 4294901760
        %1983 = vmatmul.mubr.f32.gmra.mrb[0].mxu0 %v1982
        %v1984 = vpop.f32.mrb[0].mxu0
        %v1985 = vadd.f32 %v1727, %v1984
        %v1986 = vpop.f32.mrb[0].mxu0
        %1987 = vmatprep.mubr.f32.mxu0 0.0
        %v1988 = vand.u32 %v270, 4294901760
        %1989 = vmatmul.mubr.f32.gmra.mrb[0].mxu0 %v1988
        %v1990 = vpop.f32.mrb[0].mxu0
        %v1991 = vadd.f32 %v1733, %v1990
        %v1992 = vpop.f32.mrb[0].mxu0
        %1993 = vmatprep.mubr.f32.mxu0 0.0
        %v1994 = vand.u32 %v273, 4294901760
        %1995 = vmatmul.mubr.f32.gmra.mrb[0].mxu0 %v1994
        %v1996 = vpop.f32.mrb[0].mxu0
        %v1997 = vadd.f32 %v1739, %v1996
        %v1998 = vpop.f32.mrb[0].mxu0
        %1999 = vmatprep.mubr.f32.mxu0 0.0
        %v2000 = vand.u32 %v276, 4294901760
        %2001 = vmatmul.mubr.f32.gmra.mrb[0].mxu0 %v2000
        %v2002 = vpop.f32.mrb[0].mxu0
        %v2003 = vadd.f32 %v1745, %v2002
        %v2004 = vpop.f32.mrb[0].mxu0
        %2005 = vmatprep.mubr.f32.mxu0 0.0
        %v2006 = vand.u32 %v279, 4294901760
        %2007 = vmatmul.mubr.f32.gmra.mrb[0].mxu0 %v2006
        %v2008 = vpop.f32.mrb[0].mxu0
        %v2009 = vadd.f32 %v1751, %v2008
        %v2010 = vpop.f32.mrb[0].mxu0
        %2011 = vmatprep.mubr.f32.mxu0 0.0
        %v2012 = vand.u32 %v282, 4294901760
        %2013 = vmatmul.mubr.f32.gmra.mrb[0].mxu0 %v2012
        %v2014 = vpop.f32.mrb[0].mxu0
        %v2015 = vadd.f32 %v1757, %v2014
        %v2016 = vpop.f32.mrb[0].mxu0
        %2017 = vmatprep.mubr.f32.mxu0 0.0
        %v2018 = vand.u32 %v285, 4294901760
        %2019 = vmatmul.mubr.f32.gmra.mrb[0].mxu0 %v2018
        %v2020 = vpop.f32.mrb[0].mxu0
        %v2021 = vadd.f32 %v1763, %v2020
        %v2022 = vpop.f32.mrb[0].mxu0
        %2023 = vmatprep.mubr.f32.mxu0 0.0
        %v2024 = vand.u32 %v288, 4294901760
        %2025 = vmatmul.mubr.f32.gmra.mrb[0].mxu0 %v2024
        %v2026 = vpop.f32.mrb[0].mxu0
        %v2027 = vadd.f32 %v1769, %v2026
        %v2028 = vpop.f32.mrb[0].mxu0
        %2029 = vmatprep.mubr.f32.mxu0 0.0
        %v2030 = vand.u32 %v291, 4294901760
        %2031 = vmatmul.mubr.f32.gmra.mrb[0].mxu0 %v2030
        %v2032 = vpop.f32.mrb[0].mxu0
        %v2033 = vadd.f32 %v1775, %v2032
        %v2034 = vpop.f32.mrb[0].mxu0
        %2035 = vmatprep.mubr.f32.mxu0 0.0
        %v2036 = vand.u32 %v294, 4294901760
        %2037 = vmatmul.mubr.f32.gmra.mrb[0].mxu0 %v2036
        %v2038 = vpop.f32.mrb[0].mxu0
        %v2039 = vadd.f32 %v1781, %v2038
        %v2040 = vpop.f32.mrb[0].mxu0
        %2041 = vmatprep.mubr.f32.mxu0 0.0
        %v2042 = vand.u32 %v297, 4294901760
        %2043 = vmatmul.mubr.f32.gmra.mrb[0].mxu0 %v2042
        %v2044 = vpop.f32.mrb[0].mxu0
        %v2045 = vadd.f32 %v1787, %v2044
        %v2046 = vpop.f32.mrb[0].mxu0
        %2047 = vmatprep.mubr.f32.mxu0 0.0
        %v2048 = vand.u32 %v300, 4294901760
        %2049 = vmatmul.mubr.f32.gmra.mrb[0].mxu0 %v2048
        %v2050 = vpop.f32.mrb[0].mxu0
        %v2051 = vadd.f32 %v1793, %v2050
        %v2052 = vpop.f32.mrb[0].mxu0
        %2053 = vmatprep.mubr.f32.mxu0 0.0
        %v2054 = vand.u32 %v303, 4294901760
        %2055 = vmatmul.mubr.f32.gmra.mrb[0].mxu0 %v2054
        %v2056 = vpop.f32.mrb[0].mxu0
        %v2057 = vadd.f32 %v1799, %v2056
        %v2058 = vpop.f32.mrb[0].mxu0
        %2059 = vmatprep.mubr.f32.mxu0 0.0
        %v2060 = vand.u32 %v306, 4294901760
        %2061 = vmatmul.mubr.f32.gmra.mrb[0].mxu0 %v2060
        %v2062 = vpop.f32.mrb[0].mxu0
        %v2063 = vadd.f32 %v1805, %v2062
        %v2064 = vpop.f32.mrb[0].mxu0
        %2065 = vmatprep.mubr.f32.mxu0 0.0
        %v2066 = vand.u32 %v309, 4294901760
        %2067 = vmatmul.mubr.f32.gmra.mrb[0].mxu0 %v2066
        %v2068 = vpop.f32.mrb[0].mxu0
        %v2069 = vadd.f32 %v1811, %v2068
        %v2070 = vpop.f32.mrb[0].mxu0
        %2071 = vmatprep.mubr.f32.mxu0 0.0
        %v2072 = vand.u32 %v312, 4294901760
        %2073 = vmatmul.mubr.f32.gmra.mrb[0].mxu0 %v2072
        %v2074 = vpop.f32.mrb[0].mxu0
        %v2075 = vadd.f32 %v1817, %v2074
        %v2076 = vpop.f32.mrb[0].mxu0
        %2077 = vmatprep.mubr.f32.mxu0 0.0
        %v2078 = vand.u32 %v315, 4294901760
        %2079 = vmatmul.mubr.f32.gmra.mrb[0].mxu0 %v2078
        %v2080 = vpop.f32.mrb[0].mxu0
        %v2081 = vadd.f32 %v1823, %v2080
        %v2082 = vpop.f32.mrb[0].mxu0
        %2083 = vmatprep.mubr.f32.mxu0 0.0
        %v2084 = vand.u32 %v318, 4294901760
        %2085 = vmatmul.mubr.f32.gmra.mrb[0].mxu0 %v2084
        %v2086 = vpop.f32.mrb[0].mxu0
        %v2087 = vadd.f32 %v1829, %v2086
        %v2088 = vpop.f32.mrb[0].mxu0
        %2089 = vmatprep.mubr.f32.mxu0 0.0
        %v2090 = vand.u32 %v321, 4294901760
        %2091 = vmatmul.mubr.f32.gmra.mrb[0].mxu0 %v2090
        %v2092 = vpop.f32.mrb[0].mxu0
        %v2093 = vadd.f32 %v1835, %v2092
        %v2094 = vpop.f32.mrb[0].mxu0
        %2095 = vmatprep.mubr.f32.mxu0 0.0
        %v2096 = vand.u32 %v324, 4294901760
        %2097 = vmatmul.mubr.f32.gmra.mrb[0].mxu0 %v2096
        %v2098 = vpop.f32.mrb[0].mxu0
        %v2099 = vadd.f32 %v1841, %v2098
        %v2100 = vpop.f32.mrb[0].mxu0
        %2101 = vmatprep.mubr.f32.mxu0 0.0
        %v2102 = vand.u32 %v327, 4294901760
        %2103 = vmatmul.mubr.f32.gmra.mrb[0].mxu0 %v2102
        %v2104 = vpop.f32.mrb[0].mxu0
        %v2105 = vadd.f32 %v1847, %v2104
        %v2106 = vpop.f32.mrb[0].mxu0
        %2107 = vdwg.mxu0
        %v2108 = vrot.slane %v1919, 4
        %v2109 = vmax.f32 %v1919, %v2108
        %v2110 = vrot.slane %v2109, 2
        %v2111 = vmax.f32 %v2109, %v2110
        %v2112 = vrot.slane %v2111, 1
        %v2113 = vmax.f32 %v2111, %v2112
        %v2114 = vrot.slane %v1925, 4
        %v2115 = vmax.f32 %v1925, %v2114
        %v2116 = vrot.slane %v2115, 2
        %v2117 = vmax.f32 %v2115, %v2116
        %v2118 = vrot.slane %v2117, 1
        %v2119 = vmax.f32 %v2117, %v2118
        %v2120 = vrot.slane %v1931, 4
        %v2121 = vmax.f32 %v1931, %v2120
        %v2122 = vrot.slane %v2121, 2
        %v2123 = vmax.f32 %v2121, %v2122
        %v2124 = vrot.slane %v2123, 1
        %v2125 = vmax.f32 %v2123, %v2124
        %v2126 = vrot.slane %v1937, 4
        %v2127 = vmax.f32 %v1937, %v2126
        %v2128 = vrot.slane %v2127, 2
        %v2129 = vmax.f32 %v2127, %v2128
        %v2130 = vrot.slane %v2129, 1
        %v2131 = vmax.f32 %v2129, %v2130
        %v2132 = vrot.slane %v1943, 4
        %v2133 = vmax.f32 %v1943, %v2132
        %v2134 = vrot.slane %v2133, 2
        %v2135 = vmax.f32 %v2133, %v2134
        %v2136 = vrot.slane %v2135, 1
        %v2137 = vmax.f32 %v2135, %v2136
        %v2138 = vrot.slane %v1949, 4
        %v2139 = vmax.f32 %v1949, %v2138
        %v2140 = vrot.slane %v2139, 2
        %v2141 = vmax.f32 %v2139, %v2140
        %v2142 = vrot.slane %v2141, 1
        %v2143 = vmax.f32 %v2141, %v2142
        %v2144 = vrot.slane %v1955, 4
        %v2145 = vmax.f32 %v1955, %v2144
        %v2146 = vrot.slane %v2145, 2
        %v2147 = vmax.f32 %v2145, %v2146
        %v2148 = vrot.slane %v2147, 1
        %v2149 = vmax.f32 %v2147, %v2148
        %v2150 = vrot.slane %v1961, 4
        %v2151 = vmax.f32 %v1961, %v2150
        %v2152 = vrot.slane %v2151, 2
        %v2153 = vmax.f32 %v2151, %v2152
        %v2154 = vrot.slane %v2153, 1
        %v2155 = vmax.f32 %v2153, %v2154
        %v2156 = vrot.slane %v1967, 4
        %v2157 = vmax.f32 %v1967, %v2156
        %v2158 = vrot.slane %v2157, 2
        %v2159 = vmax.f32 %v2157, %v2158
        %v2160 = vrot.slane %v2159, 1
        %v2161 = vmax.f32 %v2159, %v2160
        %v2162 = vrot.slane %v1973, 4
        %v2163 = vmax.f32 %v1973, %v2162
        %v2164 = vrot.slane %v2163, 2
        %v2165 = vmax.f32 %v2163, %v2164
        %v2166 = vrot.slane %v2165, 1
        %v2167 = vmax.f32 %v2165, %v2166
        %v2168 = vrot.slane %v1979, 4
        %v2169 = vmax.f32 %v1979, %v2168
        %v2170 = vrot.slane %v2169, 2
        %v2171 = vmax.f32 %v2169, %v2170
        %v2172 = vrot.slane %v2171, 1
        %v2173 = vmax.f32 %v2171, %v2172
        %v2174 = vrot.slane %v1985, 4
        %v2175 = vmax.f32 %v1985, %v2174
        %v2176 = vrot.slane %v2175, 2
        %v2177 = vmax.f32 %v2175, %v2176
        %v2178 = vrot.slane %v2177, 1
        %v2179 = vmax.f32 %v2177, %v2178
        %v2180 = vrot.slane %v1991, 4
        %v2181 = vmax.f32 %v1991, %v2180
        %v2182 = vrot.slane %v2181, 2
        %v2183 = vmax.f32 %v2181, %v2182
        %v2184 = vrot.slane %v2183, 1
        %v2185 = vmax.f32 %v2183, %v2184
        %v2186 = vrot.slane %v1997, 4
        %v2187 = vmax.f32 %v1997, %v2186
        %v2188 = vrot.slane %v2187, 2
        %v2189 = vmax.f32 %v2187, %v2188
        %v2190 = vrot.slane %v2189, 1
        %v2191 = vmax.f32 %v2189, %v2190
        %v2192 = vrot.slane %v2003, 4
        %v2193 = vmax.f32 %v2003, %v2192
        %v2194 = vrot.slane %v2193, 2
        %v2195 = vmax.f32 %v2193, %v2194
        %v2196 = vrot.slane %v2195, 1
        %v2197 = vmax.f32 %v2195, %v2196
        %v2198 = vrot.slane %v2009, 4
        %v2199 = vmax.f32 %v2009, %v2198
        %v2200 = vrot.slane %v2199, 2
        %v2201 = vmax.f32 %v2199, %v2200
        %v2202 = vrot.slane %v2201, 1
        %v2203 = vmax.f32 %v2201, %v2202
        %v2204 = vrot.slane %v2015, 4
        %v2205 = vmax.f32 %v2015, %v2204
        %v2206 = vrot.slane %v2205, 2
        %v2207 = vmax.f32 %v2205, %v2206
        %v2208 = vrot.slane %v2207, 1
        %v2209 = vmax.f32 %v2207, %v2208
        %v2210 = vrot.slane %v2021, 4
        %v2211 = vmax.f32 %v2021, %v2210
        %v2212 = vrot.slane %v2211, 2
        %v2213 = vmax.f32 %v2211, %v2212
        %v2214 = vrot.slane %v2213, 1
        %v2215 = vmax.f32 %v2213, %v2214
        %v2216 = vrot.slane %v2027, 4
        %v2217 = vmax.f32 %v2027, %v2216
        %v2218 = vrot.slane %v2217, 2
        %v2219 = vmax.f32 %v2217, %v2218
        %v2220 = vrot.slane %v2219, 1
        %v2221 = vmax.f32 %v2219, %v2220
        %v2222 = vrot.slane %v2033, 4
        %v2223 = vmax.f32 %v2033, %v2222
        %v2224 = vrot.slane %v2223, 2
        %v2225 = vmax.f32 %v2223, %v2224
        %v2226 = vrot.slane %v2225, 1
        %v2227 = vmax.f32 %v2225, %v2226
        %v2228 = vrot.slane %v2039, 4
        %v2229 = vmax.f32 %v2039, %v2228
        %v2230 = vrot.slane %v2229, 2
        %v2231 = vmax.f32 %v2229, %v2230
        %v2232 = vrot.slane %v2231, 1
        %v2233 = vmax.f32 %v2231, %v2232
        %v2234 = vrot.slane %v2045, 4
        %v2235 = vmax.f32 %v2045, %v2234
        %v2236 = vrot.slane %v2235, 2
        %v2237 = vmax.f32 %v2235, %v2236
        %v2238 = vrot.slane %v2237, 1
        %v2239 = vmax.f32 %v2237, %v2238
        %v2240 = vrot.slane %v2051, 4
        %v2241 = vmax.f32 %v2051, %v2240
        %v2242 = vrot.slane %v2241, 2
        %v2243 = vmax.f32 %v2241, %v2242
        %v2244 = vrot.slane %v2243, 1
        %v2245 = vmax.f32 %v2243, %v2244
        %v2246 = vrot.slane %v2057, 4
        %v2247 = vmax.f32 %v2057, %v2246
        %v2248 = vrot.slane %v2247, 2
        %v2249 = vmax.f32 %v2247, %v2248
        %v2250 = vrot.slane %v2249, 1
        %v2251 = vmax.f32 %v2249, %v2250
        %v2252 = vrot.slane %v2063, 4
        %v2253 = vmax.f32 %v2063, %v2252
        %v2254 = vrot.slane %v2253, 2
        %v2255 = vmax.f32 %v2253, %v2254
        %v2256 = vrot.slane %v2255, 1
        %v2257 = vmax.f32 %v2255, %v2256
        %v2258 = vrot.slane %v2069, 4
        %v2259 = vmax.f32 %v2069, %v2258
        %v2260 = vrot.slane %v2259, 2
        %v2261 = vmax.f32 %v2259, %v2260
        %v2262 = vrot.slane %v2261, 1
        %v2263 = vmax.f32 %v2261, %v2262
        %v2264 = vrot.slane %v2075, 4
        %v2265 = vmax.f32 %v2075, %v2264
        %v2266 = vrot.slane %v2265, 2
        %v2267 = vmax.f32 %v2265, %v2266
        %v2268 = vrot.slane %v2267, 1
        %v2269 = vmax.f32 %v2267, %v2268
        %v2270 = vrot.slane %v2081, 4
        %v2271 = vmax.f32 %v2081, %v2270
        %v2272 = vrot.slane %v2271, 2
        %v2273 = vmax.f32 %v2271, %v2272
        %v2274 = vrot.slane %v2273, 1
        %v2275 = vmax.f32 %v2273, %v2274
        %v2276 = vrot.slane %v2087, 4
        %v2277 = vmax.f32 %v2087, %v2276
        %v2278 = vrot.slane %v2277, 2
        %v2279 = vmax.f32 %v2277, %v2278
        %v2280 = vrot.slane %v2279, 1
        %v2281 = vmax.f32 %v2279, %v2280
        %v2282 = vrot.slane %v2093, 4
        %v2283 = vmax.f32 %v2093, %v2282
        %v2284 = vrot.slane %v2283, 2
        %v2285 = vmax.f32 %v2283, %v2284
        %v2286 = vrot.slane %v2285, 1
        %v2287 = vmax.f32 %v2285, %v2286
        %v2288 = vrot.slane %v2099, 4
        %v2289 = vmax.f32 %v2099, %v2288
        %v2290 = vrot.slane %v2289, 2
        %v2291 = vmax.f32 %v2289, %v2290
        %v2292 = vrot.slane %v2291, 1
        %v2293 = vmax.f32 %v2291, %v2292
        %v2294 = vrot.slane %v2105, 4
        %v2295 = vmax.f32 %v2105, %v2294
        %v2296 = vrot.slane %v2295, 2
        %v2297 = vmax.f32 %v2295, %v2296
        %v2298 = vrot.slane %v2297, 1
        %v2299 = vmax.f32 %v2297, %v2298
        %v2300 = vld [vmem:[%s1 + $0x4] sm:$0x1]
        %v2301 = vsub.f32 %v2113, %v1919
        %v2302 = vsub.f32 %v2119, %v1925
        %v2303 = vsub.f32 %v2125, %v1931
        %v2304 = vsub.f32 %v2131, %v1937
        %v2305 = vsub.f32 %v2137, %v1943
        %v2306 = vsub.f32 %v2143, %v1949
        %v2307 = vsub.f32 %v2149, %v1955
        %v2308 = vsub.f32 %v2155, %v1961
        %v2309 = vsub.f32 %v2161, %v1967
        %v2310 = vsub.f32 %v2167, %v1973
        %v2311 = vsub.f32 %v2173, %v1979
        %v2312 = vsub.f32 %v2179, %v1985
        %v2313 = vsub.f32 %v2185, %v1991
        %v2314 = vsub.f32 %v2191, %v1997
        %v2315 = vsub.f32 %v2197, %v2003
        %v2316 = vsub.f32 %v2203, %v2009
        %v2317 = vsub.f32 %v2209, %v2015
        %v2318 = vsub.f32 %v2215, %v2021
        %v2319 = vsub.f32 %v2221, %v2027
        %v2320 = vsub.f32 %v2227, %v2033
        %v2321 = vsub.f32 %v2233, %v2039
        %v2322 = vsub.f32 %v2239, %v2045
        %v2323 = vsub.f32 %v2245, %v2051
        %v2324 = vsub.f32 %v2251, %v2057
        %v2325 = vsub.f32 %v2257, %v2063
        %v2326 = vsub.f32 %v2263, %v2069
        %v2327 = vsub.f32 %v2269, %v2075
        %v2328 = vsub.f32 %v2275, %v2081
        %v2329 = vsub.f32 %v2281, %v2087
        %v2330 = vsub.f32 %v2287, %v2093
        %v2331 = vsub.f32 %v2293, %v2099
        %v2332 = vsub.f32 %v2299, %v2105
        %v2333 = vlaneseq
        %v2334 = vshrl.u32 %v2333, 7
        %v2335 = vsub.s32 0, %v2334
        %v2336 = vrot.slane %v2300, %v2335
        %v2337 = vadd.f32 %v2301, %v2336
        %v2338 = vadd.f32 %v2302, %v2336
        %v2339 = vadd.f32 %v2303, %v2336
        %v2340 = vadd.f32 %v2304, %v2336
        %v2341 = vadd.f32 %v2305, %v2336
        %v2342 = vadd.f32 %v2306, %v2336
        %v2343 = vadd.f32 %v2307, %v2336
        %v2344 = vadd.f32 %v2308, %v2336
        %v2345 = vadd.f32 %v2309, %v2336
        %v2346 = vadd.f32 %v2310, %v2336
        %v2347 = vadd.f32 %v2311, %v2336
        %v2348 = vadd.f32 %v2312, %v2336
        %v2349 = vadd.f32 %v2313, %v2336
        %v2350 = vadd.f32 %v2314, %v2336
        %v2351 = vadd.f32 %v2315, %v2336
        %v2352 = vadd.f32 %v2316, %v2336
        %v2353 = vadd.f32 %v2317, %v2336
        %v2354 = vadd.f32 %v2318, %v2336
        %v2355 = vadd.f32 %v2319, %v2336
        %v2356 = vadd.f32 %v2320, %v2336
        %v2357 = vadd.f32 %v2321, %v2336
        %v2358 = vadd.f32 %v2322, %v2336
        %v2359 = vadd.f32 %v2323, %v2336
        %v2360 = vadd.f32 %v2324, %v2336
        %v2361 = vadd.f32 %v2325, %v2336
        %v2362 = vadd.f32 %v2326, %v2336
        %v2363 = vadd.f32 %v2327, %v2336
        %v2364 = vadd.f32 %v2328, %v2336
        %v2365 = vadd.f32 %v2329, %v2336
        %v2366 = vadd.f32 %v2330, %v2336
        %v2367 = vadd.f32 %v2331, %v2336
        %v2368 = vadd.f32 %v2332, %v2336
        %v2369 = vmax.f32 %v2337, 0.0
        %v2370 = vmax.f32 %v2338, 0.0
        %v2371 = vmax.f32 %v2339, 0.0
        %v2372 = vmax.f32 %v2340, 0.0
        %v2373 = vmax.f32 %v2341, 0.0
        %v2374 = vmax.f32 %v2342, 0.0
        %v2375 = vmax.f32 %v2343, 0.0
        %v2376 = vmax.f32 %v2344, 0.0
        %v2377 = vmax.f32 %v2345, 0.0
        %v2378 = vmax.f32 %v2346, 0.0
        %v2379 = vmax.f32 %v2347, 0.0
        %v2380 = vmax.f32 %v2348, 0.0
        %v2381 = vmax.f32 %v2349, 0.0
        %v2382 = vmax.f32 %v2350, 0.0
        %v2383 = vmax.f32 %v2351, 0.0
        %v2384 = vmax.f32 %v2352, 0.0
        %v2385 = vmax.f32 %v2353, 0.0
        %v2386 = vmax.f32 %v2354, 0.0
        %v2387 = vmax.f32 %v2355, 0.0
        %v2388 = vmax.f32 %v2356, 0.0
        %v2389 = vmax.f32 %v2357, 0.0
        %v2390 = vmax.f32 %v2358, 0.0
        %v2391 = vmax.f32 %v2359, 0.0
        %v2392 = vmax.f32 %v2360, 0.0
        %v2393 = vmax.f32 %v2361, 0.0
        %v2394 = vmax.f32 %v2362, 0.0
        %v2395 = vmax.f32 %v2363, 0.0
        %v2396 = vmax.f32 %v2364, 0.0
        %v2397 = vmax.f32 %v2365, 0.0
        %v2398 = vmax.f32 %v2366, 0.0
        %v2399 = vmax.f32 %v2367, 0.0
        %v2400 = vmax.f32 %v2368, 0.0
        %v2401 = vld [vmem:[%s2] sm:$0xff]
        %v2402 = vld [vmem:[%s2 + $0x8] sm:$0xff]
        %v2403 = vld [vmem:[%s2 + $0x10] sm:$0xff]
        %v2404 = vld [vmem:[%s2 + $0x18] sm:$0xff]
        %v2405 = vld [vmem:[%s2 + $0x20] sm:$0xff]
        %v2406 = vld [vmem:[%s2 + $0x28] sm:$0xff]
        %v2407 = vld [vmem:[%s2 + $0x30] sm:$0xff]
        %v2408 = vld [vmem:[%s2 + $0x38] sm:$0xff]
        %v2409 = vld [vmem:[%s2 + $0x40] sm:$0xff]
        %v2410 = vld [vmem:[%s2 + $0x48] sm:$0xff]
        %v2411 = vld [vmem:[%s2 + $0x50] sm:$0xff]
        %v2412 = vld [vmem:[%s2 + $0x58] sm:$0xff]
        %v2413 = vld [vmem:[%s2 + $0x60] sm:$0xff]
        %v2414 = vld [vmem:[%s2 + $0x68] sm:$0xff]
        %v2415 = vld [vmem:[%s2 + $0x70] sm:$0xff]
        %v2416 = vld [vmem:[%s2 + $0x78] sm:$0xff]
        %v2417 = vld [vmem:[%s3] sm:$0x1]
        %v2419 = vlaneseq
        %v2420 = vshrl.u32 %v2419, 7
        %v2421 = vsub.s32 0, %v2420
        %v2422 = vrot.slane %v2417, %v2421
        %2424 = vmatprep.subr.mxu0 0.0
        %v2425 = vand.u32 %v2401, 4294901760
        %2426 = vmatpush1.msra.mxu0 %v2425
        %2427 = vmatprep.subr.mxu0 0.0
        %v2428 = vand.u32 %v2402, 4294901760
        %2429 = vmatpush1.msra.mxu0 %v2428
        %2430 = vmatprep.subr.mxu0 0.0
        %v2431 = vand.u32 %v2403, 4294901760
        %2432 = vmatpush1.msra.mxu0 %v2431
        %2433 = vmatprep.subr.mxu0 0.0
        %v2434 = vand.u32 %v2404, 4294901760
        %2435 = vmatpush1.msra.mxu0 %v2434
        %2436 = vmatprep.subr.mxu0 0.0
        %v2437 = vand.u32 %v2405, 4294901760
        %2438 = vmatpush1.msra.mxu0 %v2437
        %2439 = vmatprep.subr.mxu0 0.0
        %v2440 = vand.u32 %v2406, 4294901760
        %2441 = vmatpush1.msra.mxu0 %v2440
        %2442 = vmatprep.subr.mxu0 0.0
        %v2443 = vand.u32 %v2407, 4294901760
        %2444 = vmatpush1.msra.mxu0 %v2443
        %2445 = vmatprep.subr.mxu0 0.0
        %v2446 = vand.u32 %v2408, 4294901760
        %2447 = vmatpush1.msra.mxu0 %v2446
        %2448 = vmatprep.subr.mxu0 0.0
        %v2449 = vand.u32 %v2409, 4294901760
        %2450 = vmatpush1.msra.mxu0 %v2449
        %2451 = vmatprep.subr.mxu0 0.0
        %v2452 = vand.u32 %v2410, 4294901760
        %2453 = vmatpush1.msra.mxu0 %v2452
        %2454 = vmatprep.subr.mxu0 0.0
        %v2455 = vand.u32 %v2411, 4294901760
        %2456 = vmatpush1.msra.mxu0 %v2455
        %2457 = vmatprep.subr.mxu0 0.0
        %v2458 = vand.u32 %v2412, 4294901760
        %2459 = vmatpush1.msra.mxu0 %v2458
        %2460 = vmatprep.subr.mxu0 0.0
        %v2461 = vand.u32 %v2413, 4294901760
        %2462 = vmatpush1.msra.mxu0 %v2461
        %2463 = vmatprep.subr.mxu0 0.0
        %v2464 = vand.u32 %v2414, 4294901760
        %2465 = vmatpush1.msra.mxu0 %v2464
        %2466 = vmatprep.subr.mxu0 0.0
        %v2467 = vand.u32 %v2415, 4294901760
        %2468 = vmatpush1.msra.mxu0 %v2467
        %2469 = vmatprep.subr.mxu0 0.0
        %v2470 = vand.u32 %v2416, 4294901760
        %2471 = vmatpush1.msra.mxu0 %v2470
        %2472 = vmatprep.subr.mxu0 0.0
        %2473 = vmatpush1.msra.mxu0 0.0
        %2474 = vmatprep.subr.mxu0 0.0
        %2475 = vmatpush1.msra.mxu0 0.0
        %2476 = vmatprep.subr.mxu0 0.0
        %2477 = vmatpush1.msra.mxu0 0.0
        %2478 = vmatprep.subr.mxu0 0.0
        %2479 = vmatpush1.msra.mxu0 0.0
        %2480 = vmatprep.subr.mxu0 0.0
        %2481 = vmatpush1.msra.mxu0 0.0
        %2482 = vmatprep.subr.mxu0 0.0
        %2483 = vmatpush1.msra.mxu0 0.0
        %2484 = vmatprep.subr.mxu0 0.0
        %2485 = vmatpush1.msra.mxu0 0.0
        %2486 = vmatprep.subr.mxu0 0.0
        %2487 = vmatpush1.msra.mxu0 0.0
        %2488 = vmatprep.subr.mxu0 0.0
        %2489 = vmatpush1.msra.mxu0 0.0
        %2490 = vmatprep.subr.mxu0 0.0
        %2491 = vmatpush1.msra.mxu0 0.0
        %2492 = vmatprep.subr.mxu0 0.0
        %2493 = vmatpush1.msra.mxu0 0.0
        %2494 = vmatprep.subr.mxu0 0.0
        %2495 = vmatpush1.msra.mxu0 0.0
        %2496 = vmatprep.subr.mxu0 0.0
        %2497 = vmatpush1.msra.mxu0 0.0
        %2498 = vmatprep.subr.mxu0 0.0
        %2499 = vmatpush1.msra.mxu0 0.0
        %2500 = vmatprep.subr.mxu0 0.0
        %2501 = vmatpush1.msra.mxu0 0.0
        %2502 = vmatprep.subr.mxu0 0.0
        %2503 = vmatpush1.msra.mxu0 0.0
        %2504 = vmatprep.mubr.f32.mxu0 0.0
        %v2505 = vand.u32 %v2369, 4294901760
        %v2506 = vsub.f32 %v2369, %v2505
        %v2507 = vand.u32 %v2506, 4294901760
        %v2508 = vsub.f32 %v2506, %v2507
        %v2509 = vand.u32 %v2508, 4294901760
        %2510 = vmatmul.mubr.f32.gmra.mrb[0].mxu0 %v2509
        %v2511 = vpop.f32.mrb[0].mxu0
        %v2512 = vadd.f32 %v2422, %v2511
        %v2513 = vpop.f32.mrb[0].mxu0
        %2514 = vmatprep.mubr.f32.mxu0 0.0
        %v2515 = vand.u32 %v2370, 4294901760
        %v2516 = vsub.f32 %v2370, %v2515
        %v2517 = vand.u32 %v2516, 4294901760
        %v2518 = vsub.f32 %v2516, %v2517
        %v2519 = vand.u32 %v2518, 4294901760
        %2520 = vmatmul.mubr.f32.gmra.mrb[0].mxu0 %v2519
        %v2521 = vpop.f32.mrb[0].mxu0
        %v2522 = vadd.f32 %v2422, %v2521
        %v2523 = vpop.f32.mrb[0].mxu0
        %2524 = vmatprep.mubr.f32.mxu0 0.0
        %v2525 = vand.u32 %v2371, 4294901760
        %v2526 = vsub.f32 %v2371, %v2525
        %v2527 = vand.u32 %v2526, 4294901760
        %v2528 = vsub.f32 %v2526, %v2527
        %v2529 = vand.u32 %v2528, 4294901760
        %2530 = vmatmul.mubr.f32.gmra.mrb[0].mxu0 %v2529
        %v2531 = vpop.f32.mrb[0].mxu0
        %v2532 = vadd.f32 %v2422, %v2531
        %v2533 = vpop.f32.mrb[0].mxu0
        %2534 = vmatprep.mubr.f32.mxu0 0.0
        %v2535 = vand.u32 %v2372, 4294901760
        %v2536 = vsub.f32 %v2372, %v2535
        %v2537 = vand.u32 %v2536, 4294901760
        %v2538 = vsub.f32 %v2536, %v2537
        %v2539 = vand.u32 %v2538, 4294901760
        %2540 = vmatmul.mubr.f32.gmra.mrb[0].mxu0 %v2539
        %v2541 = vpop.f32.mrb[0].mxu0
        %v2542 = vadd.f32 %v2422, %v2541
        %v2543 = vpop.f32.mrb[0].mxu0
        %2544 = vmatprep.mubr.f32.mxu0 0.0
        %v2545 = vand.u32 %v2373, 4294901760
        %v2546 = vsub.f32 %v2373, %v2545
        %v2547 = vand.u32 %v2546, 4294901760
        %v2548 = vsub.f32 %v2546, %v2547
        %v2549 = vand.u32 %v2548, 4294901760
        %2550 = vmatmul.mubr.f32.gmra.mrb[0].mxu0 %v2549
        %v2551 = vpop.f32.mrb[0].mxu0
        %v2552 = vadd.f32 %v2422, %v2551
        %v2553 = vpop.f32.mrb[0].mxu0
        %2554 = vmatprep.mubr.f32.mxu0 0.0
        %v2555 = vand.u32 %v2374, 4294901760
        %v2556 = vsub.f32 %v2374, %v2555
        %v2557 = vand.u32 %v2556, 4294901760
        %v2558 = vsub.f32 %v2556, %v2557
        %v2559 = vand.u32 %v2558, 4294901760
        %2560 = vmatmul.mubr.f32.gmra.mrb[0].mxu0 %v2559
        %v2561 = vpop.f32.mrb[0].mxu0
        %v2562 = vadd.f32 %v2422, %v2561
        %v2563 = vpop.f32.mrb[0].mxu0
        %2564 = vmatprep.mubr.f32.mxu0 0.0
        %v2565 = vand.u32 %v2375, 4294901760
        %v2566 = vsub.f32 %v2375, %v2565
        %v2567 = vand.u32 %v2566, 4294901760
        %v2568 = vsub.f32 %v2566, %v2567
        %v2569 = vand.u32 %v2568, 4294901760
        %2570 = vmatmul.mubr.f32.gmra.mrb[0].mxu0 %v2569
        %v2571 = vpop.f32.mrb[0].mxu0
        %v2572 = vadd.f32 %v2422, %v2571
        %v2573 = vpop.f32.mrb[0].mxu0
        %2574 = vmatprep.mubr.f32.mxu0 0.0
        %v2575 = vand.u32 %v2376, 4294901760
        %v2576 = vsub.f32 %v2376, %v2575
        %v2577 = vand.u32 %v2576, 4294901760
        %v2578 = vsub.f32 %v2576, %v2577
        %v2579 = vand.u32 %v2578, 4294901760
        %2580 = vmatmul.mubr.f32.gmra.mrb[0].mxu0 %v2579
        %v2581 = vpop.f32.mrb[0].mxu0
        %v2582 = vadd.f32 %v2422, %v2581
        %v2583 = vpop.f32.mrb[0].mxu0
        %2584 = vmatprep.mubr.f32.mxu0 0.0
        %v2585 = vand.u32 %v2377, 4294901760
        %v2586 = vsub.f32 %v2377, %v2585
        %v2587 = vand.u32 %v2586, 4294901760
        %v2588 = vsub.f32 %v2586, %v2587
        %v2589 = vand.u32 %v2588, 4294901760
        %2590 = vmatmul.mubr.f32.gmra.mrb[0].mxu0 %v2589
        %v2591 = vpop.f32.mrb[0].mxu0
        %v2592 = vadd.f32 %v2422, %v2591
        %v2593 = vpop.f32.mrb[0].mxu0
        %2594 = vmatprep.mubr.f32.mxu0 0.0
        %v2595 = vand.u32 %v2378, 4294901760
        %v2596 = vsub.f32 %v2378, %v2595
        %v2597 = vand.u32 %v2596, 4294901760
        %v2598 = vsub.f32 %v2596, %v2597
        %v2599 = vand.u32 %v2598, 4294901760
        %2600 = vmatmul.mubr.f32.gmra.mrb[0].mxu0 %v2599
        %v2601 = vpop.f32.mrb[0].mxu0
        %v2602 = vadd.f32 %v2422, %v2601
        %v2603 = vpop.f32.mrb[0].mxu0
        %2604 = vmatprep.mubr.f32.mxu0 0.0
        %v2605 = vand.u32 %v2379, 4294901760
        %v2606 = vsub.f32 %v2379, %v2605
        %v2607 = vand.u32 %v2606, 4294901760
        %v2608 = vsub.f32 %v2606, %v2607
        %v2609 = vand.u32 %v2608, 4294901760
        %2610 = vmatmul.mubr.f32.gmra.mrb[0].mxu0 %v2609
        %v2611 = vpop.f32.mrb[0].mxu0
        %v2612 = vadd.f32 %v2422, %v2611
        %v2613 = vpop.f32.mrb[0].mxu0
        %2614 = vmatprep.mubr.f32.mxu0 0.0
        %v2615 = vand.u32 %v2380, 4294901760
        %v2616 = vsub.f32 %v2380, %v2615
        %v2617 = vand.u32 %v2616, 4294901760
        %v2618 = vsub.f32 %v2616, %v2617
        %v2619 = vand.u32 %v2618, 4294901760
        %2620 = vmatmul.mubr.f32.gmra.mrb[0].mxu0 %v2619
        %v2621 = vpop.f32.mrb[0].mxu0
        %v2622 = vadd.f32 %v2422, %v2621
        %v2623 = vpop.f32.mrb[0].mxu0
        %2624 = vmatprep.mubr.f32.mxu0 0.0
        %v2625 = vand.u32 %v2381, 4294901760
        %v2626 = vsub.f32 %v2381, %v2625
        %v2627 = vand.u32 %v2626, 4294901760
        %v2628 = vsub.f32 %v2626, %v2627
        %v2629 = vand.u32 %v2628, 4294901760
        %2630 = vmatmul.mubr.f32.gmra.mrb[0].mxu0 %v2629
        %v2631 = vpop.f32.mrb[0].mxu0
        %v2632 = vadd.f32 %v2422, %v2631
        %v2633 = vpop.f32.mrb[0].mxu0
        %2634 = vmatprep.mubr.f32.mxu0 0.0
        %v2635 = vand.u32 %v2382, 4294901760
        %v2636 = vsub.f32 %v2382, %v2635
        %v2637 = vand.u32 %v2636, 4294901760
        %v2638 = vsub.f32 %v2636, %v2637
        %v2639 = vand.u32 %v2638, 4294901760
        %2640 = vmatmul.mubr.f32.gmra.mrb[0].mxu0 %v2639
        %v2641 = vpop.f32.mrb[0].mxu0
        %v2642 = vadd.f32 %v2422, %v2641
        %v2643 = vpop.f32.mrb[0].mxu0
        %2644 = vmatprep.mubr.f32.mxu0 0.0
        %v2645 = vand.u32 %v2383, 4294901760
        %v2646 = vsub.f32 %v2383, %v2645
        %v2647 = vand.u32 %v2646, 4294901760
        %v2648 = vsub.f32 %v2646, %v2647
        %v2649 = vand.u32 %v2648, 4294901760
        %2650 = vmatmul.mubr.f32.gmra.mrb[0].mxu0 %v2649
        %v2651 = vpop.f32.mrb[0].mxu0
        %v2652 = vadd.f32 %v2422, %v2651
        %v2653 = vpop.f32.mrb[0].mxu0
        %2654 = vmatprep.mubr.f32.mxu0 0.0
        %v2655 = vand.u32 %v2384, 4294901760
        %v2656 = vsub.f32 %v2384, %v2655
        %v2657 = vand.u32 %v2656, 4294901760
        %v2658 = vsub.f32 %v2656, %v2657
        %v2659 = vand.u32 %v2658, 4294901760
        %2660 = vmatmul.mubr.f32.gmra.mrb[0].mxu0 %v2659
        %v2661 = vpop.f32.mrb[0].mxu0
        %v2662 = vadd.f32 %v2422, %v2661
        %v2663 = vpop.f32.mrb[0].mxu0
        %2664 = vmatprep.mubr.f32.mxu0 0.0
        %v2665 = vand.u32 %v2385, 4294901760
        %v2666 = vsub.f32 %v2385, %v2665
        %v2667 = vand.u32 %v2666, 4294901760
        %v2668 = vsub.f32 %v2666, %v2667
        %v2669 = vand.u32 %v2668, 4294901760
        %2670 = vmatmul.mubr.f32.gmra.mrb[0].mxu0 %v2669
        %v2671 = vpop.f32.mrb[0].mxu0
        %v2672 = vadd.f32 %v2422, %v2671
        %v2673 = vpop.f32.mrb[0].mxu0
        %2674 = vmatprep.mubr.f32.mxu0 0.0
        %v2675 = vand.u32 %v2386, 4294901760
        %v2676 = vsub.f32 %v2386, %v2675
        %v2677 = vand.u32 %v2676, 4294901760
        %v2678 = vsub.f32 %v2676, %v2677
        %v2679 = vand.u32 %v2678, 4294901760
        %2680 = vmatmul.mubr.f32.gmra.mrb[0].mxu0 %v2679
        %v2681 = vpop.f32.mrb[0].mxu0
        %v2682 = vadd.f32 %v2422, %v2681
        %v2683 = vpop.f32.mrb[0].mxu0
        %2684 = vmatprep.mubr.f32.mxu0 0.0
        %v2685 = vand.u32 %v2387, 4294901760
        %v2686 = vsub.f32 %v2387, %v2685
        %v2687 = vand.u32 %v2686, 4294901760
        %v2688 = vsub.f32 %v2686, %v2687
        %v2689 = vand.u32 %v2688, 4294901760
        %2690 = vmatmul.mubr.f32.gmra.mrb[0].mxu0 %v2689
        %v2691 = vpop.f32.mrb[0].mxu0
        %v2692 = vadd.f32 %v2422, %v2691
        %v2693 = vpop.f32.mrb[0].mxu0
        %2694 = vmatprep.mubr.f32.mxu0 0.0
        %v2695 = vand.u32 %v2388, 4294901760
        %v2696 = vsub.f32 %v2388, %v2695
        %v2697 = vand.u32 %v2696, 4294901760
        %v2698 = vsub.f32 %v2696, %v2697
        %v2699 = vand.u32 %v2698, 4294901760
        %2700 = vmatmul.mubr.f32.gmra.mrb[0].mxu0 %v2699
        %v2701 = vpop.f32.mrb[0].mxu0
        %v2702 = vadd.f32 %v2422, %v2701
        %v2703 = vpop.f32.mrb[0].mxu0
        %2704 = vmatprep.mubr.f32.mxu0 0.0
        %v2705 = vand.u32 %v2389, 4294901760
        %v2706 = vsub.f32 %v2389, %v2705
        %v2707 = vand.u32 %v2706, 4294901760
        %v2708 = vsub.f32 %v2706, %v2707
        %v2709 = vand.u32 %v2708, 4294901760
        %2710 = vmatmul.mubr.f32.gmra.mrb[0].mxu0 %v2709
        %v2711 = vpop.f32.mrb[0].mxu0
        %v2712 = vadd.f32 %v2422, %v2711
        %v2713 = vpop.f32.mrb[0].mxu0
        %2714 = vmatprep.mubr.f32.mxu0 0.0
        %v2715 = vand.u32 %v2390, 4294901760
        %v2716 = vsub.f32 %v2390, %v2715
        %v2717 = vand.u32 %v2716, 4294901760
        %v2718 = vsub.f32 %v2716, %v2717
        %v2719 = vand.u32 %v2718, 4294901760
        %2720 = vmatmul.mubr.f32.gmra.mrb[0].mxu0 %v2719
        %v2721 = vpop.f32.mrb[0].mxu0
        %v2722 = vadd.f32 %v2422, %v2721
        %v2723 = vpop.f32.mrb[0].mxu0
        %2724 = vmatprep.mubr.f32.mxu0 0.0
        %v2725 = vand.u32 %v2391, 4294901760
        %v2726 = vsub.f32 %v2391, %v2725
        %v2727 = vand.u32 %v2726, 4294901760
        %v2728 = vsub.f32 %v2726, %v2727
        %v2729 = vand.u32 %v2728, 4294901760
        %2730 = vmatmul.mubr.f32.gmra.mrb[0].mxu0 %v2729
        %v2731 = vpop.f32.mrb[0].mxu0
        %v2732 = vadd.f32 %v2422, %v2731
        %v2733 = vpop.f32.mrb[0].mxu0
        %2734 = vmatprep.mubr.f32.mxu0 0.0
        %v2735 = vand.u32 %v2392, 4294901760
        %v2736 = vsub.f32 %v2392, %v2735
        %v2737 = vand.u32 %v2736, 4294901760
        %v2738 = vsub.f32 %v2736, %v2737
        %v2739 = vand.u32 %v2738, 4294901760
        %2740 = vmatmul.mubr.f32.gmra.mrb[0].mxu0 %v2739
        %v2741 = vpop.f32.mrb[0].mxu0
        %v2742 = vadd.f32 %v2422, %v2741
        %v2743 = vpop.f32.mrb[0].mxu0
        %2744 = vmatprep.mubr.f32.mxu0 0.0
        %v2745 = vand.u32 %v2393, 4294901760
        %v2746 = vsub.f32 %v2393, %v2745
        %v2747 = vand.u32 %v2746, 4294901760
        %v2748 = vsub.f32 %v2746, %v2747
        %v2749 = vand.u32 %v2748, 4294901760
        %2750 = vmatmul.mubr.f32.gmra.mrb[0].mxu0 %v2749
        %v2751 = vpop.f32.mrb[0].mxu0
        %v2752 = vadd.f32 %v2422, %v2751
        %v2753 = vpop.f32.mrb[0].mxu0
        %2754 = vmatprep.mubr.f32.mxu0 0.0
        %v2755 = vand.u32 %v2394, 4294901760
        %v2756 = vsub.f32 %v2394, %v2755
        %v2757 = vand.u32 %v2756, 4294901760
        %v2758 = vsub.f32 %v2756, %v2757
        %v2759 = vand.u32 %v2758, 4294901760
        %2760 = vmatmul.mubr.f32.gmra.mrb[0].mxu0 %v2759
        %v2761 = vpop.f32.mrb[0].mxu0
        %v2762 = vadd.f32 %v2422, %v2761
        %v2763 = vpop.f32.mrb[0].mxu0
        %2764 = vmatprep.mubr.f32.mxu0 0.0
        %v2765 = vand.u32 %v2395, 4294901760
        %v2766 = vsub.f32 %v2395, %v2765
        %v2767 = vand.u32 %v2766, 4294901760
        %v2768 = vsub.f32 %v2766, %v2767
        %v2769 = vand.u32 %v2768, 4294901760
        %2770 = vmatmul.mubr.f32.gmra.mrb[0].mxu0 %v2769
        %v2771 = vpop.f32.mrb[0].mxu0
        %v2772 = vadd.f32 %v2422, %v2771
        %v2773 = vpop.f32.mrb[0].mxu0
        %2774 = vmatprep.mubr.f32.mxu0 0.0
        %v2775 = vand.u32 %v2396, 4294901760
        %v2776 = vsub.f32 %v2396, %v2775
        %v2777 = vand.u32 %v2776, 4294901760
        %v2778 = vsub.f32 %v2776, %v2777
        %v2779 = vand.u32 %v2778, 4294901760
        %2780 = vmatmul.mubr.f32.gmra.mrb[0].mxu0 %v2779
        %v2781 = vpop.f32.mrb[0].mxu0
        %v2782 = vadd.f32 %v2422, %v2781
        %v2783 = vpop.f32.mrb[0].mxu0
        %2784 = vmatprep.mubr.f32.mxu0 0.0
        %v2785 = vand.u32 %v2397, 4294901760
        %v2786 = vsub.f32 %v2397, %v2785
        %v2787 = vand.u32 %v2786, 4294901760
        %v2788 = vsub.f32 %v2786, %v2787
        %v2789 = vand.u32 %v2788, 4294901760
        %2790 = vmatmul.mubr.f32.gmra.mrb[0].mxu0 %v2789
        %v2791 = vpop.f32.mrb[0].mxu0
        %v2792 = vadd.f32 %v2422, %v2791
        %v2793 = vpop.f32.mrb[0].mxu0
        %2794 = vmatprep.mubr.f32.mxu0 0.0
        %v2795 = vand.u32 %v2398, 4294901760
        %v2796 = vsub.f32 %v2398, %v2795
        %v2797 = vand.u32 %v2796, 4294901760
        %v2798 = vsub.f32 %v2796, %v2797
        %v2799 = vand.u32 %v2798, 4294901760
        %2800 = vmatmul.mubr.f32.gmra.mrb[0].mxu0 %v2799
        %v2801 = vpop.f32.mrb[0].mxu0
        %v2802 = vadd.f32 %v2422, %v2801
        %v2803 = vpop.f32.mrb[0].mxu0
        %2804 = vmatprep.mubr.f32.mxu0 0.0
        %v2805 = vand.u32 %v2399, 4294901760
        %v2806 = vsub.f32 %v2399, %v2805
        %v2807 = vand.u32 %v2806, 4294901760
        %v2808 = vsub.f32 %v2806, %v2807
        %v2809 = vand.u32 %v2808, 4294901760
        %2810 = vmatmul.mubr.f32.gmra.mrb[0].mxu0 %v2809
        %v2811 = vpop.f32.mrb[0].mxu0
        %v2812 = vadd.f32 %v2422, %v2811
        %v2813 = vpop.f32.mrb[0].mxu0
        %2814 = vmatprep.mubr.f32.mxu0 0.0
        %v2815 = vand.u32 %v2400, 4294901760
        %v2816 = vsub.f32 %v2400, %v2815
        %v2817 = vand.u32 %v2816, 4294901760
        %v2818 = vsub.f32 %v2816, %v2817
        %v2819 = vand.u32 %v2818, 4294901760
        %2820 = vmatmul.mubr.f32.gmra.mrb[0].mxu0 %v2819
        %v2821 = vpop.f32.mrb[0].mxu0
        %v2822 = vadd.f32 %v2422, %v2821
        %v2823 = vpop.f32.mrb[0].mxu0
        %2824 = vdwg.mxu0
        %2825 = vmatprep.subr.mxu0 0.0
        %v2826 = vand.u32 %v2401, 4294901760
        %v2827 = vsub.f32 %v2401, %v2826
        %v2828 = vand.u32 %v2827, 4294901760
        %v2829 = vsub.f32 %v2827, %v2828
        %v2830 = vand.u32 %v2829, 4294901760
        %2831 = vmatpush1.msra.mxu0 %v2830
        %2832 = vmatprep.subr.mxu0 0.0
        %v2833 = vand.u32 %v2402, 4294901760
        %v2834 = vsub.f32 %v2402, %v2833
        %v2835 = vand.u32 %v2834, 4294901760
        %v2836 = vsub.f32 %v2834, %v2835
        %v2837 = vand.u32 %v2836, 4294901760
        %2838 = vmatpush1.msra.mxu0 %v2837
        %2839 = vmatprep.subr.mxu0 0.0
        %v2840 = vand.u32 %v2403, 4294901760
        %v2841 = vsub.f32 %v2403, %v2840
        %v2842 = vand.u32 %v2841, 4294901760
        %v2843 = vsub.f32 %v2841, %v2842
        %v2844 = vand.u32 %v2843, 4294901760
        %2845 = vmatpush1.msra.mxu0 %v2844
        %2846 = vmatprep.subr.mxu0 0.0
        %v2847 = vand.u32 %v2404, 4294901760
        %v2848 = vsub.f32 %v2404, %v2847
        %v2849 = vand.u32 %v2848, 4294901760
        %v2850 = vsub.f32 %v2848, %v2849
        %v2851 = vand.u32 %v2850, 4294901760
        %2852 = vmatpush1.msra.mxu0 %v2851
        %2853 = vmatprep.subr.mxu0 0.0
        %v2854 = vand.u32 %v2405, 4294901760
        %v2855 = vsub.f32 %v2405, %v2854
        %v2856 = vand.u32 %v2855, 4294901760
        %v2857 = vsub.f32 %v2855, %v2856
        %v2858 = vand.u32 %v2857, 4294901760
        %2859 = vmatpush1.msra.mxu0 %v2858
        %2860 = vmatprep.subr.mxu0 0.0
        %v2861 = vand.u32 %v2406, 4294901760
        %v2862 = vsub.f32 %v2406, %v2861
        %v2863 = vand.u32 %v2862, 4294901760
        %v2864 = vsub.f32 %v2862, %v2863
        %v2865 = vand.u32 %v2864, 4294901760
        %2866 = vmatpush1.msra.mxu0 %v2865
        %2867 = vmatprep.subr.mxu0 0.0
        %v2868 = vand.u32 %v2407, 4294901760
        %v2869 = vsub.f32 %v2407, %v2868
        %v2870 = vand.u32 %v2869, 4294901760
        %v2871 = vsub.f32 %v2869, %v2870
        %v2872 = vand.u32 %v2871, 4294901760
        %2873 = vmatpush1.msra.mxu0 %v2872
        %2874 = vmatprep.subr.mxu0 0.0
        %v2875 = vand.u32 %v2408, 4294901760
        %v2876 = vsub.f32 %v2408, %v2875
        %v2877 = vand.u32 %v2876, 4294901760
        %v2878 = vsub.f32 %v2876, %v2877
        %v2879 = vand.u32 %v2878, 4294901760
        %2880 = vmatpush1.msra.mxu0 %v2879
        %2881 = vmatprep.subr.mxu0 0.0
        %v2882 = vand.u32 %v2409, 4294901760
        %v2883 = vsub.f32 %v2409, %v2882
        %v2884 = vand.u32 %v2883, 4294901760
        %v2885 = vsub.f32 %v2883, %v2884
        %v2886 = vand.u32 %v2885, 4294901760
        %2887 = vmatpush1.msra.mxu0 %v2886
        %2888 = vmatprep.subr.mxu0 0.0
        %v2889 = vand.u32 %v2410, 4294901760
        %v2890 = vsub.f32 %v2410, %v2889
        %v2891 = vand.u32 %v2890, 4294901760
        %v2892 = vsub.f32 %v2890, %v2891
        %v2893 = vand.u32 %v2892, 4294901760
        %2894 = vmatpush1.msra.mxu0 %v2893
        %2895 = vmatprep.subr.mxu0 0.0
        %v2896 = vand.u32 %v2411, 4294901760
        %v2897 = vsub.f32 %v2411, %v2896
        %v2898 = vand.u32 %v2897, 4294901760
        %v2899 = vsub.f32 %v2897, %v2898
        %v2900 = vand.u32 %v2899, 4294901760
        %2901 = vmatpush1.msra.mxu0 %v2900
        %2902 = vmatprep.subr.mxu0 0.0
        %v2903 = vand.u32 %v2412, 4294901760
        %v2904 = vsub.f32 %v2412, %v2903
        %v2905 = vand.u32 %v2904, 4294901760
        %v2906 = vsub.f32 %v2904, %v2905
        %v2907 = vand.u32 %v2906, 4294901760
        %2908 = vmatpush1.msra.mxu0 %v2907
        %2909 = vmatprep.subr.mxu0 0.0
        %v2910 = vand.u32 %v2413, 4294901760
        %v2911 = vsub.f32 %v2413, %v2910
        %v2912 = vand.u32 %v2911, 4294901760
        %v2913 = vsub.f32 %v2911, %v2912
        %v2914 = vand.u32 %v2913, 4294901760
        %2915 = vmatpush1.msra.mxu0 %v2914
        %2916 = vmatprep.subr.mxu0 0.0
        %v2917 = vand.u32 %v2414, 4294901760
        %v2918 = vsub.f32 %v2414, %v2917
        %v2919 = vand.u32 %v2918, 4294901760
        %v2920 = vsub.f32 %v2918, %v2919
        %v2921 = vand.u32 %v2920, 4294901760
        %2922 = vmatpush1.msra.mxu0 %v2921
        %2923 = vmatprep.subr.mxu0 0.0
        %v2924 = vand.u32 %v2415, 4294901760
        %v2925 = vsub.f32 %v2415, %v2924
        %v2926 = vand.u32 %v2925, 4294901760
        %v2927 = vsub.f32 %v2925, %v2926
        %v2928 = vand.u32 %v2927, 4294901760
        %2929 = vmatpush1.msra.mxu0 %v2928
        %2930 = vmatprep.subr.mxu0 0.0
        %v2931 = vand.u32 %v2416, 4294901760
        %v2932 = vsub.f32 %v2416, %v2931
        %v2933 = vand.u32 %v2932, 4294901760
        %v2934 = vsub.f32 %v2932, %v2933
        %v2935 = vand.u32 %v2934, 4294901760
        %2936 = vmatpush1.msra.mxu0 %v2935
        %2937 = vmatprep.subr.mxu0 0.0
        %2938 = vmatpush1.msra.mxu0 0.0
        %2939 = vmatprep.subr.mxu0 0.0
        %2940 = vmatpush1.msra.mxu0 0.0
        %2941 = vmatprep.subr.mxu0 0.0
        %2942 = vmatpush1.msra.mxu0 0.0
        %2943 = vmatprep.subr.mxu0 0.0
        %2944 = vmatpush1.msra.mxu0 0.0
        %2945 = vmatprep.subr.mxu0 0.0
        %2946 = vmatpush1.msra.mxu0 0.0
        %2947 = vmatprep.subr.mxu0 0.0
        %2948 = vmatpush1.msra.mxu0 0.0
        %2949 = vmatprep.subr.mxu0 0.0
        %2950 = vmatpush1.msra.mxu0 0.0
        %2951 = vmatprep.subr.mxu0 0.0
        %2952 = vmatpush1.msra.mxu0 0.0
        %2953 = vmatprep.subr.mxu0 0.0
        %2954 = vmatpush1.msra.mxu0 0.0
        %2955 = vmatprep.subr.mxu0 0.0
        %2956 = vmatpush1.msra.mxu0 0.0
        %2957 = vmatprep.subr.mxu0 0.0
        %2958 = vmatpush1.msra.mxu0 0.0
        %2959 = vmatprep.subr.mxu0 0.0
        %2960 = vmatpush1.msra.mxu0 0.0
        %2961 = vmatprep.subr.mxu0 0.0
        %2962 = vmatpush1.msra.mxu0 0.0
        %2963 = vmatprep.subr.mxu0 0.0
        %2964 = vmatpush1.msra.mxu0 0.0
        %2965 = vmatprep.subr.mxu0 0.0
        %2966 = vmatpush1.msra.mxu0 0.0
        %2967 = vmatprep.subr.mxu0 0.0
        %2968 = vmatpush1.msra.mxu0 0.0
        %2969 = vmatprep.mubr.f32.mxu0 0.0
        %v2970 = vand.u32 %v2369, 4294901760
        %2971 = vmatmul.mubr.f32.gmra.mrb[0].mxu0 %v2970
        %v2972 = vpop.f32.mrb[0].mxu0
        %v2973 = vadd.f32 %v2512, %v2972
        %v2974 = vpop.f32.mrb[0].mxu0
        %2975 = vmatprep.mubr.f32.mxu0 0.0
        %v2976 = vand.u32 %v2370, 4294901760
        %2977 = vmatmul.mubr.f32.gmra.mrb[0].mxu0 %v2976
        %v2978 = vpop.f32.mrb[0].mxu0
        %v2979 = vadd.f32 %v2522, %v2978
        %v2980 = vpop.f32.mrb[0].mxu0
        %2981 = vmatprep.mubr.f32.mxu0 0.0
        %v2982 = vand.u32 %v2371, 4294901760
        %2983 = vmatmul.mubr.f32.gmra.mrb[0].mxu0 %v2982
        %v2984 = vpop.f32.mrb[0].mxu0
        %v2985 = vadd.f32 %v2532, %v2984
        %v2986 = vpop.f32.mrb[0].mxu0
        %2987 = vmatprep.mubr.f32.mxu0 0.0
        %v2988 = vand.u32 %v2372, 4294901760
        %2989 = vmatmul.mubr.f32.gmra.mrb[0].mxu0 %v2988
        %v2990 = vpop.f32.mrb[0].mxu0
        %v2991 = vadd.f32 %v2542, %v2990
        %v2992 = vpop.f32.mrb[0].mxu0
        %2993 = vmatprep.mubr.f32.mxu0 0.0
        %v2994 = vand.u32 %v2373, 4294901760
        %2995 = vmatmul.mubr.f32.gmra.mrb[0].mxu0 %v2994
        %v2996 = vpop.f32.mrb[0].mxu0
        %v2997 = vadd.f32 %v2552, %v2996
        %v2998 = vpop.f32.mrb[0].mxu0
        %2999 = vmatprep.mubr.f32.mxu0 0.0
        %v3000 = vand.u32 %v2374, 4294901760
        %3001 = vmatmul.mubr.f32.gmra.mrb[0].mxu0 %v3000
        %v3002 = vpop.f32.mrb[0].mxu0
        %v3003 = vadd.f32 %v2562, %v3002
        %v3004 = vpop.f32.mrb[0].mxu0
        %3005 = vmatprep.mubr.f32.mxu0 0.0
        %v3006 = vand.u32 %v2375, 4294901760
        %3007 = vmatmul.mubr.f32.gmra.mrb[0].mxu0 %v3006
        %v3008 = vpop.f32.mrb[0].mxu0
        %v3009 = vadd.f32 %v2572, %v3008
        %v3010 = vpop.f32.mrb[0].mxu0
        %3011 = vmatprep.mubr.f32.mxu0 0.0
        %v3012 = vand.u32 %v2376, 4294901760
        %3013 = vmatmul.mubr.f32.gmra.mrb[0].mxu0 %v3012
        %v3014 = vpop.f32.mrb[0].mxu0
        %v3015 = vadd.f32 %v2582, %v3014
        %v3016 = vpop.f32.mrb[0].mxu0
        %3017 = vmatprep.mubr.f32.mxu0 0.0
        %v3018 = vand.u32 %v2377, 4294901760
        %3019 = vmatmul.mubr.f32.gmra.mrb[0].mxu0 %v3018
        %v3020 = vpop.f32.mrb[0].mxu0
        %v3021 = vadd.f32 %v2592, %v3020
        %v3022 = vpop.f32.mrb[0].mxu0
        %3023 = vmatprep.mubr.f32.mxu0 0.0
        %v3024 = vand.u32 %v2378, 4294901760
        %3025 = vmatmul.mubr.f32.gmra.mrb[0].mxu0 %v3024
        %v3026 = vpop.f32.mrb[0].mxu0
        %v3027 = vadd.f32 %v2602, %v3026
        %v3028 = vpop.f32.mrb[0].mxu0
        %3029 = vmatprep.mubr.f32.mxu0 0.0
        %v3030 = vand.u32 %v2379, 4294901760
        %3031 = vmatmul.mubr.f32.gmra.mrb[0].mxu0 %v3030
        %v3032 = vpop.f32.mrb[0].mxu0
        %v3033 = vadd.f32 %v2612, %v3032
        %v3034 = vpop.f32.mrb[0].mxu0
        %3035 = vmatprep.mubr.f32.mxu0 0.0
        %v3036 = vand.u32 %v2380, 4294901760
        %3037 = vmatmul.mubr.f32.gmra.mrb[0].mxu0 %v3036
        %v3038 = vpop.f32.mrb[0].mxu0
        %v3039 = vadd.f32 %v2622, %v3038
        %v3040 = vpop.f32.mrb[0].mxu0
        %3041 = vmatprep.mubr.f32.mxu0 0.0
        %v3042 = vand.u32 %v2381, 4294901760
        %3043 = vmatmul.mubr.f32.gmra.mrb[0].mxu0 %v3042
        %v3044 = vpop.f32.mrb[0].mxu0
        %v3045 = vadd.f32 %v2632, %v3044
        %v3046 = vpop.f32.mrb[0].mxu0
        %3047 = vmatprep.mubr.f32.mxu0 0.0
        %v3048 = vand.u32 %v2382, 4294901760
        %3049 = vmatmul.mubr.f32.gmra.mrb[0].mxu0 %v3048
        %v3050 = vpop.f32.mrb[0].mxu0
        %v3051 = vadd.f32 %v2642, %v3050
        %v3052 = vpop.f32.mrb[0].mxu0
        %3053 = vmatprep.mubr.f32.mxu0 0.0
        %v3054 = vand.u32 %v2383, 4294901760
        %3055 = vmatmul.mubr.f32.gmra.mrb[0].mxu0 %v3054
        %v3056 = vpop.f32.mrb[0].mxu0
        %v3057 = vadd.f32 %v2652, %v3056
        %v3058 = vpop.f32.mrb[0].mxu0
        %3059 = vmatprep.mubr.f32.mxu0 0.0
        %v3060 = vand.u32 %v2384, 4294901760
        %3061 = vmatmul.mubr.f32.gmra.mrb[0].mxu0 %v3060
        %v3062 = vpop.f32.mrb[0].mxu0
        %v3063 = vadd.f32 %v2662, %v3062
        %v3064 = vpop.f32.mrb[0].mxu0
        %3065 = vmatprep.mubr.f32.mxu0 0.0
        %v3066 = vand.u32 %v2385, 4294901760
        %3067 = vmatmul.mubr.f32.gmra.mrb[0].mxu0 %v3066
        %v3068 = vpop.f32.mrb[0].mxu0
        %v3069 = vadd.f32 %v2672, %v3068
        %v3070 = vpop.f32.mrb[0].mxu0
        %3071 = vmatprep.mubr.f32.mxu0 0.0
        %v3072 = vand.u32 %v2386, 4294901760
        %3073 = vmatmul.mubr.f32.gmra.mrb[0].mxu0 %v3072
        %v3074 = vpop.f32.mrb[0].mxu0
        %v3075 = vadd.f32 %v2682, %v3074
        %v3076 = vpop.f32.mrb[0].mxu0
        %3077 = vmatprep.mubr.f32.mxu0 0.0
        %v3078 = vand.u32 %v2387, 4294901760
        %3079 = vmatmul.mubr.f32.gmra.mrb[0].mxu0 %v3078
        %v3080 = vpop.f32.mrb[0].mxu0
        %v3081 = vadd.f32 %v2692, %v3080
        %v3082 = vpop.f32.mrb[0].mxu0
        %3083 = vmatprep.mubr.f32.mxu0 0.0
        %v3084 = vand.u32 %v2388, 4294901760
        %3085 = vmatmul.mubr.f32.gmra.mrb[0].mxu0 %v3084
        %v3086 = vpop.f32.mrb[0].mxu0
        %v3087 = vadd.f32 %v2702, %v3086
        %v3088 = vpop.f32.mrb[0].mxu0
        %3089 = vmatprep.mubr.f32.mxu0 0.0
        %v3090 = vand.u32 %v2389, 4294901760
        %3091 = vmatmul.mubr.f32.gmra.mrb[0].mxu0 %v3090
        %v3092 = vpop.f32.mrb[0].mxu0
        %v3093 = vadd.f32 %v2712, %v3092
        %v3094 = vpop.f32.mrb[0].mxu0
        %3095 = vmatprep.mubr.f32.mxu0 0.0
        %v3096 = vand.u32 %v2390, 4294901760
        %3097 = vmatmul.mubr.f32.gmra.mrb[0].mxu0 %v3096
        %v3098 = vpop.f32.mrb[0].mxu0
        %v3099 = vadd.f32 %v2722, %v3098
        %v3100 = vpop.f32.mrb[0].mxu0
        %3101 = vmatprep.mubr.f32.mxu0 0.0
        %v3102 = vand.u32 %v2391, 4294901760
        %3103 = vmatmul.mubr.f32.gmra.mrb[0].mxu0 %v3102
        %v3104 = vpop.f32.mrb[0].mxu0
        %v3105 = vadd.f32 %v2732, %v3104
        %v3106 = vpop.f32.mrb[0].mxu0
        %3107 = vmatprep.mubr.f32.mxu0 0.0
        %v3108 = vand.u32 %v2392, 4294901760
        %3109 = vmatmul.mubr.f32.gmra.mrb[0].mxu0 %v3108
        %v3110 = vpop.f32.mrb[0].mxu0
        %v3111 = vadd.f32 %v2742, %v3110
        %v3112 = vpop.f32.mrb[0].mxu0
        %3113 = vmatprep.mubr.f32.mxu0 0.0
        %v3114 = vand.u32 %v2393, 4294901760
        %3115 = vmatmul.mubr.f32.gmra.mrb[0].mxu0 %v3114
        %v3116 = vpop.f32.mrb[0].mxu0
        %v3117 = vadd.f32 %v2752, %v3116
        %v3118 = vpop.f32.mrb[0].mxu0
        %3119 = vmatprep.mubr.f32.mxu0 0.0
        %v3120 = vand.u32 %v2394, 4294901760
        %3121 = vmatmul.mubr.f32.gmra.mrb[0].mxu0 %v3120
        %v3122 = vpop.f32.mrb[0].mxu0
        %v3123 = vadd.f32 %v2762, %v3122
        %v3124 = vpop.f32.mrb[0].mxu0
        %3125 = vmatprep.mubr.f32.mxu0 0.0
        %v3126 = vand.u32 %v2395, 4294901760
        %3127 = vmatmul.mubr.f32.gmra.mrb[0].mxu0 %v3126
        %v3128 = vpop.f32.mrb[0].mxu0
        %v3129 = vadd.f32 %v2772, %v3128
        %v3130 = vpop.f32.mrb[0].mxu0
        %3131 = vmatprep.mubr.f32.mxu0 0.0
        %v3132 = vand.u32 %v2396, 4294901760
        %3133 = vmatmul.mubr.f32.gmra.mrb[0].mxu0 %v3132
        %v3134 = vpop.f32.mrb[0].mxu0
        %v3135 = vadd.f32 %v2782, %v3134
        %v3136 = vpop.f32.mrb[0].mxu0
        %3137 = vmatprep.mubr.f32.mxu0 0.0
        %v3138 = vand.u32 %v2397, 4294901760
        %3139 = vmatmul.mubr.f32.gmra.mrb[0].mxu0 %v3138
        %v3140 = vpop.f32.mrb[0].mxu0
        %v3141 = vadd.f32 %v2792, %v3140
        %v3142 = vpop.f32.mrb[0].mxu0
        %3143 = vmatprep.mubr.f32.mxu0 0.0
        %v3144 = vand.u32 %v2398, 4294901760
        %3145 = vmatmul.mubr.f32.gmra.mrb[0].mxu0 %v3144
        %v3146 = vpop.f32.mrb[0].mxu0
        %v3147 = vadd.f32 %v2802, %v3146
        %v3148 = vpop.f32.mrb[0].mxu0
        %3149 = vmatprep.mubr.f32.mxu0 0.0
        %v3150 = vand.u32 %v2399, 4294901760
        %3151 = vmatmul.mubr.f32.gmra.mrb[0].mxu0 %v3150
        %v3152 = vpop.f32.mrb[0].mxu0
        %v3153 = vadd.f32 %v2812, %v3152
        %v3154 = vpop.f32.mrb[0].mxu0
        %3155 = vmatprep.mubr.f32.mxu0 0.0
        %v3156 = vand.u32 %v2400, 4294901760
        %3157 = vmatmul.mubr.f32.gmra.mrb[0].mxu0 %v3156
        %v3158 = vpop.f32.mrb[0].mxu0
        %v3159 = vadd.f32 %v2822, %v3158
        %v3160 = vpop.f32.mrb[0].mxu0
        %3161 = vdwg.mxu0
        %3162 = vmatprep.subr.mxu0 0.0
        %v3163 = vand.u32 %v2401, 4294901760
        %v3164 = vsub.f32 %v2401, %v3163
        %3165 = vmatpush1.msra.mxu0 %v3164
        %3166 = vmatprep.subr.mxu0 0.0
        %v3167 = vand.u32 %v2402, 4294901760
        %v3168 = vsub.f32 %v2402, %v3167
        %3169 = vmatpush1.msra.mxu0 %v3168
        %3170 = vmatprep.subr.mxu0 0.0
        %v3171 = vand.u32 %v2403, 4294901760
        %v3172 = vsub.f32 %v2403, %v3171
        %3173 = vmatpush1.msra.mxu0 %v3172
        %3174 = vmatprep.subr.mxu0 0.0
        %v3175 = vand.u32 %v2404, 4294901760
        %v3176 = vsub.f32 %v2404, %v3175
        %3177 = vmatpush1.msra.mxu0 %v3176
        %3178 = vmatprep.subr.mxu0 0.0
        %v3179 = vand.u32 %v2405, 4294901760
        %v3180 = vsub.f32 %v2405, %v3179
        %3181 = vmatpush1.msra.mxu0 %v3180
        %3182 = vmatprep.subr.mxu0 0.0
        %v3183 = vand.u32 %v2406, 4294901760
        %v3184 = vsub.f32 %v2406, %v3183
        %3185 = vmatpush1.msra.mxu0 %v3184
        %3186 = vmatprep.subr.mxu0 0.0
        %v3187 = vand.u32 %v2407, 4294901760
        %v3188 = vsub.f32 %v2407, %v3187
        %3189 = vmatpush1.msra.mxu0 %v3188
        %3190 = vmatprep.subr.mxu0 0.0
        %v3191 = vand.u32 %v2408, 4294901760
        %v3192 = vsub.f32 %v2408, %v3191
        %3193 = vmatpush1.msra.mxu0 %v3192
        %3194 = vmatprep.subr.mxu0 0.0
        %v3195 = vand.u32 %v2409, 4294901760
        %v3196 = vsub.f32 %v2409, %v3195
        %3197 = vmatpush1.msra.mxu0 %v3196
        %3198 = vmatprep.subr.mxu0 0.0
        %v3199 = vand.u32 %v2410, 4294901760
        %v3200 = vsub.f32 %v2410, %v3199
        %3201 = vmatpush1.msra.mxu0 %v3200
        %3202 = vmatprep.subr.mxu0 0.0
        %v3203 = vand.u32 %v2411, 4294901760
        %v3204 = vsub.f32 %v2411, %v3203
        %3205 = vmatpush1.msra.mxu0 %v3204
        %3206 = vmatprep.subr.mxu0 0.0
        %v3207 = vand.u32 %v2412, 4294901760
        %v3208 = vsub.f32 %v2412, %v3207
        %3209 = vmatpush1.msra.mxu0 %v3208
        %3210 = vmatprep.subr.mxu0 0.0
        %v3211 = vand.u32 %v2413, 4294901760
        %v3212 = vsub.f32 %v2413, %v3211
        %3213 = vmatpush1.msra.mxu0 %v3212
        %3214 = vmatprep.subr.mxu0 0.0
        %v3215 = vand.u32 %v2414, 4294901760
        %v3216 = vsub.f32 %v2414, %v3215
        %3217 = vmatpush1.msra.mxu0 %v3216
        %3218 = vmatprep.subr.mxu0 0.0
        %v3219 = vand.u32 %v2415, 4294901760
        %v3220 = vsub.f32 %v2415, %v3219
        %3221 = vmatpush1.msra.mxu0 %v3220
        %3222 = vmatprep.subr.mxu0 0.0
        %v3223 = vand.u32 %v2416, 4294901760
        %v3224 = vsub.f32 %v2416, %v3223
        %3225 = vmatpush1.msra.mxu0 %v3224
        %3226 = vmatprep.subr.mxu0 0.0
        %3227 = vmatpush1.msra.mxu0 0.0
        %3228 = vmatprep.subr.mxu0 0.0
        %3229 = vmatpush1.msra.mxu0 0.0
        %3230 = vmatprep.subr.mxu0 0.0
        %3231 = vmatpush1.msra.mxu0 0.0
        %3232 = vmatprep.subr.mxu0 0.0
        %3233 = vmatpush1.msra.mxu0 0.0
        %3234 = vmatprep.subr.mxu0 0.0
        %3235 = vmatpush1.msra.mxu0 0.0
        %3236 = vmatprep.subr.mxu0 0.0
        %3237 = vmatpush1.msra.mxu0 0.0
        %3238 = vmatprep.subr.mxu0 0.0
        %3239 = vmatpush1.msra.mxu0 0.0
        %3240 = vmatprep.subr.mxu0 0.0
        %3241 = vmatpush1.msra.mxu0 0.0
        %3242 = vmatprep.subr.mxu0 0.0
        %3243 = vmatpush1.msra.mxu0 0.0
        %3244 = vmatprep.subr.mxu0 0.0
        %3245 = vmatpush1.msra.mxu0 0.0
        %3246 = vmatprep.subr.mxu0 0.0
        %3247 = vmatpush1.msra.mxu0 0.0
        %3248 = vmatprep.subr.mxu0 0.0
        %3249 = vmatpush1.msra.mxu0 0.0
        %3250 = vmatprep.subr.mxu0 0.0
        %3251 = vmatpush1.msra.mxu0 0.0
        %3252 = vmatprep.subr.mxu0 0.0
        %3253 = vmatpush1.msra.mxu0 0.0
        %3254 = vmatprep.subr.mxu0 0.0
        %3255 = vmatpush1.msra.mxu0 0.0
        %3256 = vmatprep.subr.mxu0 0.0
        %3257 = vmatpush1.msra.mxu0 0.0
        %3258 = vmatprep.mubr.f32.mxu0 0.0
        %v3259 = vand.u32 %v2369, 4294901760
        %v3260 = vsub.f32 %v2369, %v3259
        %3261 = vmatmul.mubr.f32.gmra.mrb[0].mxu0 %v3260
        %v3262 = vpop.f32.mrb[0].mxu0
        %v3263 = vadd.f32 %v2973, %v3262
        %v3264 = vpop.f32.mrb[0].mxu0
        %3265 = vmatprep.mubr.f32.mxu0 0.0
        %v3266 = vand.u32 %v2370, 4294901760
        %v3267 = vsub.f32 %v2370, %v3266
        %3268 = vmatmul.mubr.f32.gmra.mrb[0].mxu0 %v3267
        %v3269 = vpop.f32.mrb[0].mxu0
        %v3270 = vadd.f32 %v2979, %v3269
        %v3271 = vpop.f32.mrb[0].mxu0
        %3272 = vmatprep.mubr.f32.mxu0 0.0
        %v3273 = vand.u32 %v2371, 4294901760
        %v3274 = vsub.f32 %v2371, %v3273
        %3275 = vmatmul.mubr.f32.gmra.mrb[0].mxu0 %v3274
        %v3276 = vpop.f32.mrb[0].mxu0
        %v3277 = vadd.f32 %v2985, %v3276
        %v3278 = vpop.f32.mrb[0].mxu0
        %3279 = vmatprep.mubr.f32.mxu0 0.0
        %v3280 = vand.u32 %v2372, 4294901760
        %v3281 = vsub.f32 %v2372, %v3280
        %3282 = vmatmul.mubr.f32.gmra.mrb[0].mxu0 %v3281
        %v3283 = vpop.f32.mrb[0].mxu0
        %v3284 = vadd.f32 %v2991, %v3283
        %v3285 = vpop.f32.mrb[0].mxu0
        %3286 = vmatprep.mubr.f32.mxu0 0.0
        %v3287 = vand.u32 %v2373, 4294901760
        %v3288 = vsub.f32 %v2373, %v3287
        %3289 = vmatmul.mubr.f32.gmra.mrb[0].mxu0 %v3288
        %v3290 = vpop.f32.mrb[0].mxu0
        %v3291 = vadd.f32 %v2997, %v3290
        %v3292 = vpop.f32.mrb[0].mxu0
        %3293 = vmatprep.mubr.f32.mxu0 0.0
        %v3294 = vand.u32 %v2374, 4294901760
        %v3295 = vsub.f32 %v2374, %v3294
        %3296 = vmatmul.mubr.f32.gmra.mrb[0].mxu0 %v3295
        %v3297 = vpop.f32.mrb[0].mxu0
        %v3298 = vadd.f32 %v3003, %v3297
        %v3299 = vpop.f32.mrb[0].mxu0
        %3300 = vmatprep.mubr.f32.mxu0 0.0
        %v3301 = vand.u32 %v2375, 4294901760
        %v3302 = vsub.f32 %v2375, %v3301
        %3303 = vmatmul.mubr.f32.gmra.mrb[0].mxu0 %v3302
        %v3304 = vpop.f32.mrb[0].mxu0
        %v3305 = vadd.f32 %v3009, %v3304
        %v3306 = vpop.f32.mrb[0].mxu0
        %3307 = vmatprep.mubr.f32.mxu0 0.0
        %v3308 = vand.u32 %v2376, 4294901760
        %v3309 = vsub.f32 %v2376, %v3308
        %3310 = vmatmul.mubr.f32.gmra.mrb[0].mxu0 %v3309
        %v3311 = vpop.f32.mrb[0].mxu0
        %v3312 = vadd.f32 %v3015, %v3311
        %v3313 = vpop.f32.mrb[0].mxu0
        %3314 = vmatprep.mubr.f32.mxu0 0.0
        %v3315 = vand.u32 %v2377, 4294901760
        %v3316 = vsub.f32 %v2377, %v3315
        %3317 = vmatmul.mubr.f32.gmra.mrb[0].mxu0 %v3316
        %v3318 = vpop.f32.mrb[0].mxu0
        %v3319 = vadd.f32 %v3021, %v3318
        %v3320 = vpop.f32.mrb[0].mxu0
        %3321 = vmatprep.mubr.f32.mxu0 0.0
        %v3322 = vand.u32 %v2378, 4294901760
        %v3323 = vsub.f32 %v2378, %v3322
        %3324 = vmatmul.mubr.f32.gmra.mrb[0].mxu0 %v3323
        %v3325 = vpop.f32.mrb[0].mxu0
        %v3326 = vadd.f32 %v3027, %v3325
        %v3327 = vpop.f32.mrb[0].mxu0
        %3328 = vmatprep.mubr.f32.mxu0 0.0
        %v3329 = vand.u32 %v2379, 4294901760
        %v3330 = vsub.f32 %v2379, %v3329
        %3331 = vmatmul.mubr.f32.gmra.mrb[0].mxu0 %v3330
        %v3332 = vpop.f32.mrb[0].mxu0
        %v3333 = vadd.f32 %v3033, %v3332
        %v3334 = vpop.f32.mrb[0].mxu0
        %3335 = vmatprep.mubr.f32.mxu0 0.0
        %v3336 = vand.u32 %v2380, 4294901760
        %v3337 = vsub.f32 %v2380, %v3336
        %3338 = vmatmul.mubr.f32.gmra.mrb[0].mxu0 %v3337
        %v3339 = vpop.f32.mrb[0].mxu0
        %v3340 = vadd.f32 %v3039, %v3339
        %v3341 = vpop.f32.mrb[0].mxu0
        %3342 = vmatprep.mubr.f32.mxu0 0.0
        %v3343 = vand.u32 %v2381, 4294901760
        %v3344 = vsub.f32 %v2381, %v3343
        %3345 = vmatmul.mubr.f32.gmra.mrb[0].mxu0 %v3344
        %v3346 = vpop.f32.mrb[0].mxu0
        %v3347 = vadd.f32 %v3045, %v3346
        %v3348 = vpop.f32.mrb[0].mxu0
        %3349 = vmatprep.mubr.f32.mxu0 0.0
        %v3350 = vand.u32 %v2382, 4294901760
        %v3351 = vsub.f32 %v2382, %v3350
        %3352 = vmatmul.mubr.f32.gmra.mrb[0].mxu0 %v3351
        %v3353 = vpop.f32.mrb[0].mxu0
        %v3354 = vadd.f32 %v3051, %v3353
        %v3355 = vpop.f32.mrb[0].mxu0
        %3356 = vmatprep.mubr.f32.mxu0 0.0
        %v3357 = vand.u32 %v2383, 4294901760
        %v3358 = vsub.f32 %v2383, %v3357
        %3359 = vmatmul.mubr.f32.gmra.mrb[0].mxu0 %v3358
        %v3360 = vpop.f32.mrb[0].mxu0
        %v3361 = vadd.f32 %v3057, %v3360
        %v3362 = vpop.f32.mrb[0].mxu0
        %3363 = vmatprep.mubr.f32.mxu0 0.0
        %v3364 = vand.u32 %v2384, 4294901760
        %v3365 = vsub.f32 %v2384, %v3364
        %3366 = vmatmul.mubr.f32.gmra.mrb[0].mxu0 %v3365
        %v3367 = vpop.f32.mrb[0].mxu0
        %v3368 = vadd.f32 %v3063, %v3367
        %v3369 = vpop.f32.mrb[0].mxu0
        %3370 = vmatprep.mubr.f32.mxu0 0.0
        %v3371 = vand.u32 %v2385, 4294901760
        %v3372 = vsub.f32 %v2385, %v3371
        %3373 = vmatmul.mubr.f32.gmra.mrb[0].mxu0 %v3372
        %v3374 = vpop.f32.mrb[0].mxu0
        %v3375 = vadd.f32 %v3069, %v3374
        %v3376 = vpop.f32.mrb[0].mxu0
        %3377 = vmatprep.mubr.f32.mxu0 0.0
        %v3378 = vand.u32 %v2386, 4294901760
        %v3379 = vsub.f32 %v2386, %v3378
        %3380 = vmatmul.mubr.f32.gmra.mrb[0].mxu0 %v3379
        %v3381 = vpop.f32.mrb[0].mxu0
        %v3382 = vadd.f32 %v3075, %v3381
        %v3383 = vpop.f32.mrb[0].mxu0
        %3384 = vmatprep.mubr.f32.mxu0 0.0
        %v3385 = vand.u32 %v2387, 4294901760
        %v3386 = vsub.f32 %v2387, %v3385
        %3387 = vmatmul.mubr.f32.gmra.mrb[0].mxu0 %v3386
        %v3388 = vpop.f32.mrb[0].mxu0
        %v3389 = vadd.f32 %v3081, %v3388
        %v3390 = vpop.f32.mrb[0].mxu0
        %3391 = vmatprep.mubr.f32.mxu0 0.0
        %v3392 = vand.u32 %v2388, 4294901760
        %v3393 = vsub.f32 %v2388, %v3392
        %3394 = vmatmul.mubr.f32.gmra.mrb[0].mxu0 %v3393
        %v3395 = vpop.f32.mrb[0].mxu0
        %v3396 = vadd.f32 %v3087, %v3395
        %v3397 = vpop.f32.mrb[0].mxu0
        %3398 = vmatprep.mubr.f32.mxu0 0.0
        %v3399 = vand.u32 %v2389, 4294901760
        %v3400 = vsub.f32 %v2389, %v3399
        %3401 = vmatmul.mubr.f32.gmra.mrb[0].mxu0 %v3400
        %v3402 = vpop.f32.mrb[0].mxu0
        %v3403 = vadd.f32 %v3093, %v3402
        %v3404 = vpop.f32.mrb[0].mxu0
        %3405 = vmatprep.mubr.f32.mxu0 0.0
        %v3406 = vand.u32 %v2390, 4294901760
        %v3407 = vsub.f32 %v2390, %v3406
        %3408 = vmatmul.mubr.f32.gmra.mrb[0].mxu0 %v3407
        %v3409 = vpop.f32.mrb[0].mxu0
        %v3410 = vadd.f32 %v3099, %v3409
        %v3411 = vpop.f32.mrb[0].mxu0
        %3412 = vmatprep.mubr.f32.mxu0 0.0
        %v3413 = vand.u32 %v2391, 4294901760
        %v3414 = vsub.f32 %v2391, %v3413
        %3415 = vmatmul.mubr.f32.gmra.mrb[0].mxu0 %v3414
        %v3416 = vpop.f32.mrb[0].mxu0
        %v3417 = vadd.f32 %v3105, %v3416
        %v3418 = vpop.f32.mrb[0].mxu0
        %3419 = vmatprep.mubr.f32.mxu0 0.0
        %v3420 = vand.u32 %v2392, 4294901760
        %v3421 = vsub.f32 %v2392, %v3420
        %3422 = vmatmul.mubr.f32.gmra.mrb[0].mxu0 %v3421
        %v3423 = vpop.f32.mrb[0].mxu0
        %v3424 = vadd.f32 %v3111, %v3423
        %v3425 = vpop.f32.mrb[0].mxu0
        %3426 = vmatprep.mubr.f32.mxu0 0.0
        %v3427 = vand.u32 %v2393, 4294901760
        %v3428 = vsub.f32 %v2393, %v3427
        %3429 = vmatmul.mubr.f32.gmra.mrb[0].mxu0 %v3428
        %v3430 = vpop.f32.mrb[0].mxu0
        %v3431 = vadd.f32 %v3117, %v3430
        %v3432 = vpop.f32.mrb[0].mxu0
        %3433 = vmatprep.mubr.f32.mxu0 0.0
        %v3434 = vand.u32 %v2394, 4294901760
        %v3435 = vsub.f32 %v2394, %v3434
        %3436 = vmatmul.mubr.f32.gmra.mrb[0].mxu0 %v3435
        %v3437 = vpop.f32.mrb[0].mxu0
        %v3438 = vadd.f32 %v3123, %v3437
        %v3439 = vpop.f32.mrb[0].mxu0
        %3440 = vmatprep.mubr.f32.mxu0 0.0
        %v3441 = vand.u32 %v2395, 4294901760
        %v3442 = vsub.f32 %v2395, %v3441
        %3443 = vmatmul.mubr.f32.gmra.mrb[0].mxu0 %v3442
        %v3444 = vpop.f32.mrb[0].mxu0
        %v3445 = vadd.f32 %v3129, %v3444
        %v3446 = vpop.f32.mrb[0].mxu0
        %3447 = vmatprep.mubr.f32.mxu0 0.0
        %v3448 = vand.u32 %v2396, 4294901760
        %v3449 = vsub.f32 %v2396, %v3448
        %3450 = vmatmul.mubr.f32.gmra.mrb[0].mxu0 %v3449
        %v3451 = vpop.f32.mrb[0].mxu0
        %v3452 = vadd.f32 %v3135, %v3451
        %v3453 = vpop.f32.mrb[0].mxu0
        %3454 = vmatprep.mubr.f32.mxu0 0.0
        %v3455 = vand.u32 %v2397, 4294901760
        %v3456 = vsub.f32 %v2397, %v3455
        %3457 = vmatmul.mubr.f32.gmra.mrb[0].mxu0 %v3456
        %v3458 = vpop.f32.mrb[0].mxu0
        %v3459 = vadd.f32 %v3141, %v3458
        %v3460 = vpop.f32.mrb[0].mxu0
        %3461 = vmatprep.mubr.f32.mxu0 0.0
        %v3462 = vand.u32 %v2398, 4294901760
        %v3463 = vsub.f32 %v2398, %v3462
        %3464 = vmatmul.mubr.f32.gmra.mrb[0].mxu0 %v3463
        %v3465 = vpop.f32.mrb[0].mxu0
        %v3466 = vadd.f32 %v3147, %v3465
        %v3467 = vpop.f32.mrb[0].mxu0
        %3468 = vmatprep.mubr.f32.mxu0 0.0
        %v3469 = vand.u32 %v2399, 4294901760
        %v3470 = vsub.f32 %v2399, %v3469
        %3471 = vmatmul.mubr.f32.gmra.mrb[0].mxu0 %v3470
        %v3472 = vpop.f32.mrb[0].mxu0
        %v3473 = vadd.f32 %v3153, %v3472
        %v3474 = vpop.f32.mrb[0].mxu0
        %3475 = vmatprep.mubr.f32.mxu0 0.0
        %v3476 = vand.u32 %v2400, 4294901760
        %v3477 = vsub.f32 %v2400, %v3476
        %3478 = vmatmul.mubr.f32.gmra.mrb[0].mxu0 %v3477
        %v3479 = vpop.f32.mrb[0].mxu0
        %v3480 = vadd.f32 %v3159, %v3479
        %v3481 = vpop.f32.mrb[0].mxu0
        %3482 = vdwg.mxu0
        %3483 = vmatprep.subr.mxu0 0.0
        %v3484 = vand.u32 %v2401, 4294901760
        %3485 = vmatpush1.msra.mxu0 %v3484
        %3486 = vmatprep.subr.mxu0 0.0
        %v3487 = vand.u32 %v2402, 4294901760
        %3488 = vmatpush1.msra.mxu0 %v3487
        %3489 = vmatprep.subr.mxu0 0.0
        %v3490 = vand.u32 %v2403, 4294901760
        %3491 = vmatpush1.msra.mxu0 %v3490
        %3492 = vmatprep.subr.mxu0 0.0
        %v3493 = vand.u32 %v2404, 4294901760
        %3494 = vmatpush1.msra.mxu0 %v3493
        %3495 = vmatprep.subr.mxu0 0.0
        %v3496 = vand.u32 %v2405, 4294901760
        %3497 = vmatpush1.msra.mxu0 %v3496
        %3498 = vmatprep.subr.mxu0 0.0
        %v3499 = vand.u32 %v2406, 4294901760
        %3500 = vmatpush1.msra.mxu0 %v3499
        %3501 = vmatprep.subr.mxu0 0.0
        %v3502 = vand.u32 %v2407, 4294901760
        %3503 = vmatpush1.msra.mxu0 %v3502
        %3504 = vmatprep.subr.mxu0 0.0
        %v3505 = vand.u32 %v2408, 4294901760
        %3506 = vmatpush1.msra.mxu0 %v3505
        %3507 = vmatprep.subr.mxu0 0.0
        %v3508 = vand.u32 %v2409, 4294901760
        %3509 = vmatpush1.msra.mxu0 %v3508
        %3510 = vmatprep.subr.mxu0 0.0
        %v3511 = vand.u32 %v2410, 4294901760
        %3512 = vmatpush1.msra.mxu0 %v3511
        %3513 = vmatprep.subr.mxu0 0.0
        %v3514 = vand.u32 %v2411, 4294901760
        %3515 = vmatpush1.msra.mxu0 %v3514
        %3516 = vmatprep.subr.mxu0 0.0
        %v3517 = vand.u32 %v2412, 4294901760
        %3518 = vmatpush1.msra.mxu0 %v3517
        %3519 = vmatprep.subr.mxu0 0.0
        %v3520 = vand.u32 %v2413, 4294901760
        %3521 = vmatpush1.msra.mxu0 %v3520
        %3522 = vmatprep.subr.mxu0 0.0
        %v3523 = vand.u32 %v2414, 4294901760
        %3524 = vmatpush1.msra.mxu0 %v3523
        %3525 = vmatprep.subr.mxu0 0.0
        %v3526 = vand.u32 %v2415, 4294901760
        %3527 = vmatpush1.msra.mxu0 %v3526
        %3528 = vmatprep.subr.mxu0 0.0
        %v3529 = vand.u32 %v2416, 4294901760
        %3530 = vmatpush1.msra.mxu0 %v3529
        %3531 = vmatprep.subr.mxu0 0.0
        %3532 = vmatpush1.msra.mxu0 0.0
        %3533 = vmatprep.subr.mxu0 0.0
        %3534 = vmatpush1.msra.mxu0 0.0
        %3535 = vmatprep.subr.mxu0 0.0
        %3536 = vmatpush1.msra.mxu0 0.0
        %3537 = vmatprep.subr.mxu0 0.0
        %3538 = vmatpush1.msra.mxu0 0.0
        %3539 = vmatprep.subr.mxu0 0.0
        %3540 = vmatpush1.msra.mxu0 0.0
        %3541 = vmatprep.subr.mxu0 0.0
        %3542 = vmatpush1.msra.mxu0 0.0
        %3543 = vmatprep.subr.mxu0 0.0
        %3544 = vmatpush1.msra.mxu0 0.0
        %3545 = vmatprep.subr.mxu0 0.0
        %3546 = vmatpush1.msra.mxu0 0.0
        %3547 = vmatprep.subr.mxu0 0.0
        %3548 = vmatpush1.msra.mxu0 0.0
        %3549 = vmatprep.subr.mxu0 0.0
        %3550 = vmatpush1.msra.mxu0 0.0
        %3551 = vmatprep.subr.mxu0 0.0
        %3552 = vmatpush1.msra.mxu0 0.0
        %3553 = vmatprep.subr.mxu0 0.0
        %3554 = vmatpush1.msra.mxu0 0.0
        %3555 = vmatprep.subr.mxu0 0.0
        %3556 = vmatpush1.msra.mxu0 0.0
        %3557 = vmatprep.subr.mxu0 0.0
        %3558 = vmatpush1.msra.mxu0 0.0
        %3559 = vmatprep.subr.mxu0 0.0
        %3560 = vmatpush1.msra.mxu0 0.0
        %3561 = vmatprep.subr.mxu0 0.0
        %3562 = vmatpush1.msra.mxu0 0.0
        %3563 = vmatprep.mubr.f32.mxu0 0.0
        %v3564 = vand.u32 %v2369, 4294901760
        %v3565 = vsub.f32 %v2369, %v3564
        %v3566 = vand.u32 %v3565, 4294901760
        %3567 = vmatmul.mubr.f32.gmra.mrb[0].mxu0 %v3566
        %v3568 = vpop.f32.mrb[0].mxu0
        %v3569 = vadd.f32 %v3263, %v3568
        %v3570 = vpop.f32.mrb[0].mxu0
        %3571 = vmatprep.mubr.f32.mxu0 0.0
        %v3572 = vand.u32 %v2370, 4294901760
        %v3573 = vsub.f32 %v2370, %v3572
        %v3574 = vand.u32 %v3573, 4294901760
        %3575 = vmatmul.mubr.f32.gmra.mrb[0].mxu0 %v3574
        %v3576 = vpop.f32.mrb[0].mxu0
        %v3577 = vadd.f32 %v3270, %v3576
        %v3578 = vpop.f32.mrb[0].mxu0
        %3579 = vmatprep.mubr.f32.mxu0 0.0
        %v3580 = vand.u32 %v2371, 4294901760
        %v3581 = vsub.f32 %v2371, %v3580
        %v3582 = vand.u32 %v3581, 4294901760
        %3583 = vmatmul.mubr.f32.gmra.mrb[0].mxu0 %v3582
        %v3584 = vpop.f32.mrb[0].mxu0
        %v3585 = vadd.f32 %v3277, %v3584
        %v3586 = vpop.f32.mrb[0].mxu0
        %3587 = vmatprep.mubr.f32.mxu0 0.0
        %v3588 = vand.u32 %v2372, 4294901760
        %v3589 = vsub.f32 %v2372, %v3588
        %v3590 = vand.u32 %v3589, 4294901760
        %3591 = vmatmul.mubr.f32.gmra.mrb[0].mxu0 %v3590
        %v3592 = vpop.f32.mrb[0].mxu0
        %v3593 = vadd.f32 %v3284, %v3592
        %v3594 = vpop.f32.mrb[0].mxu0
        %3595 = vmatprep.mubr.f32.mxu0 0.0
        %v3596 = vand.u32 %v2373, 4294901760
        %v3597 = vsub.f32 %v2373, %v3596
        %v3598 = vand.u32 %v3597, 4294901760
        %3599 = vmatmul.mubr.f32.gmra.mrb[0].mxu0 %v3598
        %v3600 = vpop.f32.mrb[0].mxu0
        %v3601 = vadd.f32 %v3291, %v3600
        %v3602 = vpop.f32.mrb[0].mxu0
        %3603 = vmatprep.mubr.f32.mxu0 0.0
        %v3604 = vand.u32 %v2374, 4294901760
        %v3605 = vsub.f32 %v2374, %v3604
        %v3606 = vand.u32 %v3605, 4294901760
        %3607 = vmatmul.mubr.f32.gmra.mrb[0].mxu0 %v3606
        %v3608 = vpop.f32.mrb[0].mxu0
        %v3609 = vadd.f32 %v3298, %v3608
        %v3610 = vpop.f32.mrb[0].mxu0
        %3611 = vmatprep.mubr.f32.mxu0 0.0
        %v3612 = vand.u32 %v2375, 4294901760
        %v3613 = vsub.f32 %v2375, %v3612
        %v3614 = vand.u32 %v3613, 4294901760
        %3615 = vmatmul.mubr.f32.gmra.mrb[0].mxu0 %v3614
        %v3616 = vpop.f32.mrb[0].mxu0
        %v3617 = vadd.f32 %v3305, %v3616
        %v3618 = vpop.f32.mrb[0].mxu0
        %3619 = vmatprep.mubr.f32.mxu0 0.0
        %v3620 = vand.u32 %v2376, 4294901760
        %v3621 = vsub.f32 %v2376, %v3620
        %v3622 = vand.u32 %v3621, 4294901760
        %3623 = vmatmul.mubr.f32.gmra.mrb[0].mxu0 %v3622
        %v3624 = vpop.f32.mrb[0].mxu0
        %v3625 = vadd.f32 %v3312, %v3624
        %v3626 = vpop.f32.mrb[0].mxu0
        %3627 = vmatprep.mubr.f32.mxu0 0.0
        %v3628 = vand.u32 %v2377, 4294901760
        %v3629 = vsub.f32 %v2377, %v3628
        %v3630 = vand.u32 %v3629, 4294901760
        %3631 = vmatmul.mubr.f32.gmra.mrb[0].mxu0 %v3630
        %v3632 = vpop.f32.mrb[0].mxu0
        %v3633 = vadd.f32 %v3319, %v3632
        %v3634 = vpop.f32.mrb[0].mxu0
        %3635 = vmatprep.mubr.f32.mxu0 0.0
        %v3636 = vand.u32 %v2378, 4294901760
        %v3637 = vsub.f32 %v2378, %v3636
        %v3638 = vand.u32 %v3637, 4294901760
        %3639 = vmatmul.mubr.f32.gmra.mrb[0].mxu0 %v3638
        %v3640 = vpop.f32.mrb[0].mxu0
        %v3641 = vadd.f32 %v3326, %v3640
        %v3642 = vpop.f32.mrb[0].mxu0
        %3643 = vmatprep.mubr.f32.mxu0 0.0
        %v3644 = vand.u32 %v2379, 4294901760
        %v3645 = vsub.f32 %v2379, %v3644
        %v3646 = vand.u32 %v3645, 4294901760
        %3647 = vmatmul.mubr.f32.gmra.mrb[0].mxu0 %v3646
        %v3648 = vpop.f32.mrb[0].mxu0
        %v3649 = vadd.f32 %v3333, %v3648
        %v3650 = vpop.f32.mrb[0].mxu0
        %3651 = vmatprep.mubr.f32.mxu0 0.0
        %v3652 = vand.u32 %v2380, 4294901760
        %v3653 = vsub.f32 %v2380, %v3652
        %v3654 = vand.u32 %v3653, 4294901760
        %3655 = vmatmul.mubr.f32.gmra.mrb[0].mxu0 %v3654
        %v3656 = vpop.f32.mrb[0].mxu0
        %v3657 = vadd.f32 %v3340, %v3656
        %v3658 = vpop.f32.mrb[0].mxu0
        %3659 = vmatprep.mubr.f32.mxu0 0.0
        %v3660 = vand.u32 %v2381, 4294901760
        %v3661 = vsub.f32 %v2381, %v3660
        %v3662 = vand.u32 %v3661, 4294901760
        %3663 = vmatmul.mubr.f32.gmra.mrb[0].mxu0 %v3662
        %v3664 = vpop.f32.mrb[0].mxu0
        %v3665 = vadd.f32 %v3347, %v3664
        %v3666 = vpop.f32.mrb[0].mxu0
        %3667 = vmatprep.mubr.f32.mxu0 0.0
        %v3668 = vand.u32 %v2382, 4294901760
        %v3669 = vsub.f32 %v2382, %v3668
        %v3670 = vand.u32 %v3669, 4294901760
        %3671 = vmatmul.mubr.f32.gmra.mrb[0].mxu0 %v3670
        %v3672 = vpop.f32.mrb[0].mxu0
        %v3673 = vadd.f32 %v3354, %v3672
        %v3674 = vpop.f32.mrb[0].mxu0
        %3675 = vmatprep.mubr.f32.mxu0 0.0
        %v3676 = vand.u32 %v2383, 4294901760
        %v3677 = vsub.f32 %v2383, %v3676
        %v3678 = vand.u32 %v3677, 4294901760
        %3679 = vmatmul.mubr.f32.gmra.mrb[0].mxu0 %v3678
        %v3680 = vpop.f32.mrb[0].mxu0
        %v3681 = vadd.f32 %v3361, %v3680
        %v3682 = vpop.f32.mrb[0].mxu0
        %3683 = vmatprep.mubr.f32.mxu0 0.0
        %v3684 = vand.u32 %v2384, 4294901760
        %v3685 = vsub.f32 %v2384, %v3684
        %v3686 = vand.u32 %v3685, 4294901760
        %3687 = vmatmul.mubr.f32.gmra.mrb[0].mxu0 %v3686
        %v3688 = vpop.f32.mrb[0].mxu0
        %v3689 = vadd.f32 %v3368, %v3688
        %v3690 = vpop.f32.mrb[0].mxu0
        %3691 = vmatprep.mubr.f32.mxu0 0.0
        %v3692 = vand.u32 %v2385, 4294901760
        %v3693 = vsub.f32 %v2385, %v3692
        %v3694 = vand.u32 %v3693, 4294901760
        %3695 = vmatmul.mubr.f32.gmra.mrb[0].mxu0 %v3694
        %v3696 = vpop.f32.mrb[0].mxu0
        %v3697 = vadd.f32 %v3375, %v3696
        %v3698 = vpop.f32.mrb[0].mxu0
        %3699 = vmatprep.mubr.f32.mxu0 0.0
        %v3700 = vand.u32 %v2386, 4294901760
        %v3701 = vsub.f32 %v2386, %v3700
        %v3702 = vand.u32 %v3701, 4294901760
        %3703 = vmatmul.mubr.f32.gmra.mrb[0].mxu0 %v3702
        %v3704 = vpop.f32.mrb[0].mxu0
        %v3705 = vadd.f32 %v3382, %v3704
        %v3706 = vpop.f32.mrb[0].mxu0
        %3707 = vmatprep.mubr.f32.mxu0 0.0
        %v3708 = vand.u32 %v2387, 4294901760
        %v3709 = vsub.f32 %v2387, %v3708
        %v3710 = vand.u32 %v3709, 4294901760
        %3711 = vmatmul.mubr.f32.gmra.mrb[0].mxu0 %v3710
        %v3712 = vpop.f32.mrb[0].mxu0
        %v3713 = vadd.f32 %v3389, %v3712
        %v3714 = vpop.f32.mrb[0].mxu0
        %3715 = vmatprep.mubr.f32.mxu0 0.0
        %v3716 = vand.u32 %v2388, 4294901760
        %v3717 = vsub.f32 %v2388, %v3716
        %v3718 = vand.u32 %v3717, 4294901760
        %3719 = vmatmul.mubr.f32.gmra.mrb[0].mxu0 %v3718
        %v3720 = vpop.f32.mrb[0].mxu0
        %v3721 = vadd.f32 %v3396, %v3720
        %v3722 = vpop.f32.mrb[0].mxu0
        %3723 = vmatprep.mubr.f32.mxu0 0.0
        %v3724 = vand.u32 %v2389, 4294901760
        %v3725 = vsub.f32 %v2389, %v3724
        %v3726 = vand.u32 %v3725, 4294901760
        %3727 = vmatmul.mubr.f32.gmra.mrb[0].mxu0 %v3726
        %v3728 = vpop.f32.mrb[0].mxu0
        %v3729 = vadd.f32 %v3403, %v3728
        %v3730 = vpop.f32.mrb[0].mxu0
        %3731 = vmatprep.mubr.f32.mxu0 0.0
        %v3732 = vand.u32 %v2390, 4294901760
        %v3733 = vsub.f32 %v2390, %v3732
        %v3734 = vand.u32 %v3733, 4294901760
        %3735 = vmatmul.mubr.f32.gmra.mrb[0].mxu0 %v3734
        %v3736 = vpop.f32.mrb[0].mxu0
        %v3737 = vadd.f32 %v3410, %v3736
        %v3738 = vpop.f32.mrb[0].mxu0
        %3739 = vmatprep.mubr.f32.mxu0 0.0
        %v3740 = vand.u32 %v2391, 4294901760
        %v3741 = vsub.f32 %v2391, %v3740
        %v3742 = vand.u32 %v3741, 4294901760
        %3743 = vmatmul.mubr.f32.gmra.mrb[0].mxu0 %v3742
        %v3744 = vpop.f32.mrb[0].mxu0
        %v3745 = vadd.f32 %v3417, %v3744
        %v3746 = vpop.f32.mrb[0].mxu0
        %3747 = vmatprep.mubr.f32.mxu0 0.0
        %v3748 = vand.u32 %v2392, 4294901760
        %v3749 = vsub.f32 %v2392, %v3748
        %v3750 = vand.u32 %v3749, 4294901760
        %3751 = vmatmul.mubr.f32.gmra.mrb[0].mxu0 %v3750
        %v3752 = vpop.f32.mrb[0].mxu0
        %v3753 = vadd.f32 %v3424, %v3752
        %v3754 = vpop.f32.mrb[0].mxu0
        %3755 = vmatprep.mubr.f32.mxu0 0.0
        %v3756 = vand.u32 %v2393, 4294901760
        %v3757 = vsub.f32 %v2393, %v3756
        %v3758 = vand.u32 %v3757, 4294901760
        %3759 = vmatmul.mubr.f32.gmra.mrb[0].mxu0 %v3758
        %v3760 = vpop.f32.mrb[0].mxu0
        %v3761 = vadd.f32 %v3431, %v3760
        %v3762 = vpop.f32.mrb[0].mxu0
        %3763 = vmatprep.mubr.f32.mxu0 0.0
        %v3764 = vand.u32 %v2394, 4294901760
        %v3765 = vsub.f32 %v2394, %v3764
        %v3766 = vand.u32 %v3765, 4294901760
        %3767 = vmatmul.mubr.f32.gmra.mrb[0].mxu0 %v3766
        %v3768 = vpop.f32.mrb[0].mxu0
        %v3769 = vadd.f32 %v3438, %v3768
        %v3770 = vpop.f32.mrb[0].mxu0
        %3771 = vmatprep.mubr.f32.mxu0 0.0
        %v3772 = vand.u32 %v2395, 4294901760
        %v3773 = vsub.f32 %v2395, %v3772
        %v3774 = vand.u32 %v3773, 4294901760
        %3775 = vmatmul.mubr.f32.gmra.mrb[0].mxu0 %v3774
        %v3776 = vpop.f32.mrb[0].mxu0
        %v3777 = vadd.f32 %v3445, %v3776
        %v3778 = vpop.f32.mrb[0].mxu0
        %3779 = vmatprep.mubr.f32.mxu0 0.0
        %v3780 = vand.u32 %v2396, 4294901760
        %v3781 = vsub.f32 %v2396, %v3780
        %v3782 = vand.u32 %v3781, 4294901760
        %3783 = vmatmul.mubr.f32.gmra.mrb[0].mxu0 %v3782
        %v3784 = vpop.f32.mrb[0].mxu0
        %v3785 = vadd.f32 %v3452, %v3784
        %v3786 = vpop.f32.mrb[0].mxu0
        %3787 = vmatprep.mubr.f32.mxu0 0.0
        %v3788 = vand.u32 %v2397, 4294901760
        %v3789 = vsub.f32 %v2397, %v3788
        %v3790 = vand.u32 %v3789, 4294901760
        %3791 = vmatmul.mubr.f32.gmra.mrb[0].mxu0 %v3790
        %v3792 = vpop.f32.mrb[0].mxu0
        %v3793 = vadd.f32 %v3459, %v3792
        %v3794 = vpop.f32.mrb[0].mxu0
        %3795 = vmatprep.mubr.f32.mxu0 0.0
        %v3796 = vand.u32 %v2398, 4294901760
        %v3797 = vsub.f32 %v2398, %v3796
        %v3798 = vand.u32 %v3797, 4294901760
        %3799 = vmatmul.mubr.f32.gmra.mrb[0].mxu0 %v3798
        %v3800 = vpop.f32.mrb[0].mxu0
        %v3801 = vadd.f32 %v3466, %v3800
        %v3802 = vpop.f32.mrb[0].mxu0
        %3803 = vmatprep.mubr.f32.mxu0 0.0
        %v3804 = vand.u32 %v2399, 4294901760
        %v3805 = vsub.f32 %v2399, %v3804
        %v3806 = vand.u32 %v3805, 4294901760
        %3807 = vmatmul.mubr.f32.gmra.mrb[0].mxu0 %v3806
        %v3808 = vpop.f32.mrb[0].mxu0
        %v3809 = vadd.f32 %v3473, %v3808
        %v3810 = vpop.f32.mrb[0].mxu0
        %3811 = vmatprep.mubr.f32.mxu0 0.0
        %v3812 = vand.u32 %v2400, 4294901760
        %v3813 = vsub.f32 %v2400, %v3812
        %v3814 = vand.u32 %v3813, 4294901760
        %3815 = vmatmul.mubr.f32.gmra.mrb[0].mxu0 %v3814
        %v3816 = vpop.f32.mrb[0].mxu0
        %v3817 = vadd.f32 %v3480, %v3816
        %v3818 = vpop.f32.mrb[0].mxu0
        %3819 = vdwg.mxu0
        %3820 = vmatprep.subr.mxu0 0.0
        %v3821 = vand.u32 %v2401, 4294901760
        %v3822 = vsub.f32 %v2401, %v3821
        %v3823 = vand.u32 %v3822, 4294901760
        %3824 = vmatpush1.msra.mxu0 %v3823
        %3825 = vmatprep.subr.mxu0 0.0
        %v3826 = vand.u32 %v2402, 4294901760
        %v3827 = vsub.f32 %v2402, %v3826
        %v3828 = vand.u32 %v3827, 4294901760
        %3829 = vmatpush1.msra.mxu0 %v3828
        %3830 = vmatprep.subr.mxu0 0.0
        %v3831 = vand.u32 %v2403, 4294901760
        %v3832 = vsub.f32 %v2403, %v3831
        %v3833 = vand.u32 %v3832, 4294901760
        %3834 = vmatpush1.msra.mxu0 %v3833
        %3835 = vmatprep.subr.mxu0 0.0
        %v3836 = vand.u32 %v2404, 4294901760
        %v3837 = vsub.f32 %v2404, %v3836
        %v3838 = vand.u32 %v3837, 4294901760
        %3839 = vmatpush1.msra.mxu0 %v3838
        %3840 = vmatprep.subr.mxu0 0.0
        %v3841 = vand.u32 %v2405, 4294901760
        %v3842 = vsub.f32 %v2405, %v3841
        %v3843 = vand.u32 %v3842, 4294901760
        %3844 = vmatpush1.msra.mxu0 %v3843
        %3845 = vmatprep.subr.mxu0 0.0
        %v3846 = vand.u32 %v2406, 4294901760
        %v3847 = vsub.f32 %v2406, %v3846
        %v3848 = vand.u32 %v3847, 4294901760
        %3849 = vmatpush1.msra.mxu0 %v3848
        %3850 = vmatprep.subr.mxu0 0.0
        %v3851 = vand.u32 %v2407, 4294901760
        %v3852 = vsub.f32 %v2407, %v3851
        %v3853 = vand.u32 %v3852, 4294901760
        %3854 = vmatpush1.msra.mxu0 %v3853
        %3855 = vmatprep.subr.mxu0 0.0
        %v3856 = vand.u32 %v2408, 4294901760
        %v3857 = vsub.f32 %v2408, %v3856
        %v3858 = vand.u32 %v3857, 4294901760
        %3859 = vmatpush1.msra.mxu0 %v3858
        %3860 = vmatprep.subr.mxu0 0.0
        %v3861 = vand.u32 %v2409, 4294901760
        %v3862 = vsub.f32 %v2409, %v3861
        %v3863 = vand.u32 %v3862, 4294901760
        %3864 = vmatpush1.msra.mxu0 %v3863
        %3865 = vmatprep.subr.mxu0 0.0
        %v3866 = vand.u32 %v2410, 4294901760
        %v3867 = vsub.f32 %v2410, %v3866
        %v3868 = vand.u32 %v3867, 4294901760
        %3869 = vmatpush1.msra.mxu0 %v3868
        %3870 = vmatprep.subr.mxu0 0.0
        %v3871 = vand.u32 %v2411, 4294901760
        %v3872 = vsub.f32 %v2411, %v3871
        %v3873 = vand.u32 %v3872, 4294901760
        %3874 = vmatpush1.msra.mxu0 %v3873
        %3875 = vmatprep.subr.mxu0 0.0
        %v3876 = vand.u32 %v2412, 4294901760
        %v3877 = vsub.f32 %v2412, %v3876
        %v3878 = vand.u32 %v3877, 4294901760
        %3879 = vmatpush1.msra.mxu0 %v3878
        %3880 = vmatprep.subr.mxu0 0.0
        %v3881 = vand.u32 %v2413, 4294901760
        %v3882 = vsub.f32 %v2413, %v3881
        %v3883 = vand.u32 %v3882, 4294901760
        %3884 = vmatpush1.msra.mxu0 %v3883
        %3885 = vmatprep.subr.mxu0 0.0
        %v3886 = vand.u32 %v2414, 4294901760
        %v3887 = vsub.f32 %v2414, %v3886
        %v3888 = vand.u32 %v3887, 4294901760
        %3889 = vmatpush1.msra.mxu0 %v3888
        %3890 = vmatprep.subr.mxu0 0.0
        %v3891 = vand.u32 %v2415, 4294901760
        %v3892 = vsub.f32 %v2415, %v3891
        %v3893 = vand.u32 %v3892, 4294901760
        %3894 = vmatpush1.msra.mxu0 %v3893
        %3895 = vmatprep.subr.mxu0 0.0
        %v3896 = vand.u32 %v2416, 4294901760
        %v3897 = vsub.f32 %v2416, %v3896
        %v3898 = vand.u32 %v3897, 4294901760
        %3899 = vmatpush1.msra.mxu0 %v3898
        %3900 = vmatprep.subr.mxu0 0.0
        %3901 = vmatpush1.msra.mxu0 0.0
        %3902 = vmatprep.subr.mxu0 0.0
        %3903 = vmatpush1.msra.mxu0 0.0
        %3904 = vmatprep.subr.mxu0 0.0
        %3905 = vmatpush1.msra.mxu0 0.0
        %3906 = vmatprep.subr.mxu0 0.0
        %3907 = vmatpush1.msra.mxu0 0.0
        %3908 = vmatprep.subr.mxu0 0.0
        %3909 = vmatpush1.msra.mxu0 0.0
        %3910 = vmatprep.subr.mxu0 0.0
        %3911 = vmatpush1.msra.mxu0 0.0
        %3912 = vmatprep.subr.mxu0 0.0
        %3913 = vmatpush1.msra.mxu0 0.0
        %3914 = vmatprep.subr.mxu0 0.0
        %3915 = vmatpush1.msra.mxu0 0.0
        %3916 = vmatprep.subr.mxu0 0.0
        %3917 = vmatpush1.msra.mxu0 0.0
        %3918 = vmatprep.subr.mxu0 0.0
        %3919 = vmatpush1.msra.mxu0 0.0
        %3920 = vmatprep.subr.mxu0 0.0
        %3921 = vmatpush1.msra.mxu0 0.0
        %3922 = vmatprep.subr.mxu0 0.0
        %3923 = vmatpush1.msra.mxu0 0.0
        %3924 = vmatprep.subr.mxu0 0.0
        %3925 = vmatpush1.msra.mxu0 0.0
        %3926 = vmatprep.subr.mxu0 0.0
        %3927 = vmatpush1.msra.mxu0 0.0
        %3928 = vmatprep.subr.mxu0 0.0
        %3929 = vmatpush1.msra.mxu0 0.0
        %3930 = vmatprep.subr.mxu0 0.0
        %3931 = vmatpush1.msra.mxu0 0.0
        %3932 = vmatprep.mubr.f32.mxu0 0.0
        %v3933 = vand.u32 %v2369, 4294901760
        %3934 = vmatmul.mubr.f32.gmra.mrb[0].mxu0 %v3933
        %v3935 = vpop.f32.mrb[0].mxu0
        %v3936 = vadd.f32 %v3569, %v3935
        %v3937 = vpop.f32.mrb[0].mxu0
        %3938 = vmatprep.mubr.f32.mxu0 0.0
        %v3939 = vand.u32 %v2370, 4294901760
        %3940 = vmatmul.mubr.f32.gmra.mrb[0].mxu0 %v3939
        %v3941 = vpop.f32.mrb[0].mxu0
        %v3942 = vadd.f32 %v3577, %v3941
        %v3943 = vpop.f32.mrb[0].mxu0
        %3944 = vmatprep.mubr.f32.mxu0 0.0
        %v3945 = vand.u32 %v2371, 4294901760
        %3946 = vmatmul.mubr.f32.gmra.mrb[0].mxu0 %v3945
        %v3947 = vpop.f32.mrb[0].mxu0
        %v3948 = vadd.f32 %v3585, %v3947
        %v3949 = vpop.f32.mrb[0].mxu0
        %3950 = vmatprep.mubr.f32.mxu0 0.0
        %v3951 = vand.u32 %v2372, 4294901760
        %3952 = vmatmul.mubr.f32.gmra.mrb[0].mxu0 %v3951
        %v3953 = vpop.f32.mrb[0].mxu0
        %v3954 = vadd.f32 %v3593, %v3953
        %v3955 = vpop.f32.mrb[0].mxu0
        %3956 = vmatprep.mubr.f32.mxu0 0.0
        %v3957 = vand.u32 %v2373, 4294901760
        %3958 = vmatmul.mubr.f32.gmra.mrb[0].mxu0 %v3957
        %v3959 = vpop.f32.mrb[0].mxu0
        %v3960 = vadd.f32 %v3601, %v3959
        %v3961 = vpop.f32.mrb[0].mxu0
        %3962 = vmatprep.mubr.f32.mxu0 0.0
        %v3963 = vand.u32 %v2374, 4294901760
        %3964 = vmatmul.mubr.f32.gmra.mrb[0].mxu0 %v3963
        %v3965 = vpop.f32.mrb[0].mxu0
        %v3966 = vadd.f32 %v3609, %v3965
        %v3967 = vpop.f32.mrb[0].mxu0
        %3968 = vmatprep.mubr.f32.mxu0 0.0
        %v3969 = vand.u32 %v2375, 4294901760
        %3970 = vmatmul.mubr.f32.gmra.mrb[0].mxu0 %v3969
        %v3971 = vpop.f32.mrb[0].mxu0
        %v3972 = vadd.f32 %v3617, %v3971
        %v3973 = vpop.f32.mrb[0].mxu0
        %3974 = vmatprep.mubr.f32.mxu0 0.0
        %v3975 = vand.u32 %v2376, 4294901760
        %3976 = vmatmul.mubr.f32.gmra.mrb[0].mxu0 %v3975
        %v3977 = vpop.f32.mrb[0].mxu0
        %v3978 = vadd.f32 %v3625, %v3977
        %v3979 = vpop.f32.mrb[0].mxu0
        %3980 = vmatprep.mubr.f32.mxu0 0.0
        %v3981 = vand.u32 %v2377, 4294901760
        %3982 = vmatmul.mubr.f32.gmra.mrb[0].mxu0 %v3981
        %v3983 = vpop.f32.mrb[0].mxu0
        %v3984 = vadd.f32 %v3633, %v3983
        %v3985 = vpop.f32.mrb[0].mxu0
        %3986 = vmatprep.mubr.f32.mxu0 0.0
        %v3987 = vand.u32 %v2378, 4294901760
        %3988 = vmatmul.mubr.f32.gmra.mrb[0].mxu0 %v3987
        %v3989 = vpop.f32.mrb[0].mxu0
        %v3990 = vadd.f32 %v3641, %v3989
        %v3991 = vpop.f32.mrb[0].mxu0
        %3992 = vmatprep.mubr.f32.mxu0 0.0
        %v3993 = vand.u32 %v2379, 4294901760
        %3994 = vmatmul.mubr.f32.gmra.mrb[0].mxu0 %v3993
        %v3995 = vpop.f32.mrb[0].mxu0
        %v3996 = vadd.f32 %v3649, %v3995
        %v3997 = vpop.f32.mrb[0].mxu0
        %3998 = vmatprep.mubr.f32.mxu0 0.0
        %v3999 = vand.u32 %v2380, 4294901760
        %4000 = vmatmul.mubr.f32.gmra.mrb[0].mxu0 %v3999
        %v4001 = vpop.f32.mrb[0].mxu0
        %v4002 = vadd.f32 %v3657, %v4001
        %v4003 = vpop.f32.mrb[0].mxu0
        %4004 = vmatprep.mubr.f32.mxu0 0.0
        %v4005 = vand.u32 %v2381, 4294901760
        %4006 = vmatmul.mubr.f32.gmra.mrb[0].mxu0 %v4005
        %v4007 = vpop.f32.mrb[0].mxu0
        %v4008 = vadd.f32 %v3665, %v4007
        %v4009 = vpop.f32.mrb[0].mxu0
        %4010 = vmatprep.mubr.f32.mxu0 0.0
        %v4011 = vand.u32 %v2382, 4294901760
        %4012 = vmatmul.mubr.f32.gmra.mrb[0].mxu0 %v4011
        %v4013 = vpop.f32.mrb[0].mxu0
        %v4014 = vadd.f32 %v3673, %v4013
        %v4015 = vpop.f32.mrb[0].mxu0
        %4016 = vmatprep.mubr.f32.mxu0 0.0
        %v4017 = vand.u32 %v2383, 4294901760
        %4018 = vmatmul.mubr.f32.gmra.mrb[0].mxu0 %v4017
        %v4019 = vpop.f32.mrb[0].mxu0
        %v4020 = vadd.f32 %v3681, %v4019
        %v4021 = vpop.f32.mrb[0].mxu0
        %4022 = vmatprep.mubr.f32.mxu0 0.0
        %v4023 = vand.u32 %v2384, 4294901760
        %4024 = vmatmul.mubr.f32.gmra.mrb[0].mxu0 %v4023
        %v4025 = vpop.f32.mrb[0].mxu0
        %v4026 = vadd.f32 %v3689, %v4025
        %v4027 = vpop.f32.mrb[0].mxu0
        %4028 = vmatprep.mubr.f32.mxu0 0.0
        %v4029 = vand.u32 %v2385, 4294901760
        %4030 = vmatmul.mubr.f32.gmra.mrb[0].mxu0 %v4029
        %v4031 = vpop.f32.mrb[0].mxu0
        %v4032 = vadd.f32 %v3697, %v4031
        %v4033 = vpop.f32.mrb[0].mxu0
        %4034 = vmatprep.mubr.f32.mxu0 0.0
        %v4035 = vand.u32 %v2386, 4294901760
        %4036 = vmatmul.mubr.f32.gmra.mrb[0].mxu0 %v4035
        %v4037 = vpop.f32.mrb[0].mxu0
        %v4038 = vadd.f32 %v3705, %v4037
        %v4039 = vpop.f32.mrb[0].mxu0
        %4040 = vmatprep.mubr.f32.mxu0 0.0
        %v4041 = vand.u32 %v2387, 4294901760
        %4042 = vmatmul.mubr.f32.gmra.mrb[0].mxu0 %v4041
        %v4043 = vpop.f32.mrb[0].mxu0
        %v4044 = vadd.f32 %v3713, %v4043
        %v4045 = vpop.f32.mrb[0].mxu0
        %4046 = vmatprep.mubr.f32.mxu0 0.0
        %v4047 = vand.u32 %v2388, 4294901760
        %4048 = vmatmul.mubr.f32.gmra.mrb[0].mxu0 %v4047
        %v4049 = vpop.f32.mrb[0].mxu0
        %v4050 = vadd.f32 %v3721, %v4049
        %v4051 = vpop.f32.mrb[0].mxu0
        %4052 = vmatprep.mubr.f32.mxu0 0.0
        %v4053 = vand.u32 %v2389, 4294901760
        %4054 = vmatmul.mubr.f32.gmra.mrb[0].mxu0 %v4053
        %v4055 = vpop.f32.mrb[0].mxu0
        %v4056 = vadd.f32 %v3729, %v4055
        %v4057 = vpop.f32.mrb[0].mxu0
        %4058 = vmatprep.mubr.f32.mxu0 0.0
        %v4059 = vand.u32 %v2390, 4294901760
        %4060 = vmatmul.mubr.f32.gmra.mrb[0].mxu0 %v4059
        %v4061 = vpop.f32.mrb[0].mxu0
        %v4062 = vadd.f32 %v3737, %v4061
        %v4063 = vpop.f32.mrb[0].mxu0
        %4064 = vmatprep.mubr.f32.mxu0 0.0
        %v4065 = vand.u32 %v2391, 4294901760
        %4066 = vmatmul.mubr.f32.gmra.mrb[0].mxu0 %v4065
        %v4067 = vpop.f32.mrb[0].mxu0
        %v4068 = vadd.f32 %v3745, %v4067
        %v4069 = vpop.f32.mrb[0].mxu0
        %4070 = vmatprep.mubr.f32.mxu0 0.0
        %v4071 = vand.u32 %v2392, 4294901760
        %4072 = vmatmul.mubr.f32.gmra.mrb[0].mxu0 %v4071
        %v4073 = vpop.f32.mrb[0].mxu0
        %v4074 = vadd.f32 %v3753, %v4073
        %v4075 = vpop.f32.mrb[0].mxu0
        %4076 = vmatprep.mubr.f32.mxu0 0.0
        %v4077 = vand.u32 %v2393, 4294901760
        %4078 = vmatmul.mubr.f32.gmra.mrb[0].mxu0 %v4077
        %v4079 = vpop.f32.mrb[0].mxu0
        %v4080 = vadd.f32 %v3761, %v4079
        %v4081 = vpop.f32.mrb[0].mxu0
        %4082 = vmatprep.mubr.f32.mxu0 0.0
        %v4083 = vand.u32 %v2394, 4294901760
        %4084 = vmatmul.mubr.f32.gmra.mrb[0].mxu0 %v4083
        %v4085 = vpop.f32.mrb[0].mxu0
        %v4086 = vadd.f32 %v3769, %v4085
        %v4087 = vpop.f32.mrb[0].mxu0
        %4088 = vmatprep.mubr.f32.mxu0 0.0
        %v4089 = vand.u32 %v2395, 4294901760
        %4090 = vmatmul.mubr.f32.gmra.mrb[0].mxu0 %v4089
        %v4091 = vpop.f32.mrb[0].mxu0
        %v4092 = vadd.f32 %v3777, %v4091
        %v4093 = vpop.f32.mrb[0].mxu0
        %4094 = vmatprep.mubr.f32.mxu0 0.0
        %v4095 = vand.u32 %v2396, 4294901760
        %4096 = vmatmul.mubr.f32.gmra.mrb[0].mxu0 %v4095
        %v4097 = vpop.f32.mrb[0].mxu0
        %v4098 = vadd.f32 %v3785, %v4097
        %v4099 = vpop.f32.mrb[0].mxu0
        %4100 = vmatprep.mubr.f32.mxu0 0.0
        %v4101 = vand.u32 %v2397, 4294901760
        %4102 = vmatmul.mubr.f32.gmra.mrb[0].mxu0 %v4101
        %v4103 = vpop.f32.mrb[0].mxu0
        %v4104 = vadd.f32 %v3793, %v4103
        %v4105 = vpop.f32.mrb[0].mxu0
        %4106 = vmatprep.mubr.f32.mxu0 0.0
        %v4107 = vand.u32 %v2398, 4294901760
        %4108 = vmatmul.mubr.f32.gmra.mrb[0].mxu0 %v4107
        %v4109 = vpop.f32.mrb[0].mxu0
        %v4110 = vadd.f32 %v3801, %v4109
        %v4111 = vpop.f32.mrb[0].mxu0
        %4112 = vmatprep.mubr.f32.mxu0 0.0
        %v4113 = vand.u32 %v2399, 4294901760
        %4114 = vmatmul.mubr.f32.gmra.mrb[0].mxu0 %v4113
        %v4115 = vpop.f32.mrb[0].mxu0
        %v4116 = vadd.f32 %v3809, %v4115
        %v4117 = vpop.f32.mrb[0].mxu0
        %4118 = vmatprep.mubr.f32.mxu0 0.0
        %v4119 = vand.u32 %v2400, 4294901760
        %4120 = vmatmul.mubr.f32.gmra.mrb[0].mxu0 %v4119
        %v4121 = vpop.f32.mrb[0].mxu0
        %v4122 = vadd.f32 %v3817, %v4121
        %v4123 = vpop.f32.mrb[0].mxu0
        %4124 = vdwg.mxu0
        %4125 = vmatprep.subr.mxu0 0.0
        %v4126 = vand.u32 %v2401, 4294901760
        %4127 = vmatpush1.msra.mxu0 %v4126
        %4128 = vmatprep.subr.mxu0 0.0
        %v4129 = vand.u32 %v2402, 4294901760
        %4130 = vmatpush1.msra.mxu0 %v4129
        %4131 = vmatprep.subr.mxu0 0.0
        %v4132 = vand.u32 %v2403, 4294901760
        %4133 = vmatpush1.msra.mxu0 %v4132
        %4134 = vmatprep.subr.mxu0 0.0
        %v4135 = vand.u32 %v2404, 4294901760
        %4136 = vmatpush1.msra.mxu0 %v4135
        %4137 = vmatprep.subr.mxu0 0.0
        %v4138 = vand.u32 %v2405, 4294901760
        %4139 = vmatpush1.msra.mxu0 %v4138
        %4140 = vmatprep.subr.mxu0 0.0
        %v4141 = vand.u32 %v2406, 4294901760
        %4142 = vmatpush1.msra.mxu0 %v4141
        %4143 = vmatprep.subr.mxu0 0.0
        %v4144 = vand.u32 %v2407, 4294901760
        %4145 = vmatpush1.msra.mxu0 %v4144
        %4146 = vmatprep.subr.mxu0 0.0
        %v4147 = vand.u32 %v2408, 4294901760
        %4148 = vmatpush1.msra.mxu0 %v4147
        %4149 = vmatprep.subr.mxu0 0.0
        %v4150 = vand.u32 %v2409, 4294901760
        %4151 = vmatpush1.msra.mxu0 %v4150
        %4152 = vmatprep.subr.mxu0 0.0
        %v4153 = vand.u32 %v2410, 4294901760
        %4154 = vmatpush1.msra.mxu0 %v4153
        %4155 = vmatprep.subr.mxu0 0.0
        %v4156 = vand.u32 %v2411, 4294901760
        %4157 = vmatpush1.msra.mxu0 %v4156
        %4158 = vmatprep.subr.mxu0 0.0
        %v4159 = vand.u32 %v2412, 4294901760
        %4160 = vmatpush1.msra.mxu0 %v4159
        %4161 = vmatprep.subr.mxu0 0.0
        %v4162 = vand.u32 %v2413, 4294901760
        %4163 = vmatpush1.msra.mxu0 %v4162
        %4164 = vmatprep.subr.mxu0 0.0
        %v4165 = vand.u32 %v2414, 4294901760
        %4166 = vmatpush1.msra.mxu0 %v4165
        %4167 = vmatprep.subr.mxu0 0.0
        %v4168 = vand.u32 %v2415, 4294901760
        %4169 = vmatpush1.msra.mxu0 %v4168
        %4170 = vmatprep.subr.mxu0 0.0
        %v4171 = vand.u32 %v2416, 4294901760
        %4172 = vmatpush1.msra.mxu0 %v4171
        %4173 = vmatprep.subr.mxu0 0.0
        %4174 = vmatpush1.msra.mxu0 0.0
        %4175 = vmatprep.subr.mxu0 0.0
        %4176 = vmatpush1.msra.mxu0 0.0
        %4177 = vmatprep.subr.mxu0 0.0
        %4178 = vmatpush1.msra.mxu0 0.0
        %4179 = vmatprep.subr.mxu0 0.0
        %4180 = vmatpush1.msra.mxu0 0.0
        %4181 = vmatprep.subr.mxu0 0.0
        %4182 = vmatpush1.msra.mxu0 0.0
        %4183 = vmatprep.subr.mxu0 0.0
        %4184 = vmatpush1.msra.mxu0 0.0
        %4185 = vmatprep.subr.mxu0 0.0
        %4186 = vmatpush1.msra.mxu0 0.0
        %4187 = vmatprep.subr.mxu0 0.0
        %4188 = vmatpush1.msra.mxu0 0.0
        %4189 = vmatprep.subr.mxu0 0.0
        %4190 = vmatpush1.msra.mxu0 0.0
        %4191 = vmatprep.subr.mxu0 0.0
        %4192 = vmatpush1.msra.mxu0 0.0
        %4193 = vmatprep.subr.mxu0 0.0
        %4194 = vmatpush1.msra.mxu0 0.0
        %4195 = vmatprep.subr.mxu0 0.0
        %4196 = vmatpush1.msra.mxu0 0.0
        %4197 = vmatprep.subr.mxu0 0.0
        %4198 = vmatpush1.msra.mxu0 0.0
        %4199 = vmatprep.subr.mxu0 0.0
        %4200 = vmatpush1.msra.mxu0 0.0
        %4201 = vmatprep.subr.mxu0 0.0
        %4202 = vmatpush1.msra.mxu0 0.0
        %4203 = vmatprep.subr.mxu0 0.0
        %4204 = vmatpush1.msra.mxu0 0.0
        %4205 = vmatprep.mubr.f32.mxu0 0.0
        %v4206 = vand.u32 %v2369, 4294901760
        %4207 = vmatmul.mubr.f32.gmra.mrb[0].mxu0 %v4206
        %v4208 = vpop.f32.mrb[0].mxu0
        %v4209 = vadd.f32 %v3936, %v4208
        %v4210 = vpop.f32.mrb[0].mxu0
        %4211 = vmatprep.mubr.f32.mxu0 0.0
        %v4212 = vand.u32 %v2370, 4294901760
        %4213 = vmatmul.mubr.f32.gmra.mrb[0].mxu0 %v4212
        %v4214 = vpop.f32.mrb[0].mxu0
        %v4215 = vadd.f32 %v3942, %v4214
        %v4216 = vpop.f32.mrb[0].mxu0
        %4217 = vmatprep.mubr.f32.mxu0 0.0
        %v4218 = vand.u32 %v2371, 4294901760
        %4219 = vmatmul.mubr.f32.gmra.mrb[0].mxu0 %v4218
        %v4220 = vpop.f32.mrb[0].mxu0
        %v4221 = vadd.f32 %v3948, %v4220
        %v4222 = vpop.f32.mrb[0].mxu0
        %4223 = vmatprep.mubr.f32.mxu0 0.0
        %v4224 = vand.u32 %v2372, 4294901760
        %4225 = vmatmul.mubr.f32.gmra.mrb[0].mxu0 %v4224
        %v4226 = vpop.f32.mrb[0].mxu0
        %v4227 = vadd.f32 %v3954, %v4226
        %v4228 = vpop.f32.mrb[0].mxu0
        %4229 = vmatprep.mubr.f32.mxu0 0.0
        %v4230 = vand.u32 %v2373, 4294901760
        %4231 = vmatmul.mubr.f32.gmra.mrb[0].mxu0 %v4230
        %v4232 = vpop.f32.mrb[0].mxu0
        %v4233 = vadd.f32 %v3960, %v4232
        %v4234 = vpop.f32.mrb[0].mxu0
        %4235 = vmatprep.mubr.f32.mxu0 0.0
        %v4236 = vand.u32 %v2374, 4294901760
        %4237 = vmatmul.mubr.f32.gmra.mrb[0].mxu0 %v4236
        %v4238 = vpop.f32.mrb[0].mxu0
        %v4239 = vadd.f32 %v3966, %v4238
        %v4240 = vpop.f32.mrb[0].mxu0
        %4241 = vmatprep.mubr.f32.mxu0 0.0
        %v4242 = vand.u32 %v2375, 4294901760
        %4243 = vmatmul.mubr.f32.gmra.mrb[0].mxu0 %v4242
        %v4244 = vpop.f32.mrb[0].mxu0
        %v4245 = vadd.f32 %v3972, %v4244
        %v4246 = vpop.f32.mrb[0].mxu0
        %4247 = vmatprep.mubr.f32.mxu0 0.0
        %v4248 = vand.u32 %v2376, 4294901760
        %4249 = vmatmul.mubr.f32.gmra.mrb[0].mxu0 %v4248
        %v4250 = vpop.f32.mrb[0].mxu0
        %v4251 = vadd.f32 %v3978, %v4250
        %v4252 = vpop.f32.mrb[0].mxu0
        %4253 = vmatprep.mubr.f32.mxu0 0.0
        %v4254 = vand.u32 %v2377, 4294901760
        %4255 = vmatmul.mubr.f32.gmra.mrb[0].mxu0 %v4254
        %v4256 = vpop.f32.mrb[0].mxu0
        %v4257 = vadd.f32 %v3984, %v4256
        %v4258 = vpop.f32.mrb[0].mxu0
        %4259 = vmatprep.mubr.f32.mxu0 0.0
        %v4260 = vand.u32 %v2378, 4294901760
        %4261 = vmatmul.mubr.f32.gmra.mrb[0].mxu0 %v4260
        %v4262 = vpop.f32.mrb[0].mxu0
        %v4263 = vadd.f32 %v3990, %v4262
        %v4264 = vpop.f32.mrb[0].mxu0
        %4265 = vmatprep.mubr.f32.mxu0 0.0
        %v4266 = vand.u32 %v2379, 4294901760
        %4267 = vmatmul.mubr.f32.gmra.mrb[0].mxu0 %v4266
        %v4268 = vpop.f32.mrb[0].mxu0
        %v4269 = vadd.f32 %v3996, %v4268
        %v4270 = vpop.f32.mrb[0].mxu0
        %4271 = vmatprep.mubr.f32.mxu0 0.0
        %v4272 = vand.u32 %v2380, 4294901760
        %4273 = vmatmul.mubr.f32.gmra.mrb[0].mxu0 %v4272
        %v4274 = vpop.f32.mrb[0].mxu0
        %v4275 = vadd.f32 %v4002, %v4274
        %v4276 = vpop.f32.mrb[0].mxu0
        %4277 = vmatprep.mubr.f32.mxu0 0.0
        %v4278 = vand.u32 %v2381, 4294901760
        %4279 = vmatmul.mubr.f32.gmra.mrb[0].mxu0 %v4278
        %v4280 = vpop.f32.mrb[0].mxu0
        %v4281 = vadd.f32 %v4008, %v4280
        %v4282 = vpop.f32.mrb[0].mxu0
        %4283 = vmatprep.mubr.f32.mxu0 0.0
        %v4284 = vand.u32 %v2382, 4294901760
        %4285 = vmatmul.mubr.f32.gmra.mrb[0].mxu0 %v4284
        %v4286 = vpop.f32.mrb[0].mxu0
        %v4287 = vadd.f32 %v4014, %v4286
        %v4288 = vpop.f32.mrb[0].mxu0
        %4289 = vmatprep.mubr.f32.mxu0 0.0
        %v4290 = vand.u32 %v2383, 4294901760
        %4291 = vmatmul.mubr.f32.gmra.mrb[0].mxu0 %v4290
        %v4292 = vpop.f32.mrb[0].mxu0
        %v4293 = vadd.f32 %v4020, %v4292
        %v4294 = vpop.f32.mrb[0].mxu0
        %4295 = vmatprep.mubr.f32.mxu0 0.0
        %v4296 = vand.u32 %v2384, 4294901760
        %4297 = vmatmul.mubr.f32.gmra.mrb[0].mxu0 %v4296
        %v4298 = vpop.f32.mrb[0].mxu0
        %v4299 = vadd.f32 %v4026, %v4298
        %v4300 = vpop.f32.mrb[0].mxu0
        %4301 = vmatprep.mubr.f32.mxu0 0.0
        %v4302 = vand.u32 %v2385, 4294901760
        %4303 = vmatmul.mubr.f32.gmra.mrb[0].mxu0 %v4302
        %v4304 = vpop.f32.mrb[0].mxu0
        %v4305 = vadd.f32 %v4032, %v4304
        %v4306 = vpop.f32.mrb[0].mxu0
        %4307 = vmatprep.mubr.f32.mxu0 0.0
        %v4308 = vand.u32 %v2386, 4294901760
        %4309 = vmatmul.mubr.f32.gmra.mrb[0].mxu0 %v4308
        %v4310 = vpop.f32.mrb[0].mxu0
        %v4311 = vadd.f32 %v4038, %v4310
        %v4312 = vpop.f32.mrb[0].mxu0
        %4313 = vmatprep.mubr.f32.mxu0 0.0
        %v4314 = vand.u32 %v2387, 4294901760
        %4315 = vmatmul.mubr.f32.gmra.mrb[0].mxu0 %v4314
        %v4316 = vpop.f32.mrb[0].mxu0
        %v4317 = vadd.f32 %v4044, %v4316
        %v4318 = vpop.f32.mrb[0].mxu0
        %4319 = vmatprep.mubr.f32.mxu0 0.0
        %v4320 = vand.u32 %v2388, 4294901760
        %4321 = vmatmul.mubr.f32.gmra.mrb[0].mxu0 %v4320
        %v4322 = vpop.f32.mrb[0].mxu0
        %v4323 = vadd.f32 %v4050, %v4322
        %v4324 = vpop.f32.mrb[0].mxu0
        %4325 = vmatprep.mubr.f32.mxu0 0.0
        %v4326 = vand.u32 %v2389, 4294901760
        %4327 = vmatmul.mubr.f32.gmra.mrb[0].mxu0 %v4326
        %v4328 = vpop.f32.mrb[0].mxu0
        %v4329 = vadd.f32 %v4056, %v4328
        %v4330 = vpop.f32.mrb[0].mxu0
        %4331 = vmatprep.mubr.f32.mxu0 0.0
        %v4332 = vand.u32 %v2390, 4294901760
        %4333 = vmatmul.mubr.f32.gmra.mrb[0].mxu0 %v4332
        %v4334 = vpop.f32.mrb[0].mxu0
        %v4335 = vadd.f32 %v4062, %v4334
        %v4336 = vpop.f32.mrb[0].mxu0
        %4337 = vmatprep.mubr.f32.mxu0 0.0
        %v4338 = vand.u32 %v2391, 4294901760
        %4339 = vmatmul.mubr.f32.gmra.mrb[0].mxu0 %v4338
        %v4340 = vpop.f32.mrb[0].mxu0
        %v4341 = vadd.f32 %v4068, %v4340
        %v4342 = vpop.f32.mrb[0].mxu0
        %4343 = vmatprep.mubr.f32.mxu0 0.0
        %v4344 = vand.u32 %v2392, 4294901760
        %4345 = vmatmul.mubr.f32.gmra.mrb[0].mxu0 %v4344
        %v4346 = vpop.f32.mrb[0].mxu0
        %v4347 = vadd.f32 %v4074, %v4346
        %v4348 = vpop.f32.mrb[0].mxu0
        %4349 = vmatprep.mubr.f32.mxu0 0.0
        %v4350 = vand.u32 %v2393, 4294901760
        %4351 = vmatmul.mubr.f32.gmra.mrb[0].mxu0 %v4350
        %v4352 = vpop.f32.mrb[0].mxu0
        %v4353 = vadd.f32 %v4080, %v4352
        %v4354 = vpop.f32.mrb[0].mxu0
        %4355 = vmatprep.mubr.f32.mxu0 0.0
        %v4356 = vand.u32 %v2394, 4294901760
        %4357 = vmatmul.mubr.f32.gmra.mrb[0].mxu0 %v4356
        %v4358 = vpop.f32.mrb[0].mxu0
        %v4359 = vadd.f32 %v4086, %v4358
        %v4360 = vpop.f32.mrb[0].mxu0
        %4361 = vmatprep.mubr.f32.mxu0 0.0
        %v4362 = vand.u32 %v2395, 4294901760
        %4363 = vmatmul.mubr.f32.gmra.mrb[0].mxu0 %v4362
        %v4364 = vpop.f32.mrb[0].mxu0
        %v4365 = vadd.f32 %v4092, %v4364
        %v4366 = vpop.f32.mrb[0].mxu0
        %4367 = vmatprep.mubr.f32.mxu0 0.0
        %v4368 = vand.u32 %v2396, 4294901760
        %4369 = vmatmul.mubr.f32.gmra.mrb[0].mxu0 %v4368
        %v4370 = vpop.f32.mrb[0].mxu0
        %v4371 = vadd.f32 %v4098, %v4370
        %v4372 = vpop.f32.mrb[0].mxu0
        %4373 = vmatprep.mubr.f32.mxu0 0.0
        %v4374 = vand.u32 %v2397, 4294901760
        %4375 = vmatmul.mubr.f32.gmra.mrb[0].mxu0 %v4374
        %v4376 = vpop.f32.mrb[0].mxu0
        %v4377 = vadd.f32 %v4104, %v4376
        %v4378 = vpop.f32.mrb[0].mxu0
        %4379 = vmatprep.mubr.f32.mxu0 0.0
        %v4380 = vand.u32 %v2398, 4294901760
        %4381 = vmatmul.mubr.f32.gmra.mrb[0].mxu0 %v4380
        %v4382 = vpop.f32.mrb[0].mxu0
        %v4383 = vadd.f32 %v4110, %v4382
        %v4384 = vpop.f32.mrb[0].mxu0
        %4385 = vmatprep.mubr.f32.mxu0 0.0
        %v4386 = vand.u32 %v2399, 4294901760
        %4387 = vmatmul.mubr.f32.gmra.mrb[0].mxu0 %v4386
        %v4388 = vpop.f32.mrb[0].mxu0
        %v4389 = vadd.f32 %v4116, %v4388
        %v4390 = vpop.f32.mrb[0].mxu0
        %4391 = vmatprep.mubr.f32.mxu0 0.0
        %v4392 = vand.u32 %v2400, 4294901760
        %4393 = vmatmul.mubr.f32.gmra.mrb[0].mxu0 %v4392
        %v4394 = vpop.f32.mrb[0].mxu0
        %v4395 = vadd.f32 %v4122, %v4394
        %v4396 = vpop.f32.mrb[0].mxu0
        %4397 = vdwg.mxu0
        %4398 = vst [vmem:[%s191] sm:$0xff] %v4209
        %4399 = vst [vmem:[%s191 + $0x8] sm:$0xff] %v4215
        %4400 = vst [vmem:[%s191 + $0x10] sm:$0xff] %v4221
        %4401 = vst [vmem:[%s191 + $0x18] sm:$0xff] %v4227
        %4402 = vst [vmem:[%s191 + $0x20] sm:$0xff] %v4233
        %4403 = vst [vmem:[%s191 + $0x28] sm:$0xff] %v4239
        %4404 = vst [vmem:[%s191 + $0x30] sm:$0xff] %v4245
        %4405 = vst [vmem:[%s191 + $0x38] sm:$0xff] %v4251
        %4406 = vst [vmem:[%s191 + $0x40] sm:$0xff] %v4257
        %4407 = vst [vmem:[%s191 + $0x48] sm:$0xff] %v4263
        %4408 = vst [vmem:[%s191 + $0x50] sm:$0xff] %v4269
        %4409 = vst [vmem:[%s191 + $0x58] sm:$0xff] %v4275
        %4410 = vst [vmem:[%s191 + $0x60] sm:$0xff] %v4281
        %4411 = vst [vmem:[%s191 + $0x68] sm:$0xff] %v4287
        %4412 = vst [vmem:[%s191 + $0x70] sm:$0xff] %v4293
        %4413 = vst [vmem:[%s191 + $0x78] sm:$0xff] %v4299
        %4414 = vst [vmem:[%s191 + $0x80] sm:$0xff] %v4305
        %4415 = vst [vmem:[%s191 + $0x88] sm:$0xff] %v4311
        %4416 = vst [vmem:[%s191 + $0x90] sm:$0xff] %v4317
        %4417 = vst [vmem:[%s191 + $0x98] sm:$0xff] %v4323
        %4418 = vst [vmem:[%s191 + $0xa0] sm:$0xff] %v4329
        %4419 = vst [vmem:[%s191 + $0xa8] sm:$0xff] %v4335
        %4420 = vst [vmem:[%s191 + $0xb0] sm:$0xff] %v4341
        %4421 = vst [vmem:[%s191 + $0xb8] sm:$0xff] %v4347
        %4422 = vst [vmem:[%s191 + $0xc0] sm:$0xff] %v4353
        %4423 = vst [vmem:[%s191 + $0xc8] sm:$0xff] %v4359
        %4424 = vst [vmem:[%s191 + $0xd0] sm:$0xff] %v4365
        %4425 = vst [vmem:[%s191 + $0xd8] sm:$0xff] %v4371
        %4426 = vst [vmem:[%s191 + $0xe0] sm:$0xff] %v4377
        %4427 = vst [vmem:[%s191 + $0xe8] sm:$0xff] %v4383
        %4428 = vst [vmem:[%s191 + $0xf0] sm:$0xff] %v4389
        %4429 = vst [vmem:[%s191 + $0xf8] sm:$0xff] %v4395
        %s4430 = sand.u32 %s115, 1
        %s4431 = scalar_lea.sflag [#allocation3], %s4430
        %s4432 = sand.u32 %s115, 1
        %s4433 = smul.addr %s4432, 256
        %s4434 = scalar_lea.vmem [#allocation2], %s4433
        // Predicated region
        $region37: #{tpu_custom_call.1} parent=35 // pred_check
          %p4435 = pneg %p125
        $region38: #{tpu_custom_call.1} parent=35 // pred_check_branch
          %4437 = sbr.rel (%p4435) target = $region40
        $region39: #{tpu_custom_call.1} parent=35 // pred_region
          %s4438 = smul.u32 32, %s18
          %s4440 = ssub.s32 4096, 4096
          %4441 = vsyncadd %s4431, %s4440
          %s4442 = smul.addr %s4438, 128
          %s4443 = scalar_lea.hbm %s4, %s4442
          %s4444 = sshll.u32 %s4434, 4
          %s4445 = int_to_ptr.vmem [resolvable:$true] %s4444
          %4450 = dma.vmem_to_hbm [thread:$0]  %s4445, 4096, %s4443, %s4431, 128, 128, 8
        $region40: #{tpu_custom_call.1} parent=35 // pred_fallthru
          _
      $region36: #{tpu_custom_call.1} parent=5 // pred_fallthru
        _
      %p4451 = scmp.le.s32.totalorder 2, %s13
      // Predicated region
      $region41: #{tpu_custom_call.1} parent=5 // pred_check
        %p4452 = pneg %p4451
      $region42: #{tpu_custom_call.1} parent=5 // pred_check_branch
        %4454 = sbr.rel (%p4452) target = $region44
      $region43: #{tpu_custom_call.1} parent=5 // pred_region
        %s4455 = ssub.s32 %s13, 2
        // Predicated region
        $region45: #{tpu_custom_call.1} parent=43 // pred_check
          %p4456 = pneg %p131
        $region46: #{tpu_custom_call.1} parent=43 // pred_check_branch
          %4458 = sbr.rel (%p4456) target = $region48
        $region47: #{tpu_custom_call.1} parent=43 // pred_region
          %s4459 = sand.u32 %s116, 1
          %s4460 = scalar_lea.sflag [#allocation3], %s4459
          %s4461 = sand.u32 %s116, 1
          %s4462 = smul.addr %s4461, 256
          %s4463 = scalar_lea.vmem [#allocation2], %s4462
          %4464 = dma.done %s4460, 4096
        $region48: #{tpu_custom_call.1} parent=43 // pred_fallthru
          _
      $region44: #{tpu_custom_call.1} parent=5 // pred_fallthru
        _
    $region6: #{tpu_custom_call.1} parent=1 // loop_footer
      %s17 = sadd.s32 1, %s13
    $region7: #{tpu_custom_call.1} parent=1 // loop_footer_branch
      %12 = sbr.rel target = $region3
    $region8: #{tpu_custom_call.1} parent=1 // loop_exit
      _
    %4465 = vsyncpa [#allocation3], 1
    %s4466 = scalar_lea.sflag [#allocation3], 1
    %4467 = vsyncpa %s4466, 1

</llo_original>
